<compile_context>
chip_gen: v7x
topology: tpu7x:2x2x1
jax: 0.10.0
libtpu: 0.0.40
codegen_flags: <defaults>
</compile_context>

<pallas_src>
import jax
import jax.numpy as jnp
from jax.experimental import pallas as pl
from jax.experimental.pallas import tpu as pltpu

HIDDEN = 64           # logical hidden size (matches the PyTorch module)
HP = 128              # padded per-gate lane width (one full vreg lane block)
INPUT = 3
NLAYERS = 2
OUTPUT = 4

_GATE_ORDER = (0, 1, 3, 2)  # PyTorch (i, f, g, o) -> kernel (i, f, o, g)


def _lstm_gates(z, c):
    """z: (BP, 4*HP) fused pre-activations, gate order (i, f, o, g).

    Every gate lives in its own 128-lane block, so all slices below are
    vreg-aligned views (no cross-lane XLU traffic).  Padded lanes (64..127 of
    each block) carry sigmoid(0)=0.5 / tanh(0)=0 and keep c/h padding at 0.
    """
    s = jax.nn.sigmoid(z[:, : 3 * HP])   # i | f | o : one contiguous sigmoid slab
    g = jnp.tanh(z[:, 3 * HP:])          # candidate
    i = s[:, :HP]
    f = s[:, HP: 2 * HP]
    o = s[:, 2 * HP: 3 * HP]
    c_new = f * c + i * g
    h_new = o * jnp.tanh(c_new)
    return h_new, c_new


def lstm_kernel(x_ref, wx0_ref, b0_ref, wh0_ref, wx1_ref, wh1_ref, b1_ref,
                wout_ref, bout_ref, out_ref):
    BP = out_ref.shape[0]                 # padded batch (multiple of 8 sublanes)
    T = x_ref.shape[0] // BP
    HP4 = wh0_ref.shape[1]                # 4 * HP

    wh0 = wh0_ref[...]                                    # (HP, 4*HP)
    wx1 = wx1_ref[...]                                    # (HP, 4*HP)
    wh1 = wh1_ref[...]                                    # (HP, 4*HP)
    b1 = jnp.broadcast_to(b1_ref[...], (BP, HP4))         # hoisted broadcast

    # Hoisted layer-0 input projection: one (T*BP, INPUT) @ (INPUT, 4*HP) matmul,
    # bias folded in; removes T tiny contraction-3 matmuls from the serial chain.
    xproj = (jnp.dot(x_ref[...], wx0_ref[...],
                     preferred_element_type=jnp.float32) + b0_ref[...])  # (T*BP, 4*HP)

    h0 = jnp.zeros((BP, HP), jnp.float32)
    c0 = jnp.zeros((BP, HP), jnp.float32)
    h1 = jnp.zeros((BP, HP), jnp.float32)
    c1 = jnp.zeros((BP, HP), jnp.float32)

    # T is small and static -> fully unrolled recurrence, 3 MXU pushes per step.
    for t in range(T):
        # Layer-1 recurrent term first: depends only on step t-1 state, so it
        # overlaps layer-0 MXU/EUP work (MXU has large slack at this M).
        rec1 = jnp.dot(h1, wh1, preferred_element_type=jnp.float32)

        # Layer 0: aligned static slice of xproj (t*BP is a multiple of 8)
        # + single fused (BP, HP) @ (HP, 4*HP) recurrent matmul.
        z0 = xproj[t * BP:(t + 1) * BP, :] + jnp.dot(
            h0, wh0, preferred_element_type=jnp.float32)
        h0, c0 = _lstm_gates(z0, c0)

        # Layer 1: input projection of the freshly computed h0, plus the
        # recurrent term computed above (no per-step concatenate).
        z1 = jnp.dot(h0, wx1, preferred_element_type=jnp.float32) + rec1 + b1
        h1, c1 = _lstm_gates(z1, c1)

    # Output head on last timestep of the top layer + softmax over classes.
    # Padded h1 lanes are zero, padded wout rows are zero -> logits exact.
    logits = jnp.dot(h1, wout_ref[...],
                     preferred_element_type=jnp.float32) + bout_ref[...]
    m = jnp.max(logits, axis=-1, keepdims=True)
    e = jnp.exp(logits - m)
    out_ref[...] = e / jnp.sum(e, axis=-1, keepdims=True)   # exact divide (once per call)


def lstm_forward(x, kernel_params):
    B, T, _ = x.shape
    BP = max(8, -(-B // 8) * 8)   # pad batch rows to a full sublane tile
    # (B, T, in) -> (T, BP, in) -> (T*BP, in): timestep-major rows, batch padded
    # to 8 so every per-step slab of the pre-projected inputs is sublane-aligned.
    xt = jnp.transpose(x, (1, 0, 2))                       # (T, B, INPUT)
    xt = jnp.pad(xt, ((0, 0), (0, BP - B), (0, 0)))        # (T, BP, INPUT)
    x2d = xt.reshape(T * BP, INPUT)

    vmem = pl.BlockSpec(memory_space=pltpu.MemorySpace.VMEM)
    out = pl.pallas_call(
        lstm_kernel,
        out_shape=jax.ShapeDtypeStruct((BP, OUTPUT), jnp.float32),
        in_specs=[vmem] * (1 + len(kernel_params)),
        out_specs=vmem,
    )(x2d, *kernel_params)
    return out[:B]


def init_params(key):
    """Deterministic init mimicking PyTorch shapes: U(-1/sqrt(H), 1/sqrt(H))."""
    k = 1.0 / jnp.sqrt(jnp.float32(HIDDEN))
    names_shapes = [
        ("w_ih_0", (4 * HIDDEN, INPUT)), ("w_hh_0", (4 * HIDDEN, HIDDEN)),
        ("b_ih_0", (4 * HIDDEN,)), ("b_hh_0", (4 * HIDDEN,)),
        ("w_ih_1", (4 * HIDDEN, HIDDEN)), ("w_hh_1", (4 * HIDDEN, HIDDEN)),
        ("b_ih_1", (4 * HIDDEN,)), ("b_hh_1", (4 * HIDDEN,)),
        ("w_out", (OUTPUT, HIDDEN)), ("b_out", (OUTPUT,)),
    ]
    keys = jax.random.split(key, len(names_shapes))
    raw = {name: jax.random.uniform(kk, shape, jnp.float32, -k, k)
           for kk, (name, shape) in zip(keys, names_shapes)}
    return raw


def _fuse_w(w, in_dim, in_pad):
    """PyTorch (4H, in) weight -> fused (in_pad, 4*HP), gate order (i, f, o, g).

    Each gate gets a full 128-lane block (columns H..HP-1 zero); contraction
    rows padded in_dim -> in_pad with zeros.
    """
    w4 = w.reshape(4, HIDDEN, in_dim)[jnp.array(_GATE_ORDER)]       # (4, H, in)
    w4 = jnp.transpose(w4, (0, 2, 1))                               # (4, in, H)
    w4 = jnp.pad(w4, ((0, 0), (0, in_pad - in_dim), (0, HP - HIDDEN)))
    return jnp.transpose(w4, (1, 0, 2)).reshape(in_pad, 4 * HP)     # (in_pad, 4*HP)


def _fuse_b(b_ih, b_hh):
    b = (b_ih + b_hh).reshape(4, HIDDEN)[jnp.array(_GATE_ORDER)]    # (4, H)
    b = jnp.pad(b, ((0, 0), (0, HP - HIDDEN)))                      # (4, HP)
    return b.reshape(1, 4 * HP)


def to_kernel_params(raw):
    """Pack PyTorch-layout weights into the fused, lane-padded kernel layout."""
    wx0 = _fuse_w(raw["w_ih_0"], INPUT, INPUT)       # (INPUT, 4*HP)
    b0 = _fuse_b(raw["b_ih_0"], raw["b_hh_0"])       # (1, 4*HP)
    wh0 = _fuse_w(raw["w_hh_0"], HIDDEN, HP)         # (HP, 4*HP)
    wx1 = _fuse_w(raw["w_ih_1"], HIDDEN, HP)         # (HP, 4*HP), multiplies layer-0 h
    wh1 = _fuse_w(raw["w_hh_1"], HIDDEN, HP)         # (HP, 4*HP), multiplies layer-1 h
    b1 = _fuse_b(raw["b_ih_1"], raw["b_hh_1"])       # (1, 4*HP)
    wout = jnp.pad(raw["w_out"].T, ((0, HP - HIDDEN), (0, 0)))   # (HP, OUTPUT)
    bout = raw["b_out"].reshape(1, OUTPUT)
    return (wx0, b0, wh0, wx1, wh1, b1, wout, bout)


def lstm_ref(x, raw):
    """Pure-JAX reference replicating torch.nn.LSTM(batch_first=True) + Linear + softmax."""
    B, T, _ = x.shape
    h = [jnp.zeros((B, HIDDEN), jnp.float32) for _ in range(NLAYERS)]
    c = [jnp.zeros((B, HIDDEN), jnp.float32) for _ in range(NLAYERS)]

    def cell(inp, h, c, w_ih, w_hh, b_ih, b_hh):
        gates = inp @ w_ih.T + h @ w_hh.T + b_ih + b_hh
        i, f, g, o = jnp.split(gates, 4, axis=-1)
        i = jax.nn.sigmoid(i); f = jax.nn.sigmoid(f)
        g = jnp.tanh(g); o = jax.nn.sigmoid(o)
        c = f * c + i * g
        h = o * jnp.tanh(c)
        return h, c

    for t in range(T):
        inp = x[:, t, :]
        for l in range(NLAYERS):
            h[l], c[l] = cell(inp, h[l], c[l],
                              raw[f"w_ih_{l}"], raw[f"w_hh_{l}"],
                              raw[f"b_ih_{l}"], raw[f"b_hh_{l}"])
            inp = h[l]

    logits = h[-1] @ raw["w_out"].T + raw["b_out"]
    return jax.nn.softmax(logits, axis=1)


if __name__ == "__main__":
    key = jax.random.PRNGKey(0)
    k_x, k_p = jax.random.split(key)

    B, T = 2, 8
    x = jax.random.normal(k_x, (B, T, INPUT), jnp.float32)

    raw = init_params(k_p)
    kernel_params = to_kernel_params(raw)

    out = lstm_forward(x, kernel_params)
    out = jax.block_until_ready(out)

    ref = jax.block_until_ready(lstm_ref(x, raw))
    assert out.shape == (B, OUTPUT)
    assert jnp.allclose(out, ref, rtol=1e-5, atol=1e-5), (out, ref)

    print("KERNEL_OK")
</pallas_src>

<mosaic_0001>
module attributes {stable_mosaic.version = 11 : i64} {
  func.func @lstm_kernel(%arg0: memref<64x3xf32, #tpu.memory_space<vmem>>, %arg1: memref<3x512xf32, #tpu.memory_space<vmem>>, %arg2: memref<1x512xf32, #tpu.memory_space<vmem>>, %arg3: memref<128x512xf32, #tpu.memory_space<vmem>>, %arg4: memref<128x512xf32, #tpu.memory_space<vmem>>, %arg5: memref<128x512xf32, #tpu.memory_space<vmem>>, %arg6: memref<1x512xf32, #tpu.memory_space<vmem>>, %arg7: memref<128x4xf32, #tpu.memory_space<vmem>>, %arg8: memref<1x4xf32, #tpu.memory_space<vmem>>, %arg9: memref<8x4xf32, #tpu.memory_space<vmem>>) attributes {dimension_semantics = [], scalar_prefetch = 0 : i64, scratch_operands = 0 : i64, tpu.core_type = #tpu.core_type<tc>} {
    %c0 = arith.constant 0 : index
    %c0_0 = arith.constant 0 : index
    %0 = vector.load %arg3[%c0, %c0_0] : memref<128x512xf32, #tpu.memory_space<vmem>>, vector<128x512xf32>
    %c0_1 = arith.constant 0 : index
    %c0_2 = arith.constant 0 : index
    %1 = vector.load %arg4[%c0_1, %c0_2] : memref<128x512xf32, #tpu.memory_space<vmem>>, vector<128x512xf32>
    %c0_3 = arith.constant 0 : index
    %c0_4 = arith.constant 0 : index
    %2 = vector.load %arg5[%c0_3, %c0_4] : memref<128x512xf32, #tpu.memory_space<vmem>>, vector<128x512xf32>
    %c0_5 = arith.constant 0 : index
    %c0_6 = arith.constant 0 : index
    %3 = vector.load %arg6[%c0_5, %c0_6] : memref<1x512xf32, #tpu.memory_space<vmem>>, vector<1x512xf32>
    %4 = vector.shape_cast %3 : vector<1x512xf32> to vector<1x512xf32>
    %5 = vector.broadcast %4 : vector<1x512xf32> to vector<8x512xf32>
    %c0_7 = arith.constant 0 : index
    %c0_8 = arith.constant 0 : index
    %6 = vector.load %arg0[%c0_7, %c0_8] : memref<64x3xf32, #tpu.memory_space<vmem>>, vector<64x3xf32>
    %c0_9 = arith.constant 0 : index
    %c0_10 = arith.constant 0 : index
    %7 = vector.load %arg1[%c0_9, %c0_10] : memref<3x512xf32, #tpu.memory_space<vmem>>, vector<3x512xf32>
    %cst = arith.constant dense<0.000000e+00> : vector<64x512xf32>
    %8 = tpu.matmul %6, %7, %cst {dimension_numbers = #tpu.dot_dimension_numbers<[1], [0], [0], [1], [0, 0, 1, 1], [], []>} : vector<64x3xf32>, vector<3x512xf32>, vector<64x512xf32> -> vector<64x512xf32>
    %c0_11 = arith.constant 0 : index
    %c0_12 = arith.constant 0 : index
    %9 = vector.load %arg2[%c0_11, %c0_12] : memref<1x512xf32, #tpu.memory_space<vmem>>, vector<1x512xf32>
    %10 = vector.broadcast %9 : vector<1x512xf32> to vector<64x512xf32>
    %11 = arith.addf %8, %10 : vector<64x512xf32>
    %cst_13 = arith.constant 0.000000e+00 : f32
    %12 = vector.broadcast %cst_13 : f32 to vector<8x128xf32>
    %cst_14 = arith.constant 0.000000e+00 : f32
    %13 = vector.broadcast %cst_14 : f32 to vector<8x128xf32>
    %cst_15 = arith.constant 0.000000e+00 : f32
    %14 = vector.broadcast %cst_15 : f32 to vector<8x128xf32>
    %cst_16 = arith.constant 0.000000e+00 : f32
    %15 = vector.broadcast %cst_16 : f32 to vector<8x128xf32>
    %cst_17 = arith.constant dense<0.000000e+00> : vector<8x512xf32>
    %16 = tpu.matmul %14, %2, %cst_17 {dimension_numbers = #tpu.dot_dimension_numbers<[1], [0], [0], [1], [0, 0, 1, 1], [], []>} : vector<8x128xf32>, vector<128x512xf32>, vector<8x512xf32> -> vector<8x512xf32>
    %17 = vector.extract_strided_slice %11 {offsets = [0, 0], sizes = [8, 512], strides = [1, 1]} : vector<64x512xf32> to vector<8x512xf32>
    %cst_18 = arith.constant dense<0.000000e+00> : vector<8x512xf32>
    %18 = tpu.matmul %12, %0, %cst_18 {dimension_numbers = #tpu.dot_dimension_numbers<[1], [0], [0], [1], [0, 0, 1, 1], [], []>} : vector<8x128xf32>, vector<128x512xf32>, vector<8x512xf32> -> vector<8x512xf32>
    %19 = arith.addf %17, %18 : vector<8x512xf32>
    %20 = vector.extract_strided_slice %19 {offsets = [0, 0], sizes = [8, 384], strides = [1, 1]} : vector<8x512xf32> to vector<8x384xf32>
    %21 = arith.negf %20 : vector<8x384xf32>
    %22 = math.exp %21 : vector<8x384xf32>
    %cst_19 = arith.constant 1.000000e+00 : f32
    %23 = vector.broadcast %cst_19 : f32 to vector<8x384xf32>
    %24 = arith.addf %23, %22 : vector<8x384xf32>
    %25 = arith.divf %23, %24 : vector<8x384xf32>
    %26 = vector.extract_strided_slice %19 {offsets = [0, 384], sizes = [8, 128], strides = [1, 1]} : vector<8x512xf32> to vector<8x128xf32>
    %27 = math.tanh %26 : vector<8x128xf32>
    %28 = vector.extract_strided_slice %25 {offsets = [0, 0], sizes = [8, 128], strides = [1, 1]} : vector<8x384xf32> to vector<8x128xf32>
    %29 = vector.extract_strided_slice %25 {offsets = [0, 128], sizes = [8, 128], strides = [1, 1]} : vector<8x384xf32> to vector<8x128xf32>
    %30 = vector.extract_strided_slice %25 {offsets = [0, 256], sizes = [8, 128], strides = [1, 1]} : vector<8x384xf32> to vector<8x128xf32>
    %31 = arith.mulf %29, %13 : vector<8x128xf32>
    %32 = arith.mulf %28, %27 : vector<8x128xf32>
    %33 = arith.addf %31, %32 : vector<8x128xf32>
    %34 = math.tanh %33 : vector<8x128xf32>
    %35 = arith.mulf %30, %34 : vector<8x128xf32>
    %cst_20 = arith.constant dense<0.000000e+00> : vector<8x512xf32>
    %36 = tpu.matmul %35, %1, %cst_20 {dimension_numbers = #tpu.dot_dimension_numbers<[1], [0], [0], [1], [0, 0, 1, 1], [], []>} : vector<8x128xf32>, vector<128x512xf32>, vector<8x512xf32> -> vector<8x512xf32>
    %37 = arith.addf %36, %16 : vector<8x512xf32>
    %38 = arith.addf %37, %5 : vector<8x512xf32>
    %39 = vector.extract_strided_slice %38 {offsets = [0, 0], sizes = [8, 384], strides = [1, 1]} : vector<8x512xf32> to vector<8x384xf32>
    %40 = arith.negf %39 : vector<8x384xf32>
    %41 = math.exp %40 : vector<8x384xf32>
    %cst_21 = arith.constant 1.000000e+00 : f32
    %42 = vector.broadcast %cst_21 : f32 to vector<8x384xf32>
    %43 = arith.addf %42, %41 : vector<8x384xf32>
    %44 = arith.divf %42, %43 : vector<8x384xf32>
    %45 = vector.extract_strided_slice %38 {offsets = [0, 384], sizes = [8, 128], strides = [1, 1]} : vector<8x512xf32> to vector<8x128xf32>
    %46 = math.tanh %45 : vector<8x128xf32>
    %47 = vector.extract_strided_slice %44 {offsets = [0, 0], sizes = [8, 128], strides = [1, 1]} : vector<8x384xf32> to vector<8x128xf32>
    %48 = vector.extract_strided_slice %44 {offsets = [0, 128], sizes = [8, 128], strides = [1, 1]} : vector<8x384xf32> to vector<8x128xf32>
    %49 = vector.extract_strided_slice %44 {offsets = [0, 256], sizes = [8, 128], strides = [1, 1]} : vector<8x384xf32> to vector<8x128xf32>
    %50 = arith.mulf %48, %15 : vector<8x128xf32>
    %51 = arith.mulf %47, %46 : vector<8x128xf32>
    %52 = arith.addf %50, %51 : vector<8x128xf32>
    %53 = math.tanh %52 : vector<8x128xf32>
    %54 = arith.mulf %49, %53 : vector<8x128xf32>
    %cst_22 = arith.constant dense<0.000000e+00> : vector<8x512xf32>
    %55 = tpu.matmul %54, %2, %cst_22 {dimension_numbers = #tpu.dot_dimension_numbers<[1], [0], [0], [1], [0, 0, 1, 1], [], []>} : vector<8x128xf32>, vector<128x512xf32>, vector<8x512xf32> -> vector<8x512xf32>
    %56 = vector.extract_strided_slice %11 {offsets = [8, 0], sizes = [8, 512], strides = [1, 1]} : vector<64x512xf32> to vector<8x512xf32>
    %cst_23 = arith.constant dense<0.000000e+00> : vector<8x512xf32>
    %57 = tpu.matmul %35, %0, %cst_23 {dimension_numbers = #tpu.dot_dimension_numbers<[1], [0], [0], [1], [0, 0, 1, 1], [], []>} : vector<8x128xf32>, vector<128x512xf32>, vector<8x512xf32> -> vector<8x512xf32>
    %58 = arith.addf %56, %57 : vector<8x512xf32>
    %59 = vector.extract_strided_slice %58 {offsets = [0, 0], sizes = [8, 384], strides = [1, 1]} : vector<8x512xf32> to vector<8x384xf32>
    %60 = arith.negf %59 : vector<8x384xf32>
    %61 = math.exp %60 : vector<8x384xf32>
    %cst_24 = arith.constant 1.000000e+00 : f32
    %62 = vector.broadcast %cst_24 : f32 to vector<8x384xf32>
    %63 = arith.addf %62, %61 : vector<8x384xf32>
    %64 = arith.divf %62, %63 : vector<8x384xf32>
    %65 = vector.extract_strided_slice %58 {offsets = [0, 384], sizes = [8, 128], strides = [1, 1]} : vector<8x512xf32> to vector<8x128xf32>
    %66 = math.tanh %65 : vector<8x128xf32>
    %67 = vector.extract_strided_slice %64 {offsets = [0, 0], sizes = [8, 128], strides = [1, 1]} : vector<8x384xf32> to vector<8x128xf32>
    %68 = vector.extract_strided_slice %64 {offsets = [0, 128], sizes = [8, 128], strides = [1, 1]} : vector<8x384xf32> to vector<8x128xf32>
    %69 = vector.extract_strided_slice %64 {offsets = [0, 256], sizes = [8, 128], strides = [1, 1]} : vector<8x384xf32> to vector<8x128xf32>
    %70 = arith.mulf %68, %33 : vector<8x128xf32>
    %71 = arith.mulf %67, %66 : vector<8x128xf32>
    %72 = arith.addf %70, %71 : vector<8x128xf32>
    %73 = math.tanh %72 : vector<8x128xf32>
    %74 = arith.mulf %69, %73 : vector<8x128xf32>
    %cst_25 = arith.constant dense<0.000000e+00> : vector<8x512xf32>
    %75 = tpu.matmul %74, %1, %cst_25 {dimension_numbers = #tpu.dot_dimension_numbers<[1], [0], [0], [1], [0, 0, 1, 1], [], []>} : vector<8x128xf32>, vector<128x512xf32>, vector<8x512xf32> -> vector<8x512xf32>
    %76 = arith.addf %75, %55 : vector<8x512xf32>
    %77 = arith.addf %76, %5 : vector<8x512xf32>
    %78 = vector.extract_strided_slice %77 {offsets = [0, 0], sizes = [8, 384], strides = [1, 1]} : vector<8x512xf32> to vector<8x384xf32>
    %79 = arith.negf %78 : vector<8x384xf32>
    %80 = math.exp %79 : vector<8x384xf32>
    %cst_26 = arith.constant 1.000000e+00 : f32
    %81 = vector.broadcast %cst_26 : f32 to vector<8x384xf32>
    %82 = arith.addf %81, %80 : vector<8x384xf32>
    %83 = arith.divf %81, %82 : vector<8x384xf32>
    %84 = vector.extract_strided_slice %77 {offsets = [0, 384], sizes = [8, 128], strides = [1, 1]} : vector<8x512xf32> to vector<8x128xf32>
    %85 = math.tanh %84 : vector<8x128xf32>
    %86 = vector.extract_strided_slice %83 {offsets = [0, 0], sizes = [8, 128], strides = [1, 1]} : vector<8x384xf32> to vector<8x128xf32>
    %87 = vector.extract_strided_slice %83 {offsets = [0, 128], sizes = [8, 128], strides = [1, 1]} : vector<8x384xf32> to vector<8x128xf32>
    %88 = vector.extract_strided_slice %83 {offsets = [0, 256], sizes = [8, 128], strides = [1, 1]} : vector<8x384xf32> to vector<8x128xf32>
    %89 = arith.mulf %87, %52 : vector<8x128xf32>
    %90 = arith.mulf %86, %85 : vector<8x128xf32>
    %91 = arith.addf %89, %90 : vector<8x128xf32>
    %92 = math.tanh %91 : vector<8x128xf32>
    %93 = arith.mulf %88, %92 : vector<8x128xf32>
    %cst_27 = arith.constant dense<0.000000e+00> : vector<8x512xf32>
    %94 = tpu.matmul %93, %2, %cst_27 {dimension_numbers = #tpu.dot_dimension_numbers<[1], [0], [0], [1], [0, 0, 1, 1], [], []>} : vector<8x128xf32>, vector<128x512xf32>, vector<8x512xf32> -> vector<8x512xf32>
    %95 = vector.extract_strided_slice %11 {offsets = [16, 0], sizes = [8, 512], strides = [1, 1]} : vector<64x512xf32> to vector<8x512xf32>
    %cst_28 = arith.constant dense<0.000000e+00> : vector<8x512xf32>
    %96 = tpu.matmul %74, %0, %cst_28 {dimension_numbers = #tpu.dot_dimension_numbers<[1], [0], [0], [1], [0, 0, 1, 1], [], []>} : vector<8x128xf32>, vector<128x512xf32>, vector<8x512xf32> -> vector<8x512xf32>
    %97 = arith.addf %95, %96 : vector<8x512xf32>
    %98 = vector.extract_strided_slice %97 {offsets = [0, 0], sizes = [8, 384], strides = [1, 1]} : vector<8x512xf32> to vector<8x384xf32>
    %99 = arith.negf %98 : vector<8x384xf32>
    %100 = math.exp %99 : vector<8x384xf32>
    %cst_29 = arith.constant 1.000000e+00 : f32
    %101 = vector.broadcast %cst_29 : f32 to vector<8x384xf32>
    %102 = arith.addf %101, %100 : vector<8x384xf32>
    %103 = arith.divf %101, %102 : vector<8x384xf32>
    %104 = vector.extract_strided_slice %97 {offsets = [0, 384], sizes = [8, 128], strides = [1, 1]} : vector<8x512xf32> to vector<8x128xf32>
    %105 = math.tanh %104 : vector<8x128xf32>
    %106 = vector.extract_strided_slice %103 {offsets = [0, 0], sizes = [8, 128], strides = [1, 1]} : vector<8x384xf32> to vector<8x128xf32>
    %107 = vector.extract_strided_slice %103 {offsets = [0, 128], sizes = [8, 128], strides = [1, 1]} : vector<8x384xf32> to vector<8x128xf32>
    %108 = vector.extract_strided_slice %103 {offsets = [0, 256], sizes = [8, 128], strides = [1, 1]} : vector<8x384xf32> to vector<8x128xf32>
    %109 = arith.mulf %107, %72 : vector<8x128xf32>
    %110 = arith.mulf %106, %105 : vector<8x128xf32>
    %111 = arith.addf %109, %110 : vector<8x128xf32>
    %112 = math.tanh %111 : vector<8x128xf32>
    %113 = arith.mulf %108, %112 : vector<8x128xf32>
    %cst_30 = arith.constant dense<0.000000e+00> : vector<8x512xf32>
    %114 = tpu.matmul %113, %1, %cst_30 {dimension_numbers = #tpu.dot_dimension_numbers<[1], [0], [0], [1], [0, 0, 1, 1], [], []>} : vector<8x128xf32>, vector<128x512xf32>, vector<8x512xf32> -> vector<8x512xf32>
    %115 = arith.addf %114, %94 : vector<8x512xf32>
    %116 = arith.addf %115, %5 : vector<8x512xf32>
    %117 = vector.extract_strided_slice %116 {offsets = [0, 0], sizes = [8, 384], strides = [1, 1]} : vector<8x512xf32> to vector<8x384xf32>
    %118 = arith.negf %117 : vector<8x384xf32>
    %119 = math.exp %118 : vector<8x384xf32>
    %cst_31 = arith.constant 1.000000e+00 : f32
    %120 = vector.broadcast %cst_31 : f32 to vector<8x384xf32>
    %121 = arith.addf %120, %119 : vector<8x384xf32>
    %122 = arith.divf %120, %121 : vector<8x384xf32>
    %123 = vector.extract_strided_slice %116 {offsets = [0, 384], sizes = [8, 128], strides = [1, 1]} : vector<8x512xf32> to vector<8x128xf32>
    %124 = math.tanh %123 : vector<8x128xf32>
    %125 = vector.extract_strided_slice %122 {offsets = [0, 0], sizes = [8, 128], strides = [1, 1]} : vector<8x384xf32> to vector<8x128xf32>
    %126 = vector.extract_strided_slice %122 {offsets = [0, 128], sizes = [8, 128], strides = [1, 1]} : vector<8x384xf32> to vector<8x128xf32>
    %127 = vector.extract_strided_slice %122 {offsets = [0, 256], sizes = [8, 128], strides = [1, 1]} : vector<8x384xf32> to vector<8x128xf32>
    %128 = arith.mulf %126, %91 : vector<8x128xf32>
    %129 = arith.mulf %125, %124 : vector<8x128xf32>
    %130 = arith.addf %128, %129 : vector<8x128xf32>
    %131 = math.tanh %130 : vector<8x128xf32>
    %132 = arith.mulf %127, %131 : vector<8x128xf32>
    %cst_32 = arith.constant dense<0.000000e+00> : vector<8x512xf32>
    %133 = tpu.matmul %132, %2, %cst_32 {dimension_numbers = #tpu.dot_dimension_numbers<[1], [0], [0], [1], [0, 0, 1, 1], [], []>} : vector<8x128xf32>, vector<128x512xf32>, vector<8x512xf32> -> vector<8x512xf32>
    %134 = vector.extract_strided_slice %11 {offsets = [24, 0], sizes = [8, 512], strides = [1, 1]} : vector<64x512xf32> to vector<8x512xf32>
    %cst_33 = arith.constant dense<0.000000e+00> : vector<8x512xf32>
    %135 = tpu.matmul %113, %0, %cst_33 {dimension_numbers = #tpu.dot_dimension_numbers<[1], [0], [0], [1], [0, 0, 1, 1], [], []>} : vector<8x128xf32>, vector<128x512xf32>, vector<8x512xf32> -> vector<8x512xf32>
    %136 = arith.addf %134, %135 : vector<8x512xf32>
    %137 = vector.extract_strided_slice %136 {offsets = [0, 0], sizes = [8, 384], strides = [1, 1]} : vector<8x512xf32> to vector<8x384xf32>
    %138 = arith.negf %137 : vector<8x384xf32>
    %139 = math.exp %138 : vector<8x384xf32>
    %cst_34 = arith.constant 1.000000e+00 : f32
    %140 = vector.broadcast %cst_34 : f32 to vector<8x384xf32>
    %141 = arith.addf %140, %139 : vector<8x384xf32>
    %142 = arith.divf %140, %141 : vector<8x384xf32>
    %143 = vector.extract_strided_slice %136 {offsets = [0, 384], sizes = [8, 128], strides = [1, 1]} : vector<8x512xf32> to vector<8x128xf32>
    %144 = math.tanh %143 : vector<8x128xf32>
    %145 = vector.extract_strided_slice %142 {offsets = [0, 0], sizes = [8, 128], strides = [1, 1]} : vector<8x384xf32> to vector<8x128xf32>
    %146 = vector.extract_strided_slice %142 {offsets = [0, 128], sizes = [8, 128], strides = [1, 1]} : vector<8x384xf32> to vector<8x128xf32>
    %147 = vector.extract_strided_slice %142 {offsets = [0, 256], sizes = [8, 128], strides = [1, 1]} : vector<8x384xf32> to vector<8x128xf32>
    %148 = arith.mulf %146, %111 : vector<8x128xf32>
    %149 = arith.mulf %145, %144 : vector<8x128xf32>
    %150 = arith.addf %148, %149 : vector<8x128xf32>
    %151 = math.tanh %150 : vector<8x128xf32>
    %152 = arith.mulf %147, %151 : vector<8x128xf32>
    %cst_35 = arith.constant dense<0.000000e+00> : vector<8x512xf32>
    %153 = tpu.matmul %152, %1, %cst_35 {dimension_numbers = #tpu.dot_dimension_numbers<[1], [0], [0], [1], [0, 0, 1, 1], [], []>} : vector<8x128xf32>, vector<128x512xf32>, vector<8x512xf32> -> vector<8x512xf32>
    %154 = arith.addf %153, %133 : vector<8x512xf32>
    %155 = arith.addf %154, %5 : vector<8x512xf32>
    %156 = vector.extract_strided_slice %155 {offsets = [0, 0], sizes = [8, 384], strides = [1, 1]} : vector<8x512xf32> to vector<8x384xf32>
    %157 = arith.negf %156 : vector<8x384xf32>
    %158 = math.exp %157 : vector<8x384xf32>
    %cst_36 = arith.constant 1.000000e+00 : f32
    %159 = vector.broadcast %cst_36 : f32 to vector<8x384xf32>
    %160 = arith.addf %159, %158 : vector<8x384xf32>
    %161 = arith.divf %159, %160 : vector<8x384xf32>
    %162 = vector.extract_strided_slice %155 {offsets = [0, 384], sizes = [8, 128], strides = [1, 1]} : vector<8x512xf32> to vector<8x128xf32>
    %163 = math.tanh %162 : vector<8x128xf32>
    %164 = vector.extract_strided_slice %161 {offsets = [0, 0], sizes = [8, 128], strides = [1, 1]} : vector<8x384xf32> to vector<8x128xf32>
    %165 = vector.extract_strided_slice %161 {offsets = [0, 128], sizes = [8, 128], strides = [1, 1]} : vector<8x384xf32> to vector<8x128xf32>
    %166 = vector.extract_strided_slice %161 {offsets = [0, 256], sizes = [8, 128], strides = [1, 1]} : vector<8x384xf32> to vector<8x128xf32>
    %167 = arith.mulf %165, %130 : vector<8x128xf32>
    %168 = arith.mulf %164, %163 : vector<8x128xf32>
    %169 = arith.addf %167, %168 : vector<8x128xf32>
    %170 = math.tanh %169 : vector<8x128xf32>
    %171 = arith.mulf %166, %170 : vector<8x128xf32>
    %cst_37 = arith.constant dense<0.000000e+00> : vector<8x512xf32>
    %172 = tpu.matmul %171, %2, %cst_37 {dimension_numbers = #tpu.dot_dimension_numbers<[1], [0], [0], [1], [0, 0, 1, 1], [], []>} : vector<8x128xf32>, vector<128x512xf32>, vector<8x512xf32> -> vector<8x512xf32>
    %173 = vector.extract_strided_slice %11 {offsets = [32, 0], sizes = [8, 512], strides = [1, 1]} : vector<64x512xf32> to vector<8x512xf32>
    %cst_38 = arith.constant dense<0.000000e+00> : vector<8x512xf32>
    %174 = tpu.matmul %152, %0, %cst_38 {dimension_numbers = #tpu.dot_dimension_numbers<[1], [0], [0], [1], [0, 0, 1, 1], [], []>} : vector<8x128xf32>, vector<128x512xf32>, vector<8x512xf32> -> vector<8x512xf32>
    %175 = arith.addf %173, %174 : vector<8x512xf32>
    %176 = vector.extract_strided_slice %175 {offsets = [0, 0], sizes = [8, 384], strides = [1, 1]} : vector<8x512xf32> to vector<8x384xf32>
    %177 = arith.negf %176 : vector<8x384xf32>
    %178 = math.exp %177 : vector<8x384xf32>
    %cst_39 = arith.constant 1.000000e+00 : f32
    %179 = vector.broadcast %cst_39 : f32 to vector<8x384xf32>
    %180 = arith.addf %179, %178 : vector<8x384xf32>
    %181 = arith.divf %179, %180 : vector<8x384xf32>
    %182 = vector.extract_strided_slice %175 {offsets = [0, 384], sizes = [8, 128], strides = [1, 1]} : vector<8x512xf32> to vector<8x128xf32>
    %183 = math.tanh %182 : vector<8x128xf32>
    %184 = vector.extract_strided_slice %181 {offsets = [0, 0], sizes = [8, 128], strides = [1, 1]} : vector<8x384xf32> to vector<8x128xf32>
    %185 = vector.extract_strided_slice %181 {offsets = [0, 128], sizes = [8, 128], strides = [1, 1]} : vector<8x384xf32> to vector<8x128xf32>
    %186 = vector.extract_strided_slice %181 {offsets = [0, 256], sizes = [8, 128], strides = [1, 1]} : vector<8x384xf32> to vector<8x128xf32>
    %187 = arith.mulf %185, %150 : vector<8x128xf32>
    %188 = arith.mulf %184, %183 : vector<8x128xf32>
    %189 = arith.addf %187, %188 : vector<8x128xf32>
    %190 = math.tanh %189 : vector<8x128xf32>
    %191 = arith.mulf %186, %190 : vector<8x128xf32>
    %cst_40 = arith.constant dense<0.000000e+00> : vector<8x512xf32>
    %192 = tpu.matmul %191, %1, %cst_40 {dimension_numbers = #tpu.dot_dimension_numbers<[1], [0], [0], [1], [0, 0, 1, 1], [], []>} : vector<8x128xf32>, vector<128x512xf32>, vector<8x512xf32> -> vector<8x512xf32>
    %193 = arith.addf %192, %172 : vector<8x512xf32>
    %194 = arith.addf %193, %5 : vector<8x512xf32>
    %195 = vector.extract_strided_slice %194 {offsets = [0, 0], sizes = [8, 384], strides = [1, 1]} : vector<8x512xf32> to vector<8x384xf32>
    %196 = arith.negf %195 : vector<8x384xf32>
    %197 = math.exp %196 : vector<8x384xf32>
    %cst_41 = arith.constant 1.000000e+00 : f32
    %198 = vector.broadcast %cst_41 : f32 to vector<8x384xf32>
    %199 = arith.addf %198, %197 : vector<8x384xf32>
    %200 = arith.divf %198, %199 : vector<8x384xf32>
    %201 = vector.extract_strided_slice %194 {offsets = [0, 384], sizes = [8, 128], strides = [1, 1]} : vector<8x512xf32> to vector<8x128xf32>
    %202 = math.tanh %201 : vector<8x128xf32>
    %203 = vector.extract_strided_slice %200 {offsets = [0, 0], sizes = [8, 128], strides = [1, 1]} : vector<8x384xf32> to vector<8x128xf32>
    %204 = vector.extract_strided_slice %200 {offsets = [0, 128], sizes = [8, 128], strides = [1, 1]} : vector<8x384xf32> to vector<8x128xf32>
    %205 = vector.extract_strided_slice %200 {offsets = [0, 256], sizes = [8, 128], strides = [1, 1]} : vector<8x384xf32> to vector<8x128xf32>
    %206 = arith.mulf %204, %169 : vector<8x128xf32>
    %207 = arith.mulf %203, %202 : vector<8x128xf32>
    %208 = arith.addf %206, %207 : vector<8x128xf32>
    %209 = math.tanh %208 : vector<8x128xf32>
    %210 = arith.mulf %205, %209 : vector<8x128xf32>
    %cst_42 = arith.constant dense<0.000000e+00> : vector<8x512xf32>
    %211 = tpu.matmul %210, %2, %cst_42 {dimension_numbers = #tpu.dot_dimension_numbers<[1], [0], [0], [1], [0, 0, 1, 1], [], []>} : vector<8x128xf32>, vector<128x512xf32>, vector<8x512xf32> -> vector<8x512xf32>
    %212 = vector.extract_strided_slice %11 {offsets = [40, 0], sizes = [8, 512], strides = [1, 1]} : vector<64x512xf32> to vector<8x512xf32>
    %cst_43 = arith.constant dense<0.000000e+00> : vector<8x512xf32>
    %213 = tpu.matmul %191, %0, %cst_43 {dimension_numbers = #tpu.dot_dimension_numbers<[1], [0], [0], [1], [0, 0, 1, 1], [], []>} : vector<8x128xf32>, vector<128x512xf32>, vector<8x512xf32> -> vector<8x512xf32>
    %214 = arith.addf %212, %213 : vector<8x512xf32>
    %215 = vector.extract_strided_slice %214 {offsets = [0, 0], sizes = [8, 384], strides = [1, 1]} : vector<8x512xf32> to vector<8x384xf32>
    %216 = arith.negf %215 : vector<8x384xf32>
    %217 = math.exp %216 : vector<8x384xf32>
    %cst_44 = arith.constant 1.000000e+00 : f32
    %218 = vector.broadcast %cst_44 : f32 to vector<8x384xf32>
    %219 = arith.addf %218, %217 : vector<8x384xf32>
    %220 = arith.divf %218, %219 : vector<8x384xf32>
    %221 = vector.extract_strided_slice %214 {offsets = [0, 384], sizes = [8, 128], strides = [1, 1]} : vector<8x512xf32> to vector<8x128xf32>
    %222 = math.tanh %221 : vector<8x128xf32>
    %223 = vector.extract_strided_slice %220 {offsets = [0, 0], sizes = [8, 128], strides = [1, 1]} : vector<8x384xf32> to vector<8x128xf32>
    %224 = vector.extract_strided_slice %220 {offsets = [0, 128], sizes = [8, 128], strides = [1, 1]} : vector<8x384xf32> to vector<8x128xf32>
    %225 = vector.extract_strided_slice %220 {offsets = [0, 256], sizes = [8, 128], strides = [1, 1]} : vector<8x384xf32> to vector<8x128xf32>
    %226 = arith.mulf %224, %189 : vector<8x128xf32>
    %227 = arith.mulf %223, %222 : vector<8x128xf32>
    %228 = arith.addf %226, %227 : vector<8x128xf32>
    %229 = math.tanh %228 : vector<8x128xf32>
    %230 = arith.mulf %225, %229 : vector<8x128xf32>
    %cst_45 = arith.constant dense<0.000000e+00> : vector<8x512xf32>
    %231 = tpu.matmul %230, %1, %cst_45 {dimension_numbers = #tpu.dot_dimension_numbers<[1], [0], [0], [1], [0, 0, 1, 1], [], []>} : vector<8x128xf32>, vector<128x512xf32>, vector<8x512xf32> -> vector<8x512xf32>
    %232 = arith.addf %231, %211 : vector<8x512xf32>
    %233 = arith.addf %232, %5 : vector<8x512xf32>
    %234 = vector.extract_strided_slice %233 {offsets = [0, 0], sizes = [8, 384], strides = [1, 1]} : vector<8x512xf32> to vector<8x384xf32>
    %235 = arith.negf %234 : vector<8x384xf32>
    %236 = math.exp %235 : vector<8x384xf32>
    %cst_46 = arith.constant 1.000000e+00 : f32
    %237 = vector.broadcast %cst_46 : f32 to vector<8x384xf32>
    %238 = arith.addf %237, %236 : vector<8x384xf32>
    %239 = arith.divf %237, %238 : vector<8x384xf32>
    %240 = vector.extract_strided_slice %233 {offsets = [0, 384], sizes = [8, 128], strides = [1, 1]} : vector<8x512xf32> to vector<8x128xf32>
    %241 = math.tanh %240 : vector<8x128xf32>
    %242 = vector.extract_strided_slice %239 {offsets = [0, 0], sizes = [8, 128], strides = [1, 1]} : vector<8x384xf32> to vector<8x128xf32>
    %243 = vector.extract_strided_slice %239 {offsets = [0, 128], sizes = [8, 128], strides = [1, 1]} : vector<8x384xf32> to vector<8x128xf32>
    %244 = vector.extract_strided_slice %239 {offsets = [0, 256], sizes = [8, 128], strides = [1, 1]} : vector<8x384xf32> to vector<8x128xf32>
    %245 = arith.mulf %243, %208 : vector<8x128xf32>
    %246 = arith.mulf %242, %241 : vector<8x128xf32>
    %247 = arith.addf %245, %246 : vector<8x128xf32>
    %248 = math.tanh %247 : vector<8x128xf32>
    %249 = arith.mulf %244, %248 : vector<8x128xf32>
    %cst_47 = arith.constant dense<0.000000e+00> : vector<8x512xf32>
    %250 = tpu.matmul %249, %2, %cst_47 {dimension_numbers = #tpu.dot_dimension_numbers<[1], [0], [0], [1], [0, 0, 1, 1], [], []>} : vector<8x128xf32>, vector<128x512xf32>, vector<8x512xf32> -> vector<8x512xf32>
    %251 = vector.extract_strided_slice %11 {offsets = [48, 0], sizes = [8, 512], strides = [1, 1]} : vector<64x512xf32> to vector<8x512xf32>
    %cst_48 = arith.constant dense<0.000000e+00> : vector<8x512xf32>
    %252 = tpu.matmul %230, %0, %cst_48 {dimension_numbers = #tpu.dot_dimension_numbers<[1], [0], [0], [1], [0, 0, 1, 1], [], []>} : vector<8x128xf32>, vector<128x512xf32>, vector<8x512xf32> -> vector<8x512xf32>
    %253 = arith.addf %251, %252 : vector<8x512xf32>
    %254 = vector.extract_strided_slice %253 {offsets = [0, 0], sizes = [8, 384], strides = [1, 1]} : vector<8x512xf32> to vector<8x384xf32>
    %255 = arith.negf %254 : vector<8x384xf32>
    %256 = math.exp %255 : vector<8x384xf32>
    %cst_49 = arith.constant 1.000000e+00 : f32
    %257 = vector.broadcast %cst_49 : f32 to vector<8x384xf32>
    %258 = arith.addf %257, %256 : vector<8x384xf32>
    %259 = arith.divf %257, %258 : vector<8x384xf32>
    %260 = vector.extract_strided_slice %253 {offsets = [0, 384], sizes = [8, 128], strides = [1, 1]} : vector<8x512xf32> to vector<8x128xf32>
    %261 = math.tanh %260 : vector<8x128xf32>
    %262 = vector.extract_strided_slice %259 {offsets = [0, 0], sizes = [8, 128], strides = [1, 1]} : vector<8x384xf32> to vector<8x128xf32>
    %263 = vector.extract_strided_slice %259 {offsets = [0, 128], sizes = [8, 128], strides = [1, 1]} : vector<8x384xf32> to vector<8x128xf32>
    %264 = vector.extract_strided_slice %259 {offsets = [0, 256], sizes = [8, 128], strides = [1, 1]} : vector<8x384xf32> to vector<8x128xf32>
    %265 = arith.mulf %263, %228 : vector<8x128xf32>
    %266 = arith.mulf %262, %261 : vector<8x128xf32>
    %267 = arith.addf %265, %266 : vector<8x128xf32>
    %268 = math.tanh %267 : vector<8x128xf32>
    %269 = arith.mulf %264, %268 : vector<8x128xf32>
    %cst_50 = arith.constant dense<0.000000e+00> : vector<8x512xf32>
    %270 = tpu.matmul %269, %1, %cst_50 {dimension_numbers = #tpu.dot_dimension_numbers<[1], [0], [0], [1], [0, 0, 1, 1], [], []>} : vector<8x128xf32>, vector<128x512xf32>, vector<8x512xf32> -> vector<8x512xf32>
    %271 = arith.addf %270, %250 : vector<8x512xf32>
    %272 = arith.addf %271, %5 : vector<8x512xf32>
    %273 = vector.extract_strided_slice %272 {offsets = [0, 0], sizes = [8, 384], strides = [1, 1]} : vector<8x512xf32> to vector<8x384xf32>
    %274 = arith.negf %273 : vector<8x384xf32>
    %275 = math.exp %274 : vector<8x384xf32>
    %cst_51 = arith.constant 1.000000e+00 : f32
    %276 = vector.broadcast %cst_51 : f32 to vector<8x384xf32>
    %277 = arith.addf %276, %275 : vector<8x384xf32>
    %278 = arith.divf %276, %277 : vector<8x384xf32>
    %279 = vector.extract_strided_slice %272 {offsets = [0, 384], sizes = [8, 128], strides = [1, 1]} : vector<8x512xf32> to vector<8x128xf32>
    %280 = math.tanh %279 : vector<8x128xf32>
    %281 = vector.extract_strided_slice %278 {offsets = [0, 0], sizes = [8, 128], strides = [1, 1]} : vector<8x384xf32> to vector<8x128xf32>
    %282 = vector.extract_strided_slice %278 {offsets = [0, 128], sizes = [8, 128], strides = [1, 1]} : vector<8x384xf32> to vector<8x128xf32>
    %283 = vector.extract_strided_slice %278 {offsets = [0, 256], sizes = [8, 128], strides = [1, 1]} : vector<8x384xf32> to vector<8x128xf32>
    %284 = arith.mulf %282, %247 : vector<8x128xf32>
    %285 = arith.mulf %281, %280 : vector<8x128xf32>
    %286 = arith.addf %284, %285 : vector<8x128xf32>
    %287 = math.tanh %286 : vector<8x128xf32>
    %288 = arith.mulf %283, %287 : vector<8x128xf32>
    %cst_52 = arith.constant dense<0.000000e+00> : vector<8x512xf32>
    %289 = tpu.matmul %288, %2, %cst_52 {dimension_numbers = #tpu.dot_dimension_numbers<[1], [0], [0], [1], [0, 0, 1, 1], [], []>} : vector<8x128xf32>, vector<128x512xf32>, vector<8x512xf32> -> vector<8x512xf32>
    %290 = vector.extract_strided_slice %11 {offsets = [56, 0], sizes = [8, 512], strides = [1, 1]} : vector<64x512xf32> to vector<8x512xf32>
    %cst_53 = arith.constant dense<0.000000e+00> : vector<8x512xf32>
    %291 = tpu.matmul %269, %0, %cst_53 {dimension_numbers = #tpu.dot_dimension_numbers<[1], [0], [0], [1], [0, 0, 1, 1], [], []>} : vector<8x128xf32>, vector<128x512xf32>, vector<8x512xf32> -> vector<8x512xf32>
    %292 = arith.addf %290, %291 : vector<8x512xf32>
    %293 = vector.extract_strided_slice %292 {offsets = [0, 0], sizes = [8, 384], strides = [1, 1]} : vector<8x512xf32> to vector<8x384xf32>
    %294 = arith.negf %293 : vector<8x384xf32>
    %295 = math.exp %294 : vector<8x384xf32>
    %cst_54 = arith.constant 1.000000e+00 : f32
    %296 = vector.broadcast %cst_54 : f32 to vector<8x384xf32>
    %297 = arith.addf %296, %295 : vector<8x384xf32>
    %298 = arith.divf %296, %297 : vector<8x384xf32>
    %299 = vector.extract_strided_slice %292 {offsets = [0, 384], sizes = [8, 128], strides = [1, 1]} : vector<8x512xf32> to vector<8x128xf32>
    %300 = math.tanh %299 : vector<8x128xf32>
    %301 = vector.extract_strided_slice %298 {offsets = [0, 0], sizes = [8, 128], strides = [1, 1]} : vector<8x384xf32> to vector<8x128xf32>
    %302 = vector.extract_strided_slice %298 {offsets = [0, 128], sizes = [8, 128], strides = [1, 1]} : vector<8x384xf32> to vector<8x128xf32>
    %303 = vector.extract_strided_slice %298 {offsets = [0, 256], sizes = [8, 128], strides = [1, 1]} : vector<8x384xf32> to vector<8x128xf32>
    %304 = arith.mulf %302, %267 : vector<8x128xf32>
    %305 = arith.mulf %301, %300 : vector<8x128xf32>
    %306 = arith.addf %304, %305 : vector<8x128xf32>
    %307 = math.tanh %306 : vector<8x128xf32>
    %308 = arith.mulf %303, %307 : vector<8x128xf32>
    %cst_55 = arith.constant dense<0.000000e+00> : vector<8x512xf32>
    %309 = tpu.matmul %308, %1, %cst_55 {dimension_numbers = #tpu.dot_dimension_numbers<[1], [0], [0], [1], [0, 0, 1, 1], [], []>} : vector<8x128xf32>, vector<128x512xf32>, vector<8x512xf32> -> vector<8x512xf32>
    %310 = arith.addf %309, %289 : vector<8x512xf32>
    %311 = arith.addf %310, %5 : vector<8x512xf32>
    %312 = vector.extract_strided_slice %311 {offsets = [0, 0], sizes = [8, 384], strides = [1, 1]} : vector<8x512xf32> to vector<8x384xf32>
    %313 = arith.negf %312 : vector<8x384xf32>
    %314 = math.exp %313 : vector<8x384xf32>
    %cst_56 = arith.constant 1.000000e+00 : f32
    %315 = vector.broadcast %cst_56 : f32 to vector<8x384xf32>
    %316 = arith.addf %315, %314 : vector<8x384xf32>
    %317 = arith.divf %315, %316 : vector<8x384xf32>
    %318 = vector.extract_strided_slice %311 {offsets = [0, 384], sizes = [8, 128], strides = [1, 1]} : vector<8x512xf32> to vector<8x128xf32>
    %319 = math.tanh %318 : vector<8x128xf32>
    %320 = vector.extract_strided_slice %317 {offsets = [0, 0], sizes = [8, 128], strides = [1, 1]} : vector<8x384xf32> to vector<8x128xf32>
    %321 = vector.extract_strided_slice %317 {offsets = [0, 128], sizes = [8, 128], strides = [1, 1]} : vector<8x384xf32> to vector<8x128xf32>
    %322 = vector.extract_strided_slice %317 {offsets = [0, 256], sizes = [8, 128], strides = [1, 1]} : vector<8x384xf32> to vector<8x128xf32>
    %323 = arith.mulf %321, %286 : vector<8x128xf32>
    %324 = arith.mulf %320, %319 : vector<8x128xf32>
    %325 = arith.addf %323, %324 : vector<8x128xf32>
    %326 = math.tanh %325 : vector<8x128xf32>
    %327 = arith.mulf %322, %326 : vector<8x128xf32>
    %c0_57 = arith.constant 0 : index
    %c0_58 = arith.constant 0 : index
    %328 = vector.load %arg7[%c0_57, %c0_58] : memref<128x4xf32, #tpu.memory_space<vmem>>, vector<128x4xf32>
    %cst_59 = arith.constant dense<0.000000e+00> : vector<8x4xf32>
    %329 = tpu.matmul %327, %328, %cst_59 {dimension_numbers = #tpu.dot_dimension_numbers<[1], [0], [0], [1], [0, 0, 1, 1], [], []>} : vector<8x128xf32>, vector<128x4xf32>, vector<8x4xf32> -> vector<8x4xf32>
    %c0_60 = arith.constant 0 : index
    %c0_61 = arith.constant 0 : index
    %330 = vector.load %arg8[%c0_60, %c0_61] : memref<1x4xf32, #tpu.memory_space<vmem>>, vector<1x4xf32>
    %331 = vector.broadcast %330 : vector<1x4xf32> to vector<8x4xf32>
    %332 = arith.addf %329, %331 : vector<8x4xf32>
    %cst_62 = arith.constant dense<0xFF800000> : vector<8xf32>
    %333 = vector.multi_reduction <maximumf>, %332, %cst_62 [1] : vector<8x4xf32> to vector<8xf32>
    %334 = vector.shape_cast %333 : vector<8xf32> to vector<8x1xf32>
    %335 = vector.broadcast %334 : vector<8x1xf32> to vector<8x4xf32>
    %336 = arith.subf %332, %335 : vector<8x4xf32>
    %337 = math.exp %336 : vector<8x4xf32>
    %cst_63 = arith.constant dense<0.000000e+00> : vector<8xf32>
    %338 = vector.multi_reduction <add>, %337, %cst_63 [1] : vector<8x4xf32> to vector<8xf32>
    %339 = vector.shape_cast %338 : vector<8xf32> to vector<8x1xf32>
    %340 = vector.broadcast %339 : vector<8x1xf32> to vector<8x4xf32>
    %341 = arith.divf %337, %340 : vector<8x4xf32>
    %c0_64 = arith.constant 0 : index
    %c0_65 = arith.constant 0 : index
    %342 = vector.load %arg9[%c0_64, %c0_65] : memref<8x4xf32, #tpu.memory_space<vmem>>, vector<8x4xf32>
    tpu.vector_store %arg9[%c0_64, %c0_65], %341 {strides = array<i32>} : memref<8x4xf32, #tpu.memory_space<vmem>>, vector<8x4xf32>,
    return
  }
}

</mosaic_0001>

<llo_original>
// kernel: tpu_custom_call.1
$region0: #{tpu_custom_call.1}
  #allocation0 [shape = 'u32[]', space=smem, size = 0x4, offset = 0x4, fixed_abs, tag = 'smem constant byte address 0x4 - core index']
  #allocation1 [shape = 'u32[144,128]{1,0:T(1,128)}', space=vmem, size = 0x12000, scoped, tag = 'internal scratch']
  %s0 = inlined_call_operand.vmem [shape: f32[64,3], index: 0, kind: input, shape index: {}]
  %s1 = inlined_call_operand.vmem [shape: f32[3,512], index: 1, kind: input, shape index: {}]
  %s2 = inlined_call_operand.vmem [shape: f32[1,512], index: 2, kind: input, shape index: {}]
  %s3 = inlined_call_operand.hbm [shape: f32[128,512], index: 3, kind: input, shape index: {}]
  %s4 = inlined_call_operand.hbm [shape: f32[128,512], index: 4, kind: input, shape index: {}]
  %s5 = inlined_call_operand.hbm [shape: f32[128,512], index: 5, kind: input, shape index: {}]
  %s6 = inlined_call_operand.vmem [shape: f32[1,512], index: 6, kind: input, shape index: {}]
  %s7 = inlined_call_operand.vmem [shape: f32[128,4], index: 7, kind: input, shape index: {}]
  %s8 = inlined_call_operand.vmem [shape: f32[1,4], index: 8, kind: input, shape index: {}]
  %s9 = inlined_call_operand.vmem [shape: f32[8,4], index: 9, kind: output, shape index: {}]
  %s10 = sld [smem:[#allocation0]]
  $region58: #{tpu_custom_call.1} parent=0
    _
  %s12 = ssub.s32 1, %s10
  %s13 = scalar_select 0, %s12, %s10
  $region1: #{tpu_custom_call.1} parent=0
    #allocation2 [shape = 'u8[262144]{0}', space=vmem, size = 0x40000, scoped, tag = 'input window, operand 3, single buffered']
    #allocation3 [shape = 's32[1]{0}', space=sflag, size = 0x4, scoped, tag = 'scoped memory for tpu_custom_call.1']
    #allocation4 [shape = 'u8[262144]{0}', space=vmem, size = 0x40000, scoped, tag = 'input window, operand 4, single buffered']
    #allocation5 [shape = 's32[1]{0}', space=sflag, size = 0x4, scoped, tag = 'scoped memory for tpu_custom_call.1']
    #allocation6 [shape = 'u8[262144]{0}', space=vmem, size = 0x40000, scoped, tag = 'input window, operand 5, single buffered']
    %14 = vsyncpa [#allocation3], 0
    %15 = vsyncpa [#allocation5], 0
    // Predicated region
    $region2: #{tpu_custom_call.1} parent=1 // pred_check
      _
    $region3: #{tpu_custom_call.1} parent=1 // pred_check_branch
      %17 = sbr.rel (0) target = $region5
    $region4: #{tpu_custom_call.1} parent=1 // pred_region
      _
    $region5: #{tpu_custom_call.1} parent=1 // pred_fallthru
      _
    // Predicated region
    $region6: #{tpu_custom_call.1} parent=1 // pred_check
      _
    $region7: #{tpu_custom_call.1} parent=1 // pred_check_branch
      %19 = sbr.rel (0) target = $region9
    $region8: #{tpu_custom_call.1} parent=1 // pred_region
      _
    $region9: #{tpu_custom_call.1} parent=1 // pred_fallthru
      _
    // Predicated region
    $region10: #{tpu_custom_call.1} parent=1 // pred_check
      _
    $region11: #{tpu_custom_call.1} parent=1 // pred_check_branch
      %21 = sbr.rel (0) target = $region13
    $region12: #{tpu_custom_call.1} parent=1 // pred_region
      _
    $region13: #{tpu_custom_call.1} parent=1 // pred_fallthru
      _
    // Predicated region
    $region14: #{tpu_custom_call.1} parent=1 // pred_check
      _
    $region15: #{tpu_custom_call.1} parent=1 // pred_check_branch
      %23 = sbr.rel (0) target = $region17
    $region16: #{tpu_custom_call.1} parent=1 // pred_region
      %s25 = ssub.s32 8192, 8192
      %26 = vsyncadd [#allocation3], %s25
      %s27 = sshll.u32 [#allocation2], 4
      %s28 = int_to_ptr.vmem [resolvable:$true] %s27
      %33 = dma.hbm_to_vmem [thread:$0]  %s3, 8192, %s28, [#allocation3], 512, 512, 32
    $region17: #{tpu_custom_call.1} parent=1 // pred_fallthru
      _
    // Predicated region
    $region18: #{tpu_custom_call.1} parent=1 // pred_check
      _
    $region19: #{tpu_custom_call.1} parent=1 // pred_check_branch
      %35 = sbr.rel (0) target = $region21
    $region20: #{tpu_custom_call.1} parent=1 // pred_region
      %s37 = ssub.s32 8192, 8192
      %38 = vsyncadd [#allocation5], %s37
      %s39 = sshll.u32 [#allocation4], 4
      %s40 = int_to_ptr.vmem [resolvable:$true] %s39
      %45 = dma.hbm_to_vmem [thread:$0]  %s4, 8192, %s40, [#allocation5], 512, 512, 32
    $region21: #{tpu_custom_call.1} parent=1 // pred_fallthru
      _
    // Predicated region
    $region22: #{tpu_custom_call.1} parent=1 // pred_check
      _
    $region23: #{tpu_custom_call.1} parent=1 // pred_check_branch
      %47 = sbr.rel (0) target = $region25
    $region24: #{tpu_custom_call.1} parent=1 // pred_region
      %s49 = ssub.s32 8192, 8192
      %50 = vsyncadd [#allocation5], %s49
      %s51 = sshll.u32 [#allocation6], 4
      %s52 = int_to_ptr.vmem [resolvable:$true] %s51
      %57 = dma.hbm_to_vmem [thread:$0]  %s5, 8192, %s52, [#allocation5], 512, 512, 32
    $region25: #{tpu_custom_call.1} parent=1 // pred_fallthru
      _
    // Predicated region
    $region26: #{tpu_custom_call.1} parent=1 // pred_check
      _
    $region27: #{tpu_custom_call.1} parent=1 // pred_check_branch
      %59 = sbr.rel (0) target = $region29
    $region28: #{tpu_custom_call.1} parent=1 // pred_region
      _
    $region29: #{tpu_custom_call.1} parent=1 // pred_fallthru
      _
    // Predicated region
    $region30: #{tpu_custom_call.1} parent=1 // pred_check
      _
    $region31: #{tpu_custom_call.1} parent=1 // pred_check_branch
      %61 = sbr.rel (0) target = $region33
    $region32: #{tpu_custom_call.1} parent=1 // pred_region
      _
    $region33: #{tpu_custom_call.1} parent=1 // pred_fallthru
      _
    // Predicated region
    $region34: #{tpu_custom_call.1} parent=1 // pred_check
      _
    $region35: #{tpu_custom_call.1} parent=1 // pred_check_branch
      %63 = sbr.rel (0) target = $region37
    $region36: #{tpu_custom_call.1} parent=1 // pred_region
      _
    $region37: #{tpu_custom_call.1} parent=1 // pred_fallthru
      _
    // Predicated region
    $region38: #{tpu_custom_call.1} parent=1 // pred_check
      _
    $region39: #{tpu_custom_call.1} parent=1 // pred_check_branch
      %65 = sbr.rel (0) target = $region41
    $region40: #{tpu_custom_call.1} parent=1 // pred_region
      %66 = dma.done [#allocation3], 8192
    $region41: #{tpu_custom_call.1} parent=1 // pred_fallthru
      _
    // Predicated region
    $region42: #{tpu_custom_call.1} parent=1 // pred_check
      _
    $region43: #{tpu_custom_call.1} parent=1 // pred_check_branch
      %68 = sbr.rel (0) target = $region45
    $region44: #{tpu_custom_call.1} parent=1 // pred_region
      %69 = dma.done [#allocation5], 8192
    $region45: #{tpu_custom_call.1} parent=1 // pred_fallthru
      _
    // Predicated region
    $region46: #{tpu_custom_call.1} parent=1 // pred_check
      _
    $region47: #{tpu_custom_call.1} parent=1 // pred_check_branch
      %71 = sbr.rel (0) target = $region49
    $region48: #{tpu_custom_call.1} parent=1 // pred_region
      %72 = dma.done [#allocation5], 8192
    $region49: #{tpu_custom_call.1} parent=1 // pred_fallthru
      _
    %v73 = vld [vmem:[#allocation2] sm:$0xff]
    %v74 = vld [vmem:[#allocation2 + $0x8] sm:$0xff]
    %v75 = vld [vmem:[#allocation2 + $0x10] sm:$0xff]
    %v76 = vld [vmem:[#allocation2 + $0x18] sm:$0xff]
    %v77 = vld [vmem:[#allocation2 + $0x20] sm:$0xff]
    %v78 = vld [vmem:[#allocation2 + $0x28] sm:$0xff]
    %v79 = vld [vmem:[#allocation2 + $0x30] sm:$0xff]
    %v80 = vld [vmem:[#allocation2 + $0x38] sm:$0xff]
    %v81 = vld [vmem:[#allocation2 + $0x40] sm:$0xff]
    %v82 = vld [vmem:[#allocation2 + $0x48] sm:$0xff]
    %v83 = vld [vmem:[#allocation2 + $0x50] sm:$0xff]
    %v84 = vld [vmem:[#allocation2 + $0x58] sm:$0xff]
    %v85 = vld [vmem:[#allocation2 + $0x60] sm:$0xff]
    %v86 = vld [vmem:[#allocation2 + $0x68] sm:$0xff]
    %v87 = vld [vmem:[#allocation2 + $0x70] sm:$0xff]
    %v88 = vld [vmem:[#allocation2 + $0x78] sm:$0xff]
    %v89 = vld [vmem:[#allocation2 + $0x80] sm:$0xff]
    %v90 = vld [vmem:[#allocation2 + $0x88] sm:$0xff]
    %v91 = vld [vmem:[#allocation2 + $0x90] sm:$0xff]
    %v92 = vld [vmem:[#allocation2 + $0x98] sm:$0xff]
    %v93 = vld [vmem:[#allocation2 + $0xa0] sm:$0xff]
    %v94 = vld [vmem:[#allocation2 + $0xa8] sm:$0xff]
    %v95 = vld [vmem:[#allocation2 + $0xb0] sm:$0xff]
    %v96 = vld [vmem:[#allocation2 + $0xb8] sm:$0xff]
    %v97 = vld [vmem:[#allocation2 + $0xc0] sm:$0xff]
    %v98 = vld [vmem:[#allocation2 + $0xc8] sm:$0xff]
    %v99 = vld [vmem:[#allocation2 + $0xd0] sm:$0xff]
    %v100 = vld [vmem:[#allocation2 + $0xd8] sm:$0xff]
    %v101 = vld [vmem:[#allocation2 + $0xe0] sm:$0xff]
    %v102 = vld [vmem:[#allocation2 + $0xe8] sm:$0xff]
    %v103 = vld [vmem:[#allocation2 + $0xf0] sm:$0xff]
    %v104 = vld [vmem:[#allocation2 + $0xf8] sm:$0xff]
    %v105 = vld [vmem:[#allocation2 + $0x100] sm:$0xff]
    %v106 = vld [vmem:[#allocation2 + $0x108] sm:$0xff]
    %v107 = vld [vmem:[#allocation2 + $0x110] sm:$0xff]
    %v108 = vld [vmem:[#allocation2 + $0x118] sm:$0xff]
    %v109 = vld [vmem:[#allocation2 + $0x120] sm:$0xff]
    %v110 = vld [vmem:[#allocation2 + $0x128] sm:$0xff]
    %v111 = vld [vmem:[#allocation2 + $0x130] sm:$0xff]
    %v112 = vld [vmem:[#allocation2 + $0x138] sm:$0xff]
    %v113 = vld [vmem:[#allocation2 + $0x140] sm:$0xff]
    %v114 = vld [vmem:[#allocation2 + $0x148] sm:$0xff]
    %v115 = vld [vmem:[#allocation2 + $0x150] sm:$0xff]
    %v116 = vld [vmem:[#allocation2 + $0x158] sm:$0xff]
    %v117 = vld [vmem:[#allocation2 + $0x160] sm:$0xff]
    %v118 = vld [vmem:[#allocation2 + $0x168] sm:$0xff]
    %v119 = vld [vmem:[#allocation2 + $0x170] sm:$0xff]
    %v120 = vld [vmem:[#allocation2 + $0x178] sm:$0xff]
    %v121 = vld [vmem:[#allocation2 + $0x180] sm:$0xff]
    %v122 = vld [vmem:[#allocation2 + $0x188] sm:$0xff]
    %v123 = vld [vmem:[#allocation2 + $0x190] sm:$0xff]
    %v124 = vld [vmem:[#allocation2 + $0x198] sm:$0xff]
    %v125 = vld [vmem:[#allocation2 + $0x1a0] sm:$0xff]
    %v126 = vld [vmem:[#allocation2 + $0x1a8] sm:$0xff]
    %v127 = vld [vmem:[#allocation2 + $0x1b0] sm:$0xff]
    %v128 = vld [vmem:[#allocation2 + $0x1b8] sm:$0xff]
    %v129 = vld [vmem:[#allocation2 + $0x1c0] sm:$0xff]
    %v130 = vld [vmem:[#allocation2 + $0x1c8] sm:$0xff]
    %v131 = vld [vmem:[#allocation2 + $0x1d0] sm:$0xff]
    %v132 = vld [vmem:[#allocation2 + $0x1d8] sm:$0xff]
    %v133 = vld [vmem:[#allocation2 + $0x1e0] sm:$0xff]
    %v134 = vld [vmem:[#allocation2 + $0x1e8] sm:$0xff]
    %v135 = vld [vmem:[#allocation2 + $0x1f0] sm:$0xff]
    %v136 = vld [vmem:[#allocation2 + $0x1f8] sm:$0xff]
    %v137 = vld [vmem:[#allocation4] sm:$0xff]
    %v138 = vld [vmem:[#allocation4 + $0x8] sm:$0xff]
    %v139 = vld [vmem:[#allocation4 + $0x10] sm:$0xff]
    %v140 = vld [vmem:[#allocation4 + $0x18] sm:$0xff]
    %v141 = vld [vmem:[#allocation4 + $0x20] sm:$0xff]
    %v142 = vld [vmem:[#allocation4 + $0x28] sm:$0xff]
    %v143 = vld [vmem:[#allocation4 + $0x30] sm:$0xff]
    %v144 = vld [vmem:[#allocation4 + $0x38] sm:$0xff]
    %v145 = vld [vmem:[#allocation4 + $0x40] sm:$0xff]
    %v146 = vld [vmem:[#allocation4 + $0x48] sm:$0xff]
    %v147 = vld [vmem:[#allocation4 + $0x50] sm:$0xff]
    %v148 = vld [vmem:[#allocation4 + $0x58] sm:$0xff]
    %v149 = vld [vmem:[#allocation4 + $0x60] sm:$0xff]
    %v150 = vld [vmem:[#allocation4 + $0x68] sm:$0xff]
    %v151 = vld [vmem:[#allocation4 + $0x70] sm:$0xff]
    %v152 = vld [vmem:[#allocation4 + $0x78] sm:$0xff]
    %v153 = vld [vmem:[#allocation4 + $0x80] sm:$0xff]
    %v154 = vld [vmem:[#allocation4 + $0x88] sm:$0xff]
    %v155 = vld [vmem:[#allocation4 + $0x90] sm:$0xff]
    %v156 = vld [vmem:[#allocation4 + $0x98] sm:$0xff]
    %v157 = vld [vmem:[#allocation4 + $0xa0] sm:$0xff]
    %v158 = vld [vmem:[#allocation4 + $0xa8] sm:$0xff]
    %v159 = vld [vmem:[#allocation4 + $0xb0] sm:$0xff]
    %v160 = vld [vmem:[#allocation4 + $0xb8] sm:$0xff]
    %v161 = vld [vmem:[#allocation4 + $0xc0] sm:$0xff]
    %v162 = vld [vmem:[#allocation4 + $0xc8] sm:$0xff]
    %v163 = vld [vmem:[#allocation4 + $0xd0] sm:$0xff]
    %v164 = vld [vmem:[#allocation4 + $0xd8] sm:$0xff]
    %v165 = vld [vmem:[#allocation4 + $0xe0] sm:$0xff]
    %v166 = vld [vmem:[#allocation4 + $0xe8] sm:$0xff]
    %v167 = vld [vmem:[#allocation4 + $0xf0] sm:$0xff]
    %v168 = vld [vmem:[#allocation4 + $0xf8] sm:$0xff]
    %v169 = vld [vmem:[#allocation4 + $0x100] sm:$0xff]
    %v170 = vld [vmem:[#allocation4 + $0x108] sm:$0xff]
    %v171 = vld [vmem:[#allocation4 + $0x110] sm:$0xff]
    %v172 = vld [vmem:[#allocation4 + $0x118] sm:$0xff]
    %v173 = vld [vmem:[#allocation4 + $0x120] sm:$0xff]
    %v174 = vld [vmem:[#allocation4 + $0x128] sm:$0xff]
    %v175 = vld [vmem:[#allocation4 + $0x130] sm:$0xff]
    %v176 = vld [vmem:[#allocation4 + $0x138] sm:$0xff]
    %v177 = vld [vmem:[#allocation4 + $0x140] sm:$0xff]
    %v178 = vld [vmem:[#allocation4 + $0x148] sm:$0xff]
    %v179 = vld [vmem:[#allocation4 + $0x150] sm:$0xff]
    %v180 = vld [vmem:[#allocation4 + $0x158] sm:$0xff]
    %v181 = vld [vmem:[#allocation4 + $0x160] sm:$0xff]
    %v182 = vld [vmem:[#allocation4 + $0x168] sm:$0xff]
    %v183 = vld [vmem:[#allocation4 + $0x170] sm:$0xff]
    %v184 = vld [vmem:[#allocation4 + $0x178] sm:$0xff]
    %v185 = vld [vmem:[#allocation4 + $0x180] sm:$0xff]
    %v186 = vld [vmem:[#allocation4 + $0x188] sm:$0xff]
    %v187 = vld [vmem:[#allocation4 + $0x190] sm:$0xff]
    %v188 = vld [vmem:[#allocation4 + $0x198] sm:$0xff]
    %v189 = vld [vmem:[#allocation4 + $0x1a0] sm:$0xff]
    %v190 = vld [vmem:[#allocation4 + $0x1a8] sm:$0xff]
    %v191 = vld [vmem:[#allocation4 + $0x1b0] sm:$0xff]
    %v192 = vld [vmem:[#allocation4 + $0x1b8] sm:$0xff]
    %v193 = vld [vmem:[#allocation4 + $0x1c0] sm:$0xff]
    %v194 = vld [vmem:[#allocation4 + $0x1c8] sm:$0xff]
    %v195 = vld [vmem:[#allocation4 + $0x1d0] sm:$0xff]
    %v196 = vld [vmem:[#allocation4 + $0x1d8] sm:$0xff]
    %v197 = vld [vmem:[#allocation4 + $0x1e0] sm:$0xff]
    %v198 = vld [vmem:[#allocation4 + $0x1e8] sm:$0xff]
    %v199 = vld [vmem:[#allocation4 + $0x1f0] sm:$0xff]
    %v200 = vld [vmem:[#allocation4 + $0x1f8] sm:$0xff]
    %v201 = vld [vmem:[#allocation6] sm:$0xff]
    %v202 = vld [vmem:[#allocation6 + $0x8] sm:$0xff]
    %v203 = vld [vmem:[#allocation6 + $0x10] sm:$0xff]
    %v204 = vld [vmem:[#allocation6 + $0x18] sm:$0xff]
    %v205 = vld [vmem:[#allocation6 + $0x20] sm:$0xff]
    %v206 = vld [vmem:[#allocation6 + $0x28] sm:$0xff]
    %v207 = vld [vmem:[#allocation6 + $0x30] sm:$0xff]
    %v208 = vld [vmem:[#allocation6 + $0x38] sm:$0xff]
    %v209 = vld [vmem:[#allocation6 + $0x40] sm:$0xff]
    %v210 = vld [vmem:[#allocation6 + $0x48] sm:$0xff]
    %v211 = vld [vmem:[#allocation6 + $0x50] sm:$0xff]
    %v212 = vld [vmem:[#allocation6 + $0x58] sm:$0xff]
    %v213 = vld [vmem:[#allocation6 + $0x60] sm:$0xff]
    %v214 = vld [vmem:[#allocation6 + $0x68] sm:$0xff]
    %v215 = vld [vmem:[#allocation6 + $0x70] sm:$0xff]
    %v216 = vld [vmem:[#allocation6 + $0x78] sm:$0xff]
    %v217 = vld [vmem:[#allocation6 + $0x80] sm:$0xff]
    %v218 = vld [vmem:[#allocation6 + $0x88] sm:$0xff]
    %v219 = vld [vmem:[#allocation6 + $0x90] sm:$0xff]
    %v220 = vld [vmem:[#allocation6 + $0x98] sm:$0xff]
    %v221 = vld [vmem:[#allocation6 + $0xa0] sm:$0xff]
    %v222 = vld [vmem:[#allocation6 + $0xa8] sm:$0xff]
    %v223 = vld [vmem:[#allocation6 + $0xb0] sm:$0xff]
    %v224 = vld [vmem:[#allocation6 + $0xb8] sm:$0xff]
    %v225 = vld [vmem:[#allocation6 + $0xc0] sm:$0xff]
    %v226 = vld [vmem:[#allocation6 + $0xc8] sm:$0xff]
    %v227 = vld [vmem:[#allocation6 + $0xd0] sm:$0xff]
    %v228 = vld [vmem:[#allocation6 + $0xd8] sm:$0xff]
    %v229 = vld [vmem:[#allocation6 + $0xe0] sm:$0xff]
    %v230 = vld [vmem:[#allocation6 + $0xe8] sm:$0xff]
    %v231 = vld [vmem:[#allocation6 + $0xf0] sm:$0xff]
    %v232 = vld [vmem:[#allocation6 + $0xf8] sm:$0xff]
    %v233 = vld [vmem:[#allocation6 + $0x100] sm:$0xff]
    %v234 = vld [vmem:[#allocation6 + $0x108] sm:$0xff]
    %v235 = vld [vmem:[#allocation6 + $0x110] sm:$0xff]
    %v236 = vld [vmem:[#allocation6 + $0x118] sm:$0xff]
    %v237 = vld [vmem:[#allocation6 + $0x120] sm:$0xff]
    %v238 = vld [vmem:[#allocation6 + $0x128] sm:$0xff]
    %v239 = vld [vmem:[#allocation6 + $0x130] sm:$0xff]
    %v240 = vld [vmem:[#allocation6 + $0x138] sm:$0xff]
    %v241 = vld [vmem:[#allocation6 + $0x140] sm:$0xff]
    %v242 = vld [vmem:[#allocation6 + $0x148] sm:$0xff]
    %v243 = vld [vmem:[#allocation6 + $0x150] sm:$0xff]
    %v244 = vld [vmem:[#allocation6 + $0x158] sm:$0xff]
    %v245 = vld [vmem:[#allocation6 + $0x160] sm:$0xff]
    %v246 = vld [vmem:[#allocation6 + $0x168] sm:$0xff]
    %v247 = vld [vmem:[#allocation6 + $0x170] sm:$0xff]
    %v248 = vld [vmem:[#allocation6 + $0x178] sm:$0xff]
    %v249 = vld [vmem:[#allocation6 + $0x180] sm:$0xff]
    %v250 = vld [vmem:[#allocation6 + $0x188] sm:$0xff]
    %v251 = vld [vmem:[#allocation6 + $0x190] sm:$0xff]
    %v252 = vld [vmem:[#allocation6 + $0x198] sm:$0xff]
    %v253 = vld [vmem:[#allocation6 + $0x1a0] sm:$0xff]
    %v254 = vld [vmem:[#allocation6 + $0x1a8] sm:$0xff]
    %v255 = vld [vmem:[#allocation6 + $0x1b0] sm:$0xff]
    %v256 = vld [vmem:[#allocation6 + $0x1b8] sm:$0xff]
    %v257 = vld [vmem:[#allocation6 + $0x1c0] sm:$0xff]
    %v258 = vld [vmem:[#allocation6 + $0x1c8] sm:$0xff]
    %v259 = vld [vmem:[#allocation6 + $0x1d0] sm:$0xff]
    %v260 = vld [vmem:[#allocation6 + $0x1d8] sm:$0xff]
    %v261 = vld [vmem:[#allocation6 + $0x1e0] sm:$0xff]
    %v262 = vld [vmem:[#allocation6 + $0x1e8] sm:$0xff]
    %v263 = vld [vmem:[#allocation6 + $0x1f0] sm:$0xff]
    %v264 = vld [vmem:[#allocation6 + $0x1f8] sm:$0xff]
    %v265 = vld [vmem:[%s6] sm:$0xf]
    %v267 = vlaneseq
    %v268 = vshrl.u32 %v267, 7
    %v269 = vsub.s32 0, %v268
    %v270 = vrot.slane %v265, %v269
    %v271 = vlaneseq
    %v272 = vshrl.u32 %v271, 7
    %v273 = vsub.s32 1, %v272
    %v274 = vrot.slane %v265, %v273
    %v275 = vlaneseq
    %v276 = vshrl.u32 %v275, 7
    %v277 = vsub.s32 2, %v276
    %v278 = vrot.slane %v265, %v277
    %v279 = vlaneseq
    %v280 = vshrl.u32 %v279, 7
    %v281 = vsub.s32 3, %v280
    %v282 = vrot.slane %v265, %v281
    %v287 = vld [vmem:[%s0] sm:$0xff]
    %v288 = vld [vmem:[%s0 + $0x8] sm:$0xff]
    %v289 = vld [vmem:[%s0 + $0x10] sm:$0xff]
    %v290 = vld [vmem:[%s0 + $0x18] sm:$0xff]
    %v291 = vld [vmem:[%s0 + $0x20] sm:$0xff]
    %v292 = vld [vmem:[%s0 + $0x28] sm:$0xff]
    %v293 = vld [vmem:[%s0 + $0x30] sm:$0xff]
    %v294 = vld [vmem:[%s0 + $0x38] sm:$0xff]
    %v295 = vld [vmem:[%s1] sm:$0x77]
    %v296 = vld [vmem:[%s1 + $0x8] sm:$0x77]
    %v297 = vld [vmem:[%s2] sm:$0xf]
    %v299 = vlaneseq
    %v300 = vshrl.u32 %v299, 7
    %v301 = vsub.s32 0, %v300
    %v302 = vrot.slane %v297, %v301
    %v303 = vlaneseq
    %v304 = vshrl.u32 %v303, 7
    %v305 = vsub.s32 1, %v304
    %v306 = vrot.slane %v297, %v305
    %v307 = vlaneseq
    %v308 = vshrl.u32 %v307, 7
    %v309 = vsub.s32 2, %v308
    %v310 = vrot.slane %v297, %v309
    %v311 = vlaneseq
    %v312 = vshrl.u32 %v311, 7
    %v313 = vsub.s32 3, %v312
    %v314 = vrot.slane %v297, %v313
    %v321 = vcombine.high %v295, %v295
    %v322 = vcombine.high %v296, %v296
    %vm323 = vcmask 23552
    %v325 = vsel %vm323, %v287, 0
    %v328 = vsel %vm323, %v288, 0
    %v331 = vsel %vm323, %v289, 0
    %v334 = vsel %vm323, %v290, 0
    %v337 = vsel %vm323, %v291, 0
    %v340 = vsel %vm323, %v292, 0
    %v343 = vsel %vm323, %v293, 0
    %v346 = vsel %vm323, %v294, 0
    %vm348 = vcmask 1042432
    %v349 = vsel %vm348, %v295, 0
    %v351 = vsel %vm348, %v321, 0
    %v353 = vsel %vm348, %v296, 0
    %v355 = vsel %vm348, %v322, 0
    %357 = vmatprep.subr.mxu0 %v351
    %358 = vmatpush1.msra.mxu0 %v349
    %359 = vmatprep.subr.mxu0 0.0
    %360 = vmatpush1.msra.mxu0 0.0
    %361 = vmatprep.subr.mxu0 0.0
    %362 = vmatpush1.msra.mxu0 0.0
    %363 = vmatprep.subr.mxu0 0.0
    %364 = vmatpush1.msra.mxu0 0.0
    %365 = vmatprep.subr.mxu0 0.0
    %366 = vmatpush1.msra.mxu0 0.0
    %367 = vmatprep.subr.mxu0 0.0
    %368 = vmatpush1.msra.mxu0 0.0
    %369 = vmatprep.subr.mxu0 0.0
    %370 = vmatpush1.msra.mxu0 0.0
    %371 = vmatprep.subr.mxu0 0.0
    %372 = vmatpush1.msra.mxu0 0.0
    %373 = vmatprep.subr.mxu0 0.0
    %374 = vmatpush1.msra.mxu0 0.0
    %375 = vmatprep.subr.mxu0 0.0
    %376 = vmatpush1.msra.mxu0 0.0
    %377 = vmatprep.subr.mxu0 0.0
    %378 = vmatpush1.msra.mxu0 0.0
    %379 = vmatprep.subr.mxu0 0.0
    %380 = vmatpush1.msra.mxu0 0.0
    %381 = vmatprep.subr.mxu0 0.0
    %382 = vmatpush1.msra.mxu0 0.0
    %383 = vmatprep.subr.mxu0 0.0
    %384 = vmatpush1.msra.mxu0 0.0
    %385 = vmatprep.subr.mxu0 0.0
    %386 = vmatpush1.msra.mxu0 0.0
    %387 = vmatprep.subr.mxu0 0.0
    %388 = vmatpush1.msra.mxu0 0.0
    %389 = vmatprep.subr.mxu0 0.0
    %390 = vmatpush1.msra.mxu0 0.0
    %391 = vmatprep.subr.mxu0 0.0
    %392 = vmatpush1.msra.mxu0 0.0
    %393 = vmatprep.subr.mxu0 0.0
    %394 = vmatpush1.msra.mxu0 0.0
    %395 = vmatprep.subr.mxu0 0.0
    %396 = vmatpush1.msra.mxu0 0.0
    %397 = vmatprep.subr.mxu0 0.0
    %398 = vmatpush1.msra.mxu0 0.0
    %399 = vmatprep.subr.mxu0 0.0
    %400 = vmatpush1.msra.mxu0 0.0
    %401 = vmatprep.subr.mxu0 0.0
    %402 = vmatpush1.msra.mxu0 0.0
    %403 = vmatprep.subr.mxu0 0.0
    %404 = vmatpush1.msra.mxu0 0.0
    %405 = vmatprep.subr.mxu0 0.0
    %406 = vmatpush1.msra.mxu0 0.0
    %407 = vmatprep.subr.mxu0 0.0
    %408 = vmatpush1.msra.mxu0 0.0
    %409 = vmatprep.subr.mxu0 0.0
    %410 = vmatpush1.msra.mxu0 0.0
    %411 = vmatprep.subr.mxu0 0.0
    %412 = vmatpush1.msra.mxu0 0.0
    %413 = vmatprep.subr.mxu0 0.0
    %414 = vmatpush1.msra.mxu0 0.0
    %415 = vmatprep.subr.mxu0 0.0
    %416 = vmatpush1.msra.mxu0 0.0
    %417 = vmatprep.subr.mxu0 0.0
    %418 = vmatpush1.msra.mxu0 0.0
    %419 = vmatprep.subr.mxu0 0.0
    %420 = vmatpush1.msra.mxu0 0.0
    %421 = vmatprep.mubr.f32.mxu0 0.0
    %422 = vmatmul.mubr.f32.gmra.mrb[0].mxu0 %v325
    %v423 = vpop.f32.mrb[0].mxu0
    %v424 = vadd.f32 %v302, %v423
    %v425 = vpop.f32.mrb[0].mxu0
    %v426 = vadd.f32 %v306, %v425
    %427 = vmatprep.mubr.f32.mxu0 0.0
    %428 = vmatmul.mubr.f32.gmra.mrb[0].mxu0 %v328
    %v429 = vpop.f32.mrb[0].mxu0
    %v430 = vadd.f32 %v302, %v429
    %v431 = vpop.f32.mrb[0].mxu0
    %v432 = vadd.f32 %v306, %v431
    %433 = vmatprep.mubr.f32.mxu0 0.0
    %434 = vmatmul.mubr.f32.gmra.mrb[0].mxu0 %v331
    %v435 = vpop.f32.mrb[0].mxu0
    %v436 = vadd.f32 %v302, %v435
    %v437 = vpop.f32.mrb[0].mxu0
    %v438 = vadd.f32 %v306, %v437
    %439 = vmatprep.mubr.f32.mxu0 0.0
    %440 = vmatmul.mubr.f32.gmra.mrb[0].mxu0 %v334
    %v441 = vpop.f32.mrb[0].mxu0
    %v442 = vadd.f32 %v302, %v441
    %v443 = vpop.f32.mrb[0].mxu0
    %v444 = vadd.f32 %v306, %v443
    %445 = vmatprep.mubr.f32.mxu0 0.0
    %446 = vmatmul.mubr.f32.gmra.mrb[0].mxu0 %v337
    %v447 = vpop.f32.mrb[0].mxu0
    %v448 = vadd.f32 %v302, %v447
    %v449 = vpop.f32.mrb[0].mxu0
    %v450 = vadd.f32 %v306, %v449
    %451 = vmatprep.mubr.f32.mxu0 0.0
    %452 = vmatmul.mubr.f32.gmra.mrb[0].mxu0 %v340
    %v453 = vpop.f32.mrb[0].mxu0
    %v454 = vadd.f32 %v302, %v453
    %v455 = vpop.f32.mrb[0].mxu0
    %v456 = vadd.f32 %v306, %v455
    %457 = vmatprep.mubr.f32.mxu0 0.0
    %458 = vmatmul.mubr.f32.gmra.mrb[0].mxu0 %v343
    %v459 = vpop.f32.mrb[0].mxu0
    %v460 = vadd.f32 %v302, %v459
    %v461 = vpop.f32.mrb[0].mxu0
    %v462 = vadd.f32 %v306, %v461
    %463 = vmatprep.mubr.f32.mxu0 0.0
    %464 = vmatmul.mubr.f32.gmra.mrb[0].mxu0 %v346
    %v465 = vpop.f32.mrb[0].mxu0
    %v466 = vadd.f32 %v302, %v465
    %v467 = vpop.f32.mrb[0].mxu0
    %v468 = vadd.f32 %v306, %v467
    %469 = vdwg.mxu0
    %470 = vmatprep.subr.mxu0 %v355
    %471 = vmatpush1.msra.mxu0 %v353
    %472 = vmatprep.subr.mxu0 0.0
    %473 = vmatpush1.msra.mxu0 0.0
    %474 = vmatprep.subr.mxu0 0.0
    %475 = vmatpush1.msra.mxu0 0.0
    %476 = vmatprep.subr.mxu0 0.0
    %477 = vmatpush1.msra.mxu0 0.0
    %478 = vmatprep.subr.mxu0 0.0
    %479 = vmatpush1.msra.mxu0 0.0
    %480 = vmatprep.subr.mxu0 0.0
    %481 = vmatpush1.msra.mxu0 0.0
    %482 = vmatprep.subr.mxu0 0.0
    %483 = vmatpush1.msra.mxu0 0.0
    %484 = vmatprep.subr.mxu0 0.0
    %485 = vmatpush1.msra.mxu0 0.0
    %486 = vmatprep.subr.mxu0 0.0
    %487 = vmatpush1.msra.mxu0 0.0
    %488 = vmatprep.subr.mxu0 0.0
    %489 = vmatpush1.msra.mxu0 0.0
    %490 = vmatprep.subr.mxu0 0.0
    %491 = vmatpush1.msra.mxu0 0.0
    %492 = vmatprep.subr.mxu0 0.0
    %493 = vmatpush1.msra.mxu0 0.0
    %494 = vmatprep.subr.mxu0 0.0
    %495 = vmatpush1.msra.mxu0 0.0
    %496 = vmatprep.subr.mxu0 0.0
    %497 = vmatpush1.msra.mxu0 0.0
    %498 = vmatprep.subr.mxu0 0.0
    %499 = vmatpush1.msra.mxu0 0.0
    %500 = vmatprep.subr.mxu0 0.0
    %501 = vmatpush1.msra.mxu0 0.0
    %502 = vmatprep.subr.mxu0 0.0
    %503 = vmatpush1.msra.mxu0 0.0
    %504 = vmatprep.subr.mxu0 0.0
    %505 = vmatpush1.msra.mxu0 0.0
    %506 = vmatprep.subr.mxu0 0.0
    %507 = vmatpush1.msra.mxu0 0.0
    %508 = vmatprep.subr.mxu0 0.0
    %509 = vmatpush1.msra.mxu0 0.0
    %510 = vmatprep.subr.mxu0 0.0
    %511 = vmatpush1.msra.mxu0 0.0
    %512 = vmatprep.subr.mxu0 0.0
    %513 = vmatpush1.msra.mxu0 0.0
    %514 = vmatprep.subr.mxu0 0.0
    %515 = vmatpush1.msra.mxu0 0.0
    %516 = vmatprep.subr.mxu0 0.0
    %517 = vmatpush1.msra.mxu0 0.0
    %518 = vmatprep.subr.mxu0 0.0
    %519 = vmatpush1.msra.mxu0 0.0
    %520 = vmatprep.subr.mxu0 0.0
    %521 = vmatpush1.msra.mxu0 0.0
    %522 = vmatprep.subr.mxu0 0.0
    %523 = vmatpush1.msra.mxu0 0.0
    %524 = vmatprep.subr.mxu0 0.0
    %525 = vmatpush1.msra.mxu0 0.0
    %526 = vmatprep.subr.mxu0 0.0
    %527 = vmatpush1.msra.mxu0 0.0
    %528 = vmatprep.subr.mxu0 0.0
    %529 = vmatpush1.msra.mxu0 0.0
    %530 = vmatprep.subr.mxu0 0.0
    %531 = vmatpush1.msra.mxu0 0.0
    %532 = vmatprep.subr.mxu0 0.0
    %533 = vmatpush1.msra.mxu0 0.0
    %534 = vmatprep.mubr.f32.mxu0 0.0
    %535 = vmatmul.mubr.f32.gmra.mrb[0].mxu0 %v325
    %v536 = vpop.f32.mrb[0].mxu0
    %v537 = vadd.f32 %v310, %v536
    %v538 = vpop.f32.mrb[0].mxu0
    %v539 = vadd.f32 %v314, %v538
    %540 = vmatprep.mubr.f32.mxu0 0.0
    %541 = vmatmul.mubr.f32.gmra.mrb[0].mxu0 %v328
    %v542 = vpop.f32.mrb[0].mxu0
    %v543 = vadd.f32 %v310, %v542
    %v544 = vpop.f32.mrb[0].mxu0
    %v545 = vadd.f32 %v314, %v544
    %546 = vmatprep.mubr.f32.mxu0 0.0
    %547 = vmatmul.mubr.f32.gmra.mrb[0].mxu0 %v331
    %v548 = vpop.f32.mrb[0].mxu0
    %v549 = vadd.f32 %v310, %v548
    %v550 = vpop.f32.mrb[0].mxu0
    %v551 = vadd.f32 %v314, %v550
    %552 = vmatprep.mubr.f32.mxu0 0.0
    %553 = vmatmul.mubr.f32.gmra.mrb[0].mxu0 %v334
    %v554 = vpop.f32.mrb[0].mxu0
    %v555 = vadd.f32 %v310, %v554
    %v556 = vpop.f32.mrb[0].mxu0
    %v557 = vadd.f32 %v314, %v556
    %558 = vmatprep.mubr.f32.mxu0 0.0
    %559 = vmatmul.mubr.f32.gmra.mrb[0].mxu0 %v337
    %v560 = vpop.f32.mrb[0].mxu0
    %v561 = vadd.f32 %v310, %v560
    %v562 = vpop.f32.mrb[0].mxu0
    %v563 = vadd.f32 %v314, %v562
    %564 = vmatprep.mubr.f32.mxu0 0.0
    %565 = vmatmul.mubr.f32.gmra.mrb[0].mxu0 %v340
    %v566 = vpop.f32.mrb[0].mxu0
    %v567 = vadd.f32 %v310, %v566
    %v568 = vpop.f32.mrb[0].mxu0
    %v569 = vadd.f32 %v314, %v568
    %570 = vmatprep.mubr.f32.mxu0 0.0
    %571 = vmatmul.mubr.f32.gmra.mrb[0].mxu0 %v343
    %v572 = vpop.f32.mrb[0].mxu0
    %v573 = vadd.f32 %v310, %v572
    %v574 = vpop.f32.mrb[0].mxu0
    %v575 = vadd.f32 %v314, %v574
    %576 = vmatprep.mubr.f32.mxu0 0.0
    %577 = vmatmul.mubr.f32.gmra.mrb[0].mxu0 %v346
    %v578 = vpop.f32.mrb[0].mxu0
    %v579 = vadd.f32 %v310, %v578
    %v580 = vpop.f32.mrb[0].mxu0
    %v581 = vadd.f32 %v314, %v580
    %582 = vdwg.mxu0
    %583 = vmatprep.subr.mxu0 %v202
    %584 = vmatpush1.msra.mxu0 %v201
    %585 = vmatprep.subr.mxu0 %v206
    %586 = vmatpush1.msra.mxu0 %v205
    %587 = vmatprep.subr.mxu0 %v210
    %588 = vmatpush1.msra.mxu0 %v209
    %589 = vmatprep.subr.mxu0 %v214
    %590 = vmatpush1.msra.mxu0 %v213
    %591 = vmatprep.subr.mxu0 %v218
    %592 = vmatpush1.msra.mxu0 %v217
    %593 = vmatprep.subr.mxu0 %v222
    %594 = vmatpush1.msra.mxu0 %v221
    %595 = vmatprep.subr.mxu0 %v226
    %596 = vmatpush1.msra.mxu0 %v225
    %597 = vmatprep.subr.mxu0 %v230
    %598 = vmatpush1.msra.mxu0 %v229
    %599 = vmatprep.subr.mxu0 %v234
    %600 = vmatpush1.msra.mxu0 %v233
    %601 = vmatprep.subr.mxu0 %v238
    %602 = vmatpush1.msra.mxu0 %v237
    %603 = vmatprep.subr.mxu0 %v242
    %604 = vmatpush1.msra.mxu0 %v241
    %605 = vmatprep.subr.mxu0 %v246
    %606 = vmatpush1.msra.mxu0 %v245
    %607 = vmatprep.subr.mxu0 %v250
    %608 = vmatpush1.msra.mxu0 %v249
    %609 = vmatprep.subr.mxu0 %v254
    %610 = vmatpush1.msra.mxu0 %v253
    %611 = vmatprep.subr.mxu0 %v258
    %612 = vmatpush1.msra.mxu0 %v257
    %613 = vmatprep.subr.mxu0 %v262
    %614 = vmatpush1.msra.mxu0 %v261
    %615 = vmatprep.subr.mxu0 0.0
    %616 = vmatpush1.msra.mxu0 0.0
    %617 = vmatprep.subr.mxu0 0.0
    %618 = vmatpush1.msra.mxu0 0.0
    %619 = vmatprep.subr.mxu0 0.0
    %620 = vmatpush1.msra.mxu0 0.0
    %621 = vmatprep.subr.mxu0 0.0
    %622 = vmatpush1.msra.mxu0 0.0
    %623 = vmatprep.subr.mxu0 0.0
    %624 = vmatpush1.msra.mxu0 0.0
    %625 = vmatprep.subr.mxu0 0.0
    %626 = vmatpush1.msra.mxu0 0.0
    %627 = vmatprep.subr.mxu0 0.0
    %628 = vmatpush1.msra.mxu0 0.0
    %629 = vmatprep.subr.mxu0 0.0
    %630 = vmatpush1.msra.mxu0 0.0
    %631 = vmatprep.subr.mxu0 0.0
    %632 = vmatpush1.msra.mxu0 0.0
    %633 = vmatprep.subr.mxu0 0.0
    %634 = vmatpush1.msra.mxu0 0.0
    %635 = vmatprep.subr.mxu0 0.0
    %636 = vmatpush1.msra.mxu0 0.0
    %637 = vmatprep.subr.mxu0 0.0
    %638 = vmatpush1.msra.mxu0 0.0
    %639 = vmatprep.subr.mxu0 0.0
    %640 = vmatpush1.msra.mxu0 0.0
    %641 = vmatprep.subr.mxu0 0.0
    %642 = vmatpush1.msra.mxu0 0.0
    %643 = vmatprep.subr.mxu0 0.0
    %644 = vmatpush1.msra.mxu0 0.0
    %645 = vmatprep.subr.mxu0 0.0
    %646 = vmatpush1.msra.mxu0 0.0
    %647 = vmatprep.mubr.f32.mxu0 0.0
    %648 = vmatmul.mubr.f32.gmra.mrb[0].mxu0 0.0
    %v649 = vpop.f32.mrb[0].mxu0
    %v650 = vadd.f32 0.0, %v649
    %v651 = vpop.f32.mrb[0].mxu0
    %v652 = vadd.f32 0.0, %v651
    %653 = vdwg.mxu0
    %654 = vmatprep.subr.mxu0 %v204
    %655 = vmatpush1.msra.mxu0 %v203
    %656 = vmatprep.subr.mxu0 %v208
    %657 = vmatpush1.msra.mxu0 %v207
    %658 = vmatprep.subr.mxu0 %v212
    %659 = vmatpush1.msra.mxu0 %v211
    %660 = vmatprep.subr.mxu0 %v216
    %661 = vmatpush1.msra.mxu0 %v215
    %662 = vmatprep.subr.mxu0 %v220
    %663 = vmatpush1.msra.mxu0 %v219
    %664 = vmatprep.subr.mxu0 %v224
    %665 = vmatpush1.msra.mxu0 %v223
    %666 = vmatprep.subr.mxu0 %v228
    %667 = vmatpush1.msra.mxu0 %v227
    %668 = vmatprep.subr.mxu0 %v232
    %669 = vmatpush1.msra.mxu0 %v231
    %670 = vmatprep.subr.mxu0 %v236
    %671 = vmatpush1.msra.mxu0 %v235
    %672 = vmatprep.subr.mxu0 %v240
    %673 = vmatpush1.msra.mxu0 %v239
    %674 = vmatprep.subr.mxu0 %v244
    %675 = vmatpush1.msra.mxu0 %v243
    %676 = vmatprep.subr.mxu0 %v248
    %677 = vmatpush1.msra.mxu0 %v247
    %678 = vmatprep.subr.mxu0 %v252
    %679 = vmatpush1.msra.mxu0 %v251
    %680 = vmatprep.subr.mxu0 %v256
    %681 = vmatpush1.msra.mxu0 %v255
    %682 = vmatprep.subr.mxu0 %v260
    %683 = vmatpush1.msra.mxu0 %v259
    %684 = vmatprep.subr.mxu0 %v264
    %685 = vmatpush1.msra.mxu0 %v263
    %686 = vmatprep.subr.mxu0 0.0
    %687 = vmatpush1.msra.mxu0 0.0
    %688 = vmatprep.subr.mxu0 0.0
    %689 = vmatpush1.msra.mxu0 0.0
    %690 = vmatprep.subr.mxu0 0.0
    %691 = vmatpush1.msra.mxu0 0.0
    %692 = vmatprep.subr.mxu0 0.0
    %693 = vmatpush1.msra.mxu0 0.0
    %694 = vmatprep.subr.mxu0 0.0
    %695 = vmatpush1.msra.mxu0 0.0
    %696 = vmatprep.subr.mxu0 0.0
    %697 = vmatpush1.msra.mxu0 0.0
    %698 = vmatprep.subr.mxu0 0.0
    %699 = vmatpush1.msra.mxu0 0.0
    %700 = vmatprep.subr.mxu0 0.0
    %701 = vmatpush1.msra.mxu0 0.0
    %702 = vmatprep.subr.mxu0 0.0
    %703 = vmatpush1.msra.mxu0 0.0
    %704 = vmatprep.subr.mxu0 0.0
    %705 = vmatpush1.msra.mxu0 0.0
    %706 = vmatprep.subr.mxu0 0.0
    %707 = vmatpush1.msra.mxu0 0.0
    %708 = vmatprep.subr.mxu0 0.0
    %709 = vmatpush1.msra.mxu0 0.0
    %710 = vmatprep.subr.mxu0 0.0
    %711 = vmatpush1.msra.mxu0 0.0
    %712 = vmatprep.subr.mxu0 0.0
    %713 = vmatpush1.msra.mxu0 0.0
    %714 = vmatprep.subr.mxu0 0.0
    %715 = vmatpush1.msra.mxu0 0.0
    %716 = vmatprep.subr.mxu0 0.0
    %717 = vmatpush1.msra.mxu0 0.0
    %718 = vmatprep.mubr.f32.mxu0 0.0
    %719 = vmatmul.mubr.f32.gmra.mrb[0].mxu0 0.0
    %v720 = vpop.f32.mrb[0].mxu0
    %v721 = vadd.f32 0.0, %v720
    %v722 = vpop.f32.mrb[0].mxu0
    %v723 = vadd.f32 0.0, %v722
    %724 = vdwg.mxu0
    %725 = vmatprep.subr.mxu0 %v74
    %726 = vmatpush1.msra.mxu0 %v73
    %727 = vmatprep.subr.mxu0 %v78
    %728 = vmatpush1.msra.mxu0 %v77
    %729 = vmatprep.subr.mxu0 %v82
    %730 = vmatpush1.msra.mxu0 %v81
    %731 = vmatprep.subr.mxu0 %v86
    %732 = vmatpush1.msra.mxu0 %v85
    %733 = vmatprep.subr.mxu0 %v90
    %734 = vmatpush1.msra.mxu0 %v89
    %735 = vmatprep.subr.mxu0 %v94
    %736 = vmatpush1.msra.mxu0 %v93
    %737 = vmatprep.subr.mxu0 %v98
    %738 = vmatpush1.msra.mxu0 %v97
    %739 = vmatprep.subr.mxu0 %v102
    %740 = vmatpush1.msra.mxu0 %v101
    %741 = vmatprep.subr.mxu0 %v106
    %742 = vmatpush1.msra.mxu0 %v105
    %743 = vmatprep.subr.mxu0 %v110
    %744 = vmatpush1.msra.mxu0 %v109
    %745 = vmatprep.subr.mxu0 %v114
    %746 = vmatpush1.msra.mxu0 %v113
    %747 = vmatprep.subr.mxu0 %v118
    %748 = vmatpush1.msra.mxu0 %v117
    %749 = vmatprep.subr.mxu0 %v122
    %750 = vmatpush1.msra.mxu0 %v121
    %751 = vmatprep.subr.mxu0 %v126
    %752 = vmatpush1.msra.mxu0 %v125
    %753 = vmatprep.subr.mxu0 %v130
    %754 = vmatpush1.msra.mxu0 %v129
    %755 = vmatprep.subr.mxu0 %v134
    %756 = vmatpush1.msra.mxu0 %v133
    %757 = vmatprep.subr.mxu0 0.0
    %758 = vmatpush1.msra.mxu0 0.0
    %759 = vmatprep.subr.mxu0 0.0
    %760 = vmatpush1.msra.mxu0 0.0
    %761 = vmatprep.subr.mxu0 0.0
    %762 = vmatpush1.msra.mxu0 0.0
    %763 = vmatprep.subr.mxu0 0.0
    %764 = vmatpush1.msra.mxu0 0.0
    %765 = vmatprep.subr.mxu0 0.0
    %766 = vmatpush1.msra.mxu0 0.0
    %767 = vmatprep.subr.mxu0 0.0
    %768 = vmatpush1.msra.mxu0 0.0
    %769 = vmatprep.subr.mxu0 0.0
    %770 = vmatpush1.msra.mxu0 0.0
    %771 = vmatprep.subr.mxu0 0.0
    %772 = vmatpush1.msra.mxu0 0.0
    %773 = vmatprep.subr.mxu0 0.0
    %774 = vmatpush1.msra.mxu0 0.0
    %775 = vmatprep.subr.mxu0 0.0
    %776 = vmatpush1.msra.mxu0 0.0
    %777 = vmatprep.subr.mxu0 0.0
    %778 = vmatpush1.msra.mxu0 0.0
    %779 = vmatprep.subr.mxu0 0.0
    %780 = vmatpush1.msra.mxu0 0.0
    %781 = vmatprep.subr.mxu0 0.0
    %782 = vmatpush1.msra.mxu0 0.0
    %783 = vmatprep.subr.mxu0 0.0
    %784 = vmatpush1.msra.mxu0 0.0
    %785 = vmatprep.subr.mxu0 0.0
    %786 = vmatpush1.msra.mxu0 0.0
    %787 = vmatprep.subr.mxu0 0.0
    %788 = vmatpush1.msra.mxu0 0.0
    %789 = vmatprep.mubr.f32.mxu0 0.0
    %790 = vmatmul.mubr.f32.gmra.mrb[0].mxu0 0.0
    %v791 = vpop.f32.mrb[0].mxu0
    %v792 = vadd.f32 0.0, %v791
    %v793 = vpop.f32.mrb[0].mxu0
    %v794 = vadd.f32 0.0, %v793
    %795 = vdwg.mxu0
    %796 = vmatprep.subr.mxu0 %v76
    %797 = vmatpush1.msra.mxu0 %v75
    %798 = vmatprep.subr.mxu0 %v80
    %799 = vmatpush1.msra.mxu0 %v79
    %800 = vmatprep.subr.mxu0 %v84
    %801 = vmatpush1.msra.mxu0 %v83
    %802 = vmatprep.subr.mxu0 %v88
    %803 = vmatpush1.msra.mxu0 %v87
    %804 = vmatprep.subr.mxu0 %v92
    %805 = vmatpush1.msra.mxu0 %v91
    %806 = vmatprep.subr.mxu0 %v96
    %807 = vmatpush1.msra.mxu0 %v95
    %808 = vmatprep.subr.mxu0 %v100
    %809 = vmatpush1.msra.mxu0 %v99
    %810 = vmatprep.subr.mxu0 %v104
    %811 = vmatpush1.msra.mxu0 %v103
    %812 = vmatprep.subr.mxu0 %v108
    %813 = vmatpush1.msra.mxu0 %v107
    %814 = vmatprep.subr.mxu0 %v112
    %815 = vmatpush1.msra.mxu0 %v111
    %816 = vmatprep.subr.mxu0 %v116
    %817 = vmatpush1.msra.mxu0 %v115
    %818 = vmatprep.subr.mxu0 %v120
    %819 = vmatpush1.msra.mxu0 %v119
    %820 = vmatprep.subr.mxu0 %v124
    %821 = vmatpush1.msra.mxu0 %v123
    %822 = vmatprep.subr.mxu0 %v128
    %823 = vmatpush1.msra.mxu0 %v127
    %824 = vmatprep.subr.mxu0 %v132
    %825 = vmatpush1.msra.mxu0 %v131
    %826 = vmatprep.subr.mxu0 %v136
    %827 = vmatpush1.msra.mxu0 %v135
    %828 = vmatprep.subr.mxu0 0.0
    %829 = vmatpush1.msra.mxu0 0.0
    %830 = vmatprep.subr.mxu0 0.0
    %831 = vmatpush1.msra.mxu0 0.0
    %832 = vmatprep.subr.mxu0 0.0
    %833 = vmatpush1.msra.mxu0 0.0
    %834 = vmatprep.subr.mxu0 0.0
    %835 = vmatpush1.msra.mxu0 0.0
    %836 = vmatprep.subr.mxu0 0.0
    %837 = vmatpush1.msra.mxu0 0.0
    %838 = vmatprep.subr.mxu0 0.0
    %839 = vmatpush1.msra.mxu0 0.0
    %840 = vmatprep.subr.mxu0 0.0
    %841 = vmatpush1.msra.mxu0 0.0
    %842 = vmatprep.subr.mxu0 0.0
    %843 = vmatpush1.msra.mxu0 0.0
    %844 = vmatprep.subr.mxu0 0.0
    %845 = vmatpush1.msra.mxu0 0.0
    %846 = vmatprep.subr.mxu0 0.0
    %847 = vmatpush1.msra.mxu0 0.0
    %848 = vmatprep.subr.mxu0 0.0
    %849 = vmatpush1.msra.mxu0 0.0
    %850 = vmatprep.subr.mxu0 0.0
    %851 = vmatpush1.msra.mxu0 0.0
    %852 = vmatprep.subr.mxu0 0.0
    %853 = vmatpush1.msra.mxu0 0.0
    %854 = vmatprep.subr.mxu0 0.0
    %855 = vmatpush1.msra.mxu0 0.0
    %856 = vmatprep.subr.mxu0 0.0
    %857 = vmatpush1.msra.mxu0 0.0
    %858 = vmatprep.subr.mxu0 0.0
    %859 = vmatpush1.msra.mxu0 0.0
    %860 = vmatprep.mubr.f32.mxu0 0.0
    %861 = vmatmul.mubr.f32.gmra.mrb[0].mxu0 0.0
    %v862 = vpop.f32.mrb[0].mxu0
    %v863 = vadd.f32 0.0, %v862
    %v864 = vpop.f32.mrb[0].mxu0
    %v865 = vadd.f32 0.0, %v864
    %866 = vdwg.mxu0
    %v867 = vadd.f32 %v424, %v792
    %v868 = vadd.f32 %v426, %v794
    %v869 = vadd.f32 %v537, %v863
    %v870 = vadd.f32 %v539, %v865
    %v871 = vxor.u32 %v867, 2147483648
    %v872 = vxor.u32 %v868, 2147483648
    %v873 = vxor.u32 %v869, 2147483648
    %v874 = vmul.f32 %v871, 1.442695
    %v875 = vpow.pop %v874
    %v876 = vmul.f32 %v872, 1.442695
    %v877 = vpow.pop %v876
    %v878 = vmul.f32 %v873, 1.442695
    %v879 = vpow.pop %v878
    %v880 = vadd.f32 %v875, 1.0
    %v881 = vadd.f32 %v877, 1.0
    %v882 = vadd.f32 %v879, 1.0
    %v883 = vrcp.pop %v880
    %v884 = vmul.f32 1.0, %v883
    %v885 = vrcp.pop %v881
    %v886 = vmul.f32 1.0, %v885
    %v887 = vrcp.pop %v882
    %v888 = vmul.f32 1.0, %v887
    %v889 = vtanh.pop %v870
    %v890 = vmul.f32 %v886, 0.0
    %v891 = vmul.f32 %v884, %v889
    %v892 = vadd.f32 %v890, %v891
    %v893 = vtanh.pop %v892
    %v894 = vmul.f32 %v888, %v893
    %895 = vmatprep.subr.mxu0 %v138
    %896 = vmatpush1.msra.mxu0 %v137
    %897 = vmatprep.subr.mxu0 %v142
    %898 = vmatpush1.msra.mxu0 %v141
    %899 = vmatprep.subr.mxu0 %v146
    %900 = vmatpush1.msra.mxu0 %v145
    %901 = vmatprep.subr.mxu0 %v150
    %902 = vmatpush1.msra.mxu0 %v149
    %903 = vmatprep.subr.mxu0 %v154
    %904 = vmatpush1.msra.mxu0 %v153
    %905 = vmatprep.subr.mxu0 %v158
    %906 = vmatpush1.msra.mxu0 %v157
    %907 = vmatprep.subr.mxu0 %v162
    %908 = vmatpush1.msra.mxu0 %v161
    %909 = vmatprep.subr.mxu0 %v166
    %910 = vmatpush1.msra.mxu0 %v165
    %911 = vmatprep.subr.mxu0 %v170
    %912 = vmatpush1.msra.mxu0 %v169
    %913 = vmatprep.subr.mxu0 %v174
    %914 = vmatpush1.msra.mxu0 %v173
    %915 = vmatprep.subr.mxu0 %v178
    %916 = vmatpush1.msra.mxu0 %v177
    %917 = vmatprep.subr.mxu0 %v182
    %918 = vmatpush1.msra.mxu0 %v181
    %919 = vmatprep.subr.mxu0 %v186
    %920 = vmatpush1.msra.mxu0 %v185
    %921 = vmatprep.subr.mxu0 %v190
    %922 = vmatpush1.msra.mxu0 %v189
    %923 = vmatprep.subr.mxu0 %v194
    %924 = vmatpush1.msra.mxu0 %v193
    %925 = vmatprep.subr.mxu0 %v198
    %926 = vmatpush1.msra.mxu0 %v197
    %927 = vmatprep.subr.mxu0 0.0
    %928 = vmatpush1.msra.mxu0 0.0
    %929 = vmatprep.subr.mxu0 0.0
    %930 = vmatpush1.msra.mxu0 0.0
    %931 = vmatprep.subr.mxu0 0.0
    %932 = vmatpush1.msra.mxu0 0.0
    %933 = vmatprep.subr.mxu0 0.0
    %934 = vmatpush1.msra.mxu0 0.0
    %935 = vmatprep.subr.mxu0 0.0
    %936 = vmatpush1.msra.mxu0 0.0
    %937 = vmatprep.subr.mxu0 0.0
    %938 = vmatpush1.msra.mxu0 0.0
    %939 = vmatprep.subr.mxu0 0.0
    %940 = vmatpush1.msra.mxu0 0.0
    %941 = vmatprep.subr.mxu0 0.0
    %942 = vmatpush1.msra.mxu0 0.0
    %943 = vmatprep.subr.mxu0 0.0
    %944 = vmatpush1.msra.mxu0 0.0
    %945 = vmatprep.subr.mxu0 0.0
    %946 = vmatpush1.msra.mxu0 0.0
    %947 = vmatprep.subr.mxu0 0.0
    %948 = vmatpush1.msra.mxu0 0.0
    %949 = vmatprep.subr.mxu0 0.0
    %950 = vmatpush1.msra.mxu0 0.0
    %951 = vmatprep.subr.mxu0 0.0
    %952 = vmatpush1.msra.mxu0 0.0
    %953 = vmatprep.subr.mxu0 0.0
    %954 = vmatpush1.msra.mxu0 0.0
    %955 = vmatprep.subr.mxu0 0.0
    %956 = vmatpush1.msra.mxu0 0.0
    %957 = vmatprep.subr.mxu0 0.0
    %958 = vmatpush1.msra.mxu0 0.0
    %959 = vmatprep.mubr.f32.mxu0 0.0
    %960 = vmatmul.mubr.f32.gmra.mrb[0].mxu0 %v894
    %v961 = vpop.f32.mrb[0].mxu0
    %v962 = vadd.f32 %v650, %v961
    %v963 = vpop.f32.mrb[0].mxu0
    %v964 = vadd.f32 %v652, %v963
    %965 = vdwg.mxu0
    %966 = vmatprep.subr.mxu0 %v140
    %967 = vmatpush1.msra.mxu0 %v139
    %968 = vmatprep.subr.mxu0 %v144
    %969 = vmatpush1.msra.mxu0 %v143
    %970 = vmatprep.subr.mxu0 %v148
    %971 = vmatpush1.msra.mxu0 %v147
    %972 = vmatprep.subr.mxu0 %v152
    %973 = vmatpush1.msra.mxu0 %v151
    %974 = vmatprep.subr.mxu0 %v156
    %975 = vmatpush1.msra.mxu0 %v155
    %976 = vmatprep.subr.mxu0 %v160
    %977 = vmatpush1.msra.mxu0 %v159
    %978 = vmatprep.subr.mxu0 %v164
    %979 = vmatpush1.msra.mxu0 %v163
    %980 = vmatprep.subr.mxu0 %v168
    %981 = vmatpush1.msra.mxu0 %v167
    %982 = vmatprep.subr.mxu0 %v172
    %983 = vmatpush1.msra.mxu0 %v171
    %984 = vmatprep.subr.mxu0 %v176
    %985 = vmatpush1.msra.mxu0 %v175
    %986 = vmatprep.subr.mxu0 %v180
    %987 = vmatpush1.msra.mxu0 %v179
    %988 = vmatprep.subr.mxu0 %v184
    %989 = vmatpush1.msra.mxu0 %v183
    %990 = vmatprep.subr.mxu0 %v188
    %991 = vmatpush1.msra.mxu0 %v187
    %992 = vmatprep.subr.mxu0 %v192
    %993 = vmatpush1.msra.mxu0 %v191
    %994 = vmatprep.subr.mxu0 %v196
    %995 = vmatpush1.msra.mxu0 %v195
    %996 = vmatprep.subr.mxu0 %v200
    %997 = vmatpush1.msra.mxu0 %v199
    %998 = vmatprep.subr.mxu0 0.0
    %999 = vmatpush1.msra.mxu0 0.0
    %1000 = vmatprep.subr.mxu0 0.0
    %1001 = vmatpush1.msra.mxu0 0.0
    %1002 = vmatprep.subr.mxu0 0.0
    %1003 = vmatpush1.msra.mxu0 0.0
    %1004 = vmatprep.subr.mxu0 0.0
    %1005 = vmatpush1.msra.mxu0 0.0
    %1006 = vmatprep.subr.mxu0 0.0
    %1007 = vmatpush1.msra.mxu0 0.0
    %1008 = vmatprep.subr.mxu0 0.0
    %1009 = vmatpush1.msra.mxu0 0.0
    %1010 = vmatprep.subr.mxu0 0.0
    %1011 = vmatpush1.msra.mxu0 0.0
    %1012 = vmatprep.subr.mxu0 0.0
    %1013 = vmatpush1.msra.mxu0 0.0
    %1014 = vmatprep.subr.mxu0 0.0
    %1015 = vmatpush1.msra.mxu0 0.0
    %1016 = vmatprep.subr.mxu0 0.0
    %1017 = vmatpush1.msra.mxu0 0.0
    %1018 = vmatprep.subr.mxu0 0.0
    %1019 = vmatpush1.msra.mxu0 0.0
    %1020 = vmatprep.subr.mxu0 0.0
    %1021 = vmatpush1.msra.mxu0 0.0
    %1022 = vmatprep.subr.mxu0 0.0
    %1023 = vmatpush1.msra.mxu0 0.0
    %1024 = vmatprep.subr.mxu0 0.0
    %1025 = vmatpush1.msra.mxu0 0.0
    %1026 = vmatprep.subr.mxu0 0.0
    %1027 = vmatpush1.msra.mxu0 0.0
    %1028 = vmatprep.subr.mxu0 0.0
    %1029 = vmatpush1.msra.mxu0 0.0
    %1030 = vmatprep.mubr.f32.mxu0 0.0
    %1031 = vmatmul.mubr.f32.gmra.mrb[0].mxu0 %v894
    %v1032 = vpop.f32.mrb[0].mxu0
    %v1033 = vadd.f32 %v721, %v1032
    %v1034 = vpop.f32.mrb[0].mxu0
    %v1035 = vadd.f32 %v723, %v1034
    %1036 = vdwg.mxu0
    %v1037 = vadd.f32 %v962, %v270
    %v1038 = vadd.f32 %v964, %v274
    %v1039 = vadd.f32 %v1033, %v278
    %v1040 = vadd.f32 %v1035, %v282
    %v1041 = vxor.u32 %v1037, 2147483648
    %v1042 = vxor.u32 %v1038, 2147483648
    %v1043 = vxor.u32 %v1039, 2147483648
    %v1044 = vmul.f32 %v1041, 1.442695
    %v1045 = vpow.pop %v1044
    %v1046 = vmul.f32 %v1042, 1.442695
    %v1047 = vpow.pop %v1046
    %v1048 = vmul.f32 %v1043, 1.442695
    %v1049 = vpow.pop %v1048
    %v1050 = vadd.f32 %v1045, 1.0
    %v1051 = vadd.f32 %v1047, 1.0
    %v1052 = vadd.f32 %v1049, 1.0
    %v1053 = vrcp.pop %v1050
    %v1054 = vmul.f32 1.0, %v1053
    %v1055 = vrcp.pop %v1051
    %v1056 = vmul.f32 1.0, %v1055
    %v1057 = vrcp.pop %v1052
    %v1058 = vmul.f32 1.0, %v1057
    %v1059 = vtanh.pop %v1040
    %v1060 = vmul.f32 %v1056, 0.0
    %v1061 = vmul.f32 %v1054, %v1059
    %v1062 = vadd.f32 %v1060, %v1061
    %v1063 = vtanh.pop %v1062
    %v1064 = vmul.f32 %v1058, %v1063
    %1065 = vmatprep.subr.mxu0 %v202
    %1066 = vmatpush1.msra.mxu0 %v201
    %1067 = vmatprep.subr.mxu0 %v206
    %1068 = vmatpush1.msra.mxu0 %v205
    %1069 = vmatprep.subr.mxu0 %v210
    %1070 = vmatpush1.msra.mxu0 %v209
    %1071 = vmatprep.subr.mxu0 %v214
    %1072 = vmatpush1.msra.mxu0 %v213
    %1073 = vmatprep.subr.mxu0 %v218
    %1074 = vmatpush1.msra.mxu0 %v217
    %1075 = vmatprep.subr.mxu0 %v222
    %1076 = vmatpush1.msra.mxu0 %v221
    %1077 = vmatprep.subr.mxu0 %v226
    %1078 = vmatpush1.msra.mxu0 %v225
    %1079 = vmatprep.subr.mxu0 %v230
    %1080 = vmatpush1.msra.mxu0 %v229
    %1081 = vmatprep.subr.mxu0 %v234
    %1082 = vmatpush1.msra.mxu0 %v233
    %1083 = vmatprep.subr.mxu0 %v238
    %1084 = vmatpush1.msra.mxu0 %v237
    %1085 = vmatprep.subr.mxu0 %v242
    %1086 = vmatpush1.msra.mxu0 %v241
    %1087 = vmatprep.subr.mxu0 %v246
    %1088 = vmatpush1.msra.mxu0 %v245
    %1089 = vmatprep.subr.mxu0 %v250
    %1090 = vmatpush1.msra.mxu0 %v249
    %1091 = vmatprep.subr.mxu0 %v254
    %1092 = vmatpush1.msra.mxu0 %v253
    %1093 = vmatprep.subr.mxu0 %v258
    %1094 = vmatpush1.msra.mxu0 %v257
    %1095 = vmatprep.subr.mxu0 %v262
    %1096 = vmatpush1.msra.mxu0 %v261
    %1097 = vmatprep.subr.mxu0 0.0
    %1098 = vmatpush1.msra.mxu0 0.0
    %1099 = vmatprep.subr.mxu0 0.0
    %1100 = vmatpush1.msra.mxu0 0.0
    %1101 = vmatprep.subr.mxu0 0.0
    %1102 = vmatpush1.msra.mxu0 0.0
    %1103 = vmatprep.subr.mxu0 0.0
    %1104 = vmatpush1.msra.mxu0 0.0
    %1105 = vmatprep.subr.mxu0 0.0
    %1106 = vmatpush1.msra.mxu0 0.0
    %1107 = vmatprep.subr.mxu0 0.0
    %1108 = vmatpush1.msra.mxu0 0.0
    %1109 = vmatprep.subr.mxu0 0.0
    %1110 = vmatpush1.msra.mxu0 0.0
    %1111 = vmatprep.subr.mxu0 0.0
    %1112 = vmatpush1.msra.mxu0 0.0
    %1113 = vmatprep.subr.mxu0 0.0
    %1114 = vmatpush1.msra.mxu0 0.0
    %1115 = vmatprep.subr.mxu0 0.0
    %1116 = vmatpush1.msra.mxu0 0.0
    %1117 = vmatprep.subr.mxu0 0.0
    %1118 = vmatpush1.msra.mxu0 0.0
    %1119 = vmatprep.subr.mxu0 0.0
    %1120 = vmatpush1.msra.mxu0 0.0
    %1121 = vmatprep.subr.mxu0 0.0
    %1122 = vmatpush1.msra.mxu0 0.0
    %1123 = vmatprep.subr.mxu0 0.0
    %1124 = vmatpush1.msra.mxu0 0.0
    %1125 = vmatprep.subr.mxu0 0.0
    %1126 = vmatpush1.msra.mxu0 0.0
    %1127 = vmatprep.subr.mxu0 0.0
    %1128 = vmatpush1.msra.mxu0 0.0
    %1129 = vmatprep.mubr.f32.mxu0 0.0
    %1130 = vmatmul.mubr.f32.gmra.mrb[0].mxu0 %v1064
    %v1131 = vpop.f32.mrb[0].mxu0
    %v1132 = vadd.f32 0.0, %v1131
    %v1133 = vpop.f32.mrb[0].mxu0
    %v1134 = vadd.f32 0.0, %v1133
    %1135 = vdwg.mxu0
    %1136 = vmatprep.subr.mxu0 %v204
    %1137 = vmatpush1.msra.mxu0 %v203
    %1138 = vmatprep.subr.mxu0 %v208
    %1139 = vmatpush1.msra.mxu0 %v207
    %1140 = vmatprep.subr.mxu0 %v212
    %1141 = vmatpush1.msra.mxu0 %v211
    %1142 = vmatprep.subr.mxu0 %v216
    %1143 = vmatpush1.msra.mxu0 %v215
    %1144 = vmatprep.subr.mxu0 %v220
    %1145 = vmatpush1.msra.mxu0 %v219
    %1146 = vmatprep.subr.mxu0 %v224
    %1147 = vmatpush1.msra.mxu0 %v223
    %1148 = vmatprep.subr.mxu0 %v228
    %1149 = vmatpush1.msra.mxu0 %v227
    %1150 = vmatprep.subr.mxu0 %v232
    %1151 = vmatpush1.msra.mxu0 %v231
    %1152 = vmatprep.subr.mxu0 %v236
    %1153 = vmatpush1.msra.mxu0 %v235
    %1154 = vmatprep.subr.mxu0 %v240
    %1155 = vmatpush1.msra.mxu0 %v239
    %1156 = vmatprep.subr.mxu0 %v244
    %1157 = vmatpush1.msra.mxu0 %v243
    %1158 = vmatprep.subr.mxu0 %v248
    %1159 = vmatpush1.msra.mxu0 %v247
    %1160 = vmatprep.subr.mxu0 %v252
    %1161 = vmatpush1.msra.mxu0 %v251
    %1162 = vmatprep.subr.mxu0 %v256
    %1163 = vmatpush1.msra.mxu0 %v255
    %1164 = vmatprep.subr.mxu0 %v260
    %1165 = vmatpush1.msra.mxu0 %v259
    %1166 = vmatprep.subr.mxu0 %v264
    %1167 = vmatpush1.msra.mxu0 %v263
    %1168 = vmatprep.subr.mxu0 0.0
    %1169 = vmatpush1.msra.mxu0 0.0
    %1170 = vmatprep.subr.mxu0 0.0
    %1171 = vmatpush1.msra.mxu0 0.0
    %1172 = vmatprep.subr.mxu0 0.0
    %1173 = vmatpush1.msra.mxu0 0.0
    %1174 = vmatprep.subr.mxu0 0.0
    %1175 = vmatpush1.msra.mxu0 0.0
    %1176 = vmatprep.subr.mxu0 0.0
    %1177 = vmatpush1.msra.mxu0 0.0
    %1178 = vmatprep.subr.mxu0 0.0
    %1179 = vmatpush1.msra.mxu0 0.0
    %1180 = vmatprep.subr.mxu0 0.0
    %1181 = vmatpush1.msra.mxu0 0.0
    %1182 = vmatprep.subr.mxu0 0.0
    %1183 = vmatpush1.msra.mxu0 0.0
    %1184 = vmatprep.subr.mxu0 0.0
    %1185 = vmatpush1.msra.mxu0 0.0
    %1186 = vmatprep.subr.mxu0 0.0
    %1187 = vmatpush1.msra.mxu0 0.0
    %1188 = vmatprep.subr.mxu0 0.0
    %1189 = vmatpush1.msra.mxu0 0.0
    %1190 = vmatprep.subr.mxu0 0.0
    %1191 = vmatpush1.msra.mxu0 0.0
    %1192 = vmatprep.subr.mxu0 0.0
    %1193 = vmatpush1.msra.mxu0 0.0
    %1194 = vmatprep.subr.mxu0 0.0
    %1195 = vmatpush1.msra.mxu0 0.0
    %1196 = vmatprep.subr.mxu0 0.0
    %1197 = vmatpush1.msra.mxu0 0.0
    %1198 = vmatprep.subr.mxu0 0.0
    %1199 = vmatpush1.msra.mxu0 0.0
    %1200 = vmatprep.mubr.f32.mxu0 0.0
    %1201 = vmatmul.mubr.f32.gmra.mrb[0].mxu0 %v1064
    %v1202 = vpop.f32.mrb[0].mxu0
    %v1203 = vadd.f32 0.0, %v1202
    %v1204 = vpop.f32.mrb[0].mxu0
    %v1205 = vadd.f32 0.0, %v1204
    %1206 = vdwg.mxu0
    %1207 = vmatprep.subr.mxu0 %v74
    %1208 = vmatpush1.msra.mxu0 %v73
    %1209 = vmatprep.subr.mxu0 %v78
    %1210 = vmatpush1.msra.mxu0 %v77
    %1211 = vmatprep.subr.mxu0 %v82
    %1212 = vmatpush1.msra.mxu0 %v81
    %1213 = vmatprep.subr.mxu0 %v86
    %1214 = vmatpush1.msra.mxu0 %v85
    %1215 = vmatprep.subr.mxu0 %v90
    %1216 = vmatpush1.msra.mxu0 %v89
    %1217 = vmatprep.subr.mxu0 %v94
    %1218 = vmatpush1.msra.mxu0 %v93
    %1219 = vmatprep.subr.mxu0 %v98
    %1220 = vmatpush1.msra.mxu0 %v97
    %1221 = vmatprep.subr.mxu0 %v102
    %1222 = vmatpush1.msra.mxu0 %v101
    %1223 = vmatprep.subr.mxu0 %v106
    %1224 = vmatpush1.msra.mxu0 %v105
    %1225 = vmatprep.subr.mxu0 %v110
    %1226 = vmatpush1.msra.mxu0 %v109
    %1227 = vmatprep.subr.mxu0 %v114
    %1228 = vmatpush1.msra.mxu0 %v113
    %1229 = vmatprep.subr.mxu0 %v118
    %1230 = vmatpush1.msra.mxu0 %v117
    %1231 = vmatprep.subr.mxu0 %v122
    %1232 = vmatpush1.msra.mxu0 %v121
    %1233 = vmatprep.subr.mxu0 %v126
    %1234 = vmatpush1.msra.mxu0 %v125
    %1235 = vmatprep.subr.mxu0 %v130
    %1236 = vmatpush1.msra.mxu0 %v129
    %1237 = vmatprep.subr.mxu0 %v134
    %1238 = vmatpush1.msra.mxu0 %v133
    %1239 = vmatprep.subr.mxu0 0.0
    %1240 = vmatpush1.msra.mxu0 0.0
    %1241 = vmatprep.subr.mxu0 0.0
    %1242 = vmatpush1.msra.mxu0 0.0
    %1243 = vmatprep.subr.mxu0 0.0
    %1244 = vmatpush1.msra.mxu0 0.0
    %1245 = vmatprep.subr.mxu0 0.0
    %1246 = vmatpush1.msra.mxu0 0.0
    %1247 = vmatprep.subr.mxu0 0.0
    %1248 = vmatpush1.msra.mxu0 0.0
    %1249 = vmatprep.subr.mxu0 0.0
    %1250 = vmatpush1.msra.mxu0 0.0
    %1251 = vmatprep.subr.mxu0 0.0
    %1252 = vmatpush1.msra.mxu0 0.0
    %1253 = vmatprep.subr.mxu0 0.0
    %1254 = vmatpush1.msra.mxu0 0.0
    %1255 = vmatprep.subr.mxu0 0.0
    %1256 = vmatpush1.msra.mxu0 0.0
    %1257 = vmatprep.subr.mxu0 0.0
    %1258 = vmatpush1.msra.mxu0 0.0
    %1259 = vmatprep.subr.mxu0 0.0
    %1260 = vmatpush1.msra.mxu0 0.0
    %1261 = vmatprep.subr.mxu0 0.0
    %1262 = vmatpush1.msra.mxu0 0.0
    %1263 = vmatprep.subr.mxu0 0.0
    %1264 = vmatpush1.msra.mxu0 0.0
    %1265 = vmatprep.subr.mxu0 0.0
    %1266 = vmatpush1.msra.mxu0 0.0
    %1267 = vmatprep.subr.mxu0 0.0
    %1268 = vmatpush1.msra.mxu0 0.0
    %1269 = vmatprep.subr.mxu0 0.0
    %1270 = vmatpush1.msra.mxu0 0.0
    %1271 = vmatprep.mubr.f32.mxu0 0.0
    %1272 = vmatmul.mubr.f32.gmra.mrb[0].mxu0 %v894
    %v1273 = vpop.f32.mrb[0].mxu0
    %v1274 = vadd.f32 0.0, %v1273
    %v1275 = vpop.f32.mrb[0].mxu0
    %v1276 = vadd.f32 0.0, %v1275
    %1277 = vdwg.mxu0
    %1278 = vmatprep.subr.mxu0 %v76
    %1279 = vmatpush1.msra.mxu0 %v75
    %1280 = vmatprep.subr.mxu0 %v80
    %1281 = vmatpush1.msra.mxu0 %v79
    %1282 = vmatprep.subr.mxu0 %v84
    %1283 = vmatpush1.msra.mxu0 %v83
    %1284 = vmatprep.subr.mxu0 %v88
    %1285 = vmatpush1.msra.mxu0 %v87
    %1286 = vmatprep.subr.mxu0 %v92
    %1287 = vmatpush1.msra.mxu0 %v91
    %1288 = vmatprep.subr.mxu0 %v96
    %1289 = vmatpush1.msra.mxu0 %v95
    %1290 = vmatprep.subr.mxu0 %v100
    %1291 = vmatpush1.msra.mxu0 %v99
    %1292 = vmatprep.subr.mxu0 %v104
    %1293 = vmatpush1.msra.mxu0 %v103
    %1294 = vmatprep.subr.mxu0 %v108
    %1295 = vmatpush1.msra.mxu0 %v107
    %1296 = vmatprep.subr.mxu0 %v112
    %1297 = vmatpush1.msra.mxu0 %v111
    %1298 = vmatprep.subr.mxu0 %v116
    %1299 = vmatpush1.msra.mxu0 %v115
    %1300 = vmatprep.subr.mxu0 %v120
    %1301 = vmatpush1.msra.mxu0 %v119
    %1302 = vmatprep.subr.mxu0 %v124
    %1303 = vmatpush1.msra.mxu0 %v123
    %1304 = vmatprep.subr.mxu0 %v128
    %1305 = vmatpush1.msra.mxu0 %v127
    %1306 = vmatprep.subr.mxu0 %v132
    %1307 = vmatpush1.msra.mxu0 %v131
    %1308 = vmatprep.subr.mxu0 %v136
    %1309 = vmatpush1.msra.mxu0 %v135
    %1310 = vmatprep.subr.mxu0 0.0
    %1311 = vmatpush1.msra.mxu0 0.0
    %1312 = vmatprep.subr.mxu0 0.0
    %1313 = vmatpush1.msra.mxu0 0.0
    %1314 = vmatprep.subr.mxu0 0.0
    %1315 = vmatpush1.msra.mxu0 0.0
    %1316 = vmatprep.subr.mxu0 0.0
    %1317 = vmatpush1.msra.mxu0 0.0
    %1318 = vmatprep.subr.mxu0 0.0
    %1319 = vmatpush1.msra.mxu0 0.0
    %1320 = vmatprep.subr.mxu0 0.0
    %1321 = vmatpush1.msra.mxu0 0.0
    %1322 = vmatprep.subr.mxu0 0.0
    %1323 = vmatpush1.msra.mxu0 0.0
    %1324 = vmatprep.subr.mxu0 0.0
    %1325 = vmatpush1.msra.mxu0 0.0
    %1326 = vmatprep.subr.mxu0 0.0
    %1327 = vmatpush1.msra.mxu0 0.0
    %1328 = vmatprep.subr.mxu0 0.0
    %1329 = vmatpush1.msra.mxu0 0.0
    %1330 = vmatprep.subr.mxu0 0.0
    %1331 = vmatpush1.msra.mxu0 0.0
    %1332 = vmatprep.subr.mxu0 0.0
    %1333 = vmatpush1.msra.mxu0 0.0
    %1334 = vmatprep.subr.mxu0 0.0
    %1335 = vmatpush1.msra.mxu0 0.0
    %1336 = vmatprep.subr.mxu0 0.0
    %1337 = vmatpush1.msra.mxu0 0.0
    %1338 = vmatprep.subr.mxu0 0.0
    %1339 = vmatpush1.msra.mxu0 0.0
    %1340 = vmatprep.subr.mxu0 0.0
    %1341 = vmatpush1.msra.mxu0 0.0
    %1342 = vmatprep.mubr.f32.mxu0 0.0
    %1343 = vmatmul.mubr.f32.gmra.mrb[0].mxu0 %v894
    %v1344 = vpop.f32.mrb[0].mxu0
    %v1345 = vadd.f32 0.0, %v1344
    %v1346 = vpop.f32.mrb[0].mxu0
    %v1347 = vadd.f32 0.0, %v1346
    %1348 = vdwg.mxu0
    %v1349 = vadd.f32 %v430, %v1274
    %v1350 = vadd.f32 %v432, %v1276
    %v1351 = vadd.f32 %v543, %v1345
    %v1352 = vadd.f32 %v545, %v1347
    %v1353 = vxor.u32 %v1349, 2147483648
    %v1354 = vxor.u32 %v1350, 2147483648
    %v1355 = vxor.u32 %v1351, 2147483648
    %v1356 = vmul.f32 %v1353, 1.442695
    %v1357 = vpow.pop %v1356
    %v1358 = vmul.f32 %v1354, 1.442695
    %v1359 = vpow.pop %v1358
    %v1360 = vmul.f32 %v1355, 1.442695
    %v1361 = vpow.pop %v1360
    %v1362 = vadd.f32 %v1357, 1.0
    %v1363 = vadd.f32 %v1359, 1.0
    %v1364 = vadd.f32 %v1361, 1.0
    %v1365 = vrcp.pop %v1362
    %v1366 = vmul.f32 1.0, %v1365
    %v1367 = vrcp.pop %v1363
    %v1368 = vmul.f32 1.0, %v1367
    %v1369 = vrcp.pop %v1364
    %v1370 = vmul.f32 1.0, %v1369
    %v1371 = vtanh.pop %v1352
    %v1372 = vmul.f32 %v1368, %v892
    %v1373 = vmul.f32 %v1366, %v1371
    %v1374 = vadd.f32 %v1372, %v1373
    %v1375 = vtanh.pop %v1374
    %v1376 = vmul.f32 %v1370, %v1375
    %1377 = vmatprep.subr.mxu0 %v138
    %1378 = vmatpush1.msra.mxu0 %v137
    %1379 = vmatprep.subr.mxu0 %v142
    %1380 = vmatpush1.msra.mxu0 %v141
    %1381 = vmatprep.subr.mxu0 %v146
    %1382 = vmatpush1.msra.mxu0 %v145
    %1383 = vmatprep.subr.mxu0 %v150
    %1384 = vmatpush1.msra.mxu0 %v149
    %1385 = vmatprep.subr.mxu0 %v154
    %1386 = vmatpush1.msra.mxu0 %v153
    %1387 = vmatprep.subr.mxu0 %v158
    %1388 = vmatpush1.msra.mxu0 %v157
    %1389 = vmatprep.subr.mxu0 %v162
    %1390 = vmatpush1.msra.mxu0 %v161
    %1391 = vmatprep.subr.mxu0 %v166
    %1392 = vmatpush1.msra.mxu0 %v165
    %1393 = vmatprep.subr.mxu0 %v170
    %1394 = vmatpush1.msra.mxu0 %v169
    %1395 = vmatprep.subr.mxu0 %v174
    %1396 = vmatpush1.msra.mxu0 %v173
    %1397 = vmatprep.subr.mxu0 %v178
    %1398 = vmatpush1.msra.mxu0 %v177
    %1399 = vmatprep.subr.mxu0 %v182
    %1400 = vmatpush1.msra.mxu0 %v181
    %1401 = vmatprep.subr.mxu0 %v186
    %1402 = vmatpush1.msra.mxu0 %v185
    %1403 = vmatprep.subr.mxu0 %v190
    %1404 = vmatpush1.msra.mxu0 %v189
    %1405 = vmatprep.subr.mxu0 %v194
    %1406 = vmatpush1.msra.mxu0 %v193
    %1407 = vmatprep.subr.mxu0 %v198
    %1408 = vmatpush1.msra.mxu0 %v197
    %1409 = vmatprep.subr.mxu0 0.0
    %1410 = vmatpush1.msra.mxu0 0.0
    %1411 = vmatprep.subr.mxu0 0.0
    %1412 = vmatpush1.msra.mxu0 0.0
    %1413 = vmatprep.subr.mxu0 0.0
    %1414 = vmatpush1.msra.mxu0 0.0
    %1415 = vmatprep.subr.mxu0 0.0
    %1416 = vmatpush1.msra.mxu0 0.0
    %1417 = vmatprep.subr.mxu0 0.0
    %1418 = vmatpush1.msra.mxu0 0.0
    %1419 = vmatprep.subr.mxu0 0.0
    %1420 = vmatpush1.msra.mxu0 0.0
    %1421 = vmatprep.subr.mxu0 0.0
    %1422 = vmatpush1.msra.mxu0 0.0
    %1423 = vmatprep.subr.mxu0 0.0
    %1424 = vmatpush1.msra.mxu0 0.0
    %1425 = vmatprep.subr.mxu0 0.0
    %1426 = vmatpush1.msra.mxu0 0.0
    %1427 = vmatprep.subr.mxu0 0.0
    %1428 = vmatpush1.msra.mxu0 0.0
    %1429 = vmatprep.subr.mxu0 0.0
    %1430 = vmatpush1.msra.mxu0 0.0
    %1431 = vmatprep.subr.mxu0 0.0
    %1432 = vmatpush1.msra.mxu0 0.0
    %1433 = vmatprep.subr.mxu0 0.0
    %1434 = vmatpush1.msra.mxu0 0.0
    %1435 = vmatprep.subr.mxu0 0.0
    %1436 = vmatpush1.msra.mxu0 0.0
    %1437 = vmatprep.subr.mxu0 0.0
    %1438 = vmatpush1.msra.mxu0 0.0
    %1439 = vmatprep.subr.mxu0 0.0
    %1440 = vmatpush1.msra.mxu0 0.0
    %1441 = vmatprep.mubr.f32.mxu0 0.0
    %1442 = vmatmul.mubr.f32.gmra.mrb[0].mxu0 %v1376
    %v1443 = vpop.f32.mrb[0].mxu0
    %v1444 = vadd.f32 %v1132, %v1443
    %v1445 = vpop.f32.mrb[0].mxu0
    %v1446 = vadd.f32 %v1134, %v1445
    %1447 = vdwg.mxu0
    %1448 = vmatprep.subr.mxu0 %v140
    %1449 = vmatpush1.msra.mxu0 %v139
    %1450 = vmatprep.subr.mxu0 %v144
    %1451 = vmatpush1.msra.mxu0 %v143
    %1452 = vmatprep.subr.mxu0 %v148
    %1453 = vmatpush1.msra.mxu0 %v147
    %1454 = vmatprep.subr.mxu0 %v152
    %1455 = vmatpush1.msra.mxu0 %v151
    %1456 = vmatprep.subr.mxu0 %v156
    %1457 = vmatpush1.msra.mxu0 %v155
    %1458 = vmatprep.subr.mxu0 %v160
    %1459 = vmatpush1.msra.mxu0 %v159
    %1460 = vmatprep.subr.mxu0 %v164
    %1461 = vmatpush1.msra.mxu0 %v163
    %1462 = vmatprep.subr.mxu0 %v168
    %1463 = vmatpush1.msra.mxu0 %v167
    %1464 = vmatprep.subr.mxu0 %v172
    %1465 = vmatpush1.msra.mxu0 %v171
    %1466 = vmatprep.subr.mxu0 %v176
    %1467 = vmatpush1.msra.mxu0 %v175
    %1468 = vmatprep.subr.mxu0 %v180
    %1469 = vmatpush1.msra.mxu0 %v179
    %1470 = vmatprep.subr.mxu0 %v184
    %1471 = vmatpush1.msra.mxu0 %v183
    %1472 = vmatprep.subr.mxu0 %v188
    %1473 = vmatpush1.msra.mxu0 %v187
    %1474 = vmatprep.subr.mxu0 %v192
    %1475 = vmatpush1.msra.mxu0 %v191
    %1476 = vmatprep.subr.mxu0 %v196
    %1477 = vmatpush1.msra.mxu0 %v195
    %1478 = vmatprep.subr.mxu0 %v200
    %1479 = vmatpush1.msra.mxu0 %v199
    %1480 = vmatprep.subr.mxu0 0.0
    %1481 = vmatpush1.msra.mxu0 0.0
    %1482 = vmatprep.subr.mxu0 0.0
    %1483 = vmatpush1.msra.mxu0 0.0
    %1484 = vmatprep.subr.mxu0 0.0
    %1485 = vmatpush1.msra.mxu0 0.0
    %1486 = vmatprep.subr.mxu0 0.0
    %1487 = vmatpush1.msra.mxu0 0.0
    %1488 = vmatprep.subr.mxu0 0.0
    %1489 = vmatpush1.msra.mxu0 0.0
    %1490 = vmatprep.subr.mxu0 0.0
    %1491 = vmatpush1.msra.mxu0 0.0
    %1492 = vmatprep.subr.mxu0 0.0
    %1493 = vmatpush1.msra.mxu0 0.0
    %1494 = vmatprep.subr.mxu0 0.0
    %1495 = vmatpush1.msra.mxu0 0.0
    %1496 = vmatprep.subr.mxu0 0.0
    %1497 = vmatpush1.msra.mxu0 0.0
    %1498 = vmatprep.subr.mxu0 0.0
    %1499 = vmatpush1.msra.mxu0 0.0
    %1500 = vmatprep.subr.mxu0 0.0
    %1501 = vmatpush1.msra.mxu0 0.0
    %1502 = vmatprep.subr.mxu0 0.0
    %1503 = vmatpush1.msra.mxu0 0.0
    %1504 = vmatprep.subr.mxu0 0.0
    %1505 = vmatpush1.msra.mxu0 0.0
    %1506 = vmatprep.subr.mxu0 0.0
    %1507 = vmatpush1.msra.mxu0 0.0
    %1508 = vmatprep.subr.mxu0 0.0
    %1509 = vmatpush1.msra.mxu0 0.0
    %1510 = vmatprep.subr.mxu0 0.0
    %1511 = vmatpush1.msra.mxu0 0.0
    %1512 = vmatprep.mubr.f32.mxu0 0.0
    %1513 = vmatmul.mubr.f32.gmra.mrb[0].mxu0 %v1376
    %v1514 = vpop.f32.mrb[0].mxu0
    %v1515 = vadd.f32 %v1203, %v1514
    %v1516 = vpop.f32.mrb[0].mxu0
    %v1517 = vadd.f32 %v1205, %v1516
    %1518 = vdwg.mxu0
    %v1519 = vadd.f32 %v1444, %v270
    %v1520 = vadd.f32 %v1446, %v274
    %v1521 = vadd.f32 %v1515, %v278
    %v1522 = vadd.f32 %v1517, %v282
    %v1523 = vxor.u32 %v1519, 2147483648
    %v1524 = vxor.u32 %v1520, 2147483648
    %v1525 = vxor.u32 %v1521, 2147483648
    %v1526 = vmul.f32 %v1523, 1.442695
    %v1527 = vpow.pop %v1526
    %v1528 = vmul.f32 %v1524, 1.442695
    %v1529 = vpow.pop %v1528
    %v1530 = vmul.f32 %v1525, 1.442695
    %v1531 = vpow.pop %v1530
    %v1532 = vadd.f32 %v1527, 1.0
    %v1533 = vadd.f32 %v1529, 1.0
    %v1534 = vadd.f32 %v1531, 1.0
    %v1535 = vrcp.pop %v1532
    %v1536 = vmul.f32 1.0, %v1535
    %v1537 = vrcp.pop %v1533
    %v1538 = vmul.f32 1.0, %v1537
    %v1539 = vrcp.pop %v1534
    %v1540 = vmul.f32 1.0, %v1539
    %v1541 = vtanh.pop %v1522
    %v1542 = vmul.f32 %v1538, %v1062
    %v1543 = vmul.f32 %v1536, %v1541
    %v1544 = vadd.f32 %v1542, %v1543
    %v1545 = vtanh.pop %v1544
    %v1546 = vmul.f32 %v1540, %v1545
    %1547 = vmatprep.subr.mxu0 %v202
    %1548 = vmatpush1.msra.mxu0 %v201
    %1549 = vmatprep.subr.mxu0 %v206
    %1550 = vmatpush1.msra.mxu0 %v205
    %1551 = vmatprep.subr.mxu0 %v210
    %1552 = vmatpush1.msra.mxu0 %v209
    %1553 = vmatprep.subr.mxu0 %v214
    %1554 = vmatpush1.msra.mxu0 %v213
    %1555 = vmatprep.subr.mxu0 %v218
    %1556 = vmatpush1.msra.mxu0 %v217
    %1557 = vmatprep.subr.mxu0 %v222
    %1558 = vmatpush1.msra.mxu0 %v221
    %1559 = vmatprep.subr.mxu0 %v226
    %1560 = vmatpush1.msra.mxu0 %v225
    %1561 = vmatprep.subr.mxu0 %v230
    %1562 = vmatpush1.msra.mxu0 %v229
    %1563 = vmatprep.subr.mxu0 %v234
    %1564 = vmatpush1.msra.mxu0 %v233
    %1565 = vmatprep.subr.mxu0 %v238
    %1566 = vmatpush1.msra.mxu0 %v237
    %1567 = vmatprep.subr.mxu0 %v242
    %1568 = vmatpush1.msra.mxu0 %v241
    %1569 = vmatprep.subr.mxu0 %v246
    %1570 = vmatpush1.msra.mxu0 %v245
    %1571 = vmatprep.subr.mxu0 %v250
    %1572 = vmatpush1.msra.mxu0 %v249
    %1573 = vmatprep.subr.mxu0 %v254
    %1574 = vmatpush1.msra.mxu0 %v253
    %1575 = vmatprep.subr.mxu0 %v258
    %1576 = vmatpush1.msra.mxu0 %v257
    %1577 = vmatprep.subr.mxu0 %v262
    %1578 = vmatpush1.msra.mxu0 %v261
    %1579 = vmatprep.subr.mxu0 0.0
    %1580 = vmatpush1.msra.mxu0 0.0
    %1581 = vmatprep.subr.mxu0 0.0
    %1582 = vmatpush1.msra.mxu0 0.0
    %1583 = vmatprep.subr.mxu0 0.0
    %1584 = vmatpush1.msra.mxu0 0.0
    %1585 = vmatprep.subr.mxu0 0.0
    %1586 = vmatpush1.msra.mxu0 0.0
    %1587 = vmatprep.subr.mxu0 0.0
    %1588 = vmatpush1.msra.mxu0 0.0
    %1589 = vmatprep.subr.mxu0 0.0
    %1590 = vmatpush1.msra.mxu0 0.0
    %1591 = vmatprep.subr.mxu0 0.0
    %1592 = vmatpush1.msra.mxu0 0.0
    %1593 = vmatprep.subr.mxu0 0.0
    %1594 = vmatpush1.msra.mxu0 0.0
    %1595 = vmatprep.subr.mxu0 0.0
    %1596 = vmatpush1.msra.mxu0 0.0
    %1597 = vmatprep.subr.mxu0 0.0
    %1598 = vmatpush1.msra.mxu0 0.0
    %1599 = vmatprep.subr.mxu0 0.0
    %1600 = vmatpush1.msra.mxu0 0.0
    %1601 = vmatprep.subr.mxu0 0.0
    %1602 = vmatpush1.msra.mxu0 0.0
    %1603 = vmatprep.subr.mxu0 0.0
    %1604 = vmatpush1.msra.mxu0 0.0
    %1605 = vmatprep.subr.mxu0 0.0
    %1606 = vmatpush1.msra.mxu0 0.0
    %1607 = vmatprep.subr.mxu0 0.0
    %1608 = vmatpush1.msra.mxu0 0.0
    %1609 = vmatprep.subr.mxu0 0.0
    %1610 = vmatpush1.msra.mxu0 0.0
    %1611 = vmatprep.mubr.f32.mxu0 0.0
    %1612 = vmatmul.mubr.f32.gmra.mrb[0].mxu0 %v1546
    %v1613 = vpop.f32.mrb[0].mxu0
    %v1614 = vadd.f32 0.0, %v1613
    %v1615 = vpop.f32.mrb[0].mxu0
    %v1616 = vadd.f32 0.0, %v1615
    %1617 = vdwg.mxu0
    %1618 = vmatprep.subr.mxu0 %v204
    %1619 = vmatpush1.msra.mxu0 %v203
    %1620 = vmatprep.subr.mxu0 %v208
    %1621 = vmatpush1.msra.mxu0 %v207
    %1622 = vmatprep.subr.mxu0 %v212
    %1623 = vmatpush1.msra.mxu0 %v211
    %1624 = vmatprep.subr.mxu0 %v216
    %1625 = vmatpush1.msra.mxu0 %v215
    %1626 = vmatprep.subr.mxu0 %v220
    %1627 = vmatpush1.msra.mxu0 %v219
    %1628 = vmatprep.subr.mxu0 %v224
    %1629 = vmatpush1.msra.mxu0 %v223
    %1630 = vmatprep.subr.mxu0 %v228
    %1631 = vmatpush1.msra.mxu0 %v227
    %1632 = vmatprep.subr.mxu0 %v232
    %1633 = vmatpush1.msra.mxu0 %v231
    %1634 = vmatprep.subr.mxu0 %v236
    %1635 = vmatpush1.msra.mxu0 %v235
    %1636 = vmatprep.subr.mxu0 %v240
    %1637 = vmatpush1.msra.mxu0 %v239
    %1638 = vmatprep.subr.mxu0 %v244
    %1639 = vmatpush1.msra.mxu0 %v243
    %1640 = vmatprep.subr.mxu0 %v248
    %1641 = vmatpush1.msra.mxu0 %v247
    %1642 = vmatprep.subr.mxu0 %v252
    %1643 = vmatpush1.msra.mxu0 %v251
    %1644 = vmatprep.subr.mxu0 %v256
    %1645 = vmatpush1.msra.mxu0 %v255
    %1646 = vmatprep.subr.mxu0 %v260
    %1647 = vmatpush1.msra.mxu0 %v259
    %1648 = vmatprep.subr.mxu0 %v264
    %1649 = vmatpush1.msra.mxu0 %v263
    %1650 = vmatprep.subr.mxu0 0.0
    %1651 = vmatpush1.msra.mxu0 0.0
    %1652 = vmatprep.subr.mxu0 0.0
    %1653 = vmatpush1.msra.mxu0 0.0
    %1654 = vmatprep.subr.mxu0 0.0
    %1655 = vmatpush1.msra.mxu0 0.0
    %1656 = vmatprep.subr.mxu0 0.0
    %1657 = vmatpush1.msra.mxu0 0.0
    %1658 = vmatprep.subr.mxu0 0.0
    %1659 = vmatpush1.msra.mxu0 0.0
    %1660 = vmatprep.subr.mxu0 0.0
    %1661 = vmatpush1.msra.mxu0 0.0
    %1662 = vmatprep.subr.mxu0 0.0
    %1663 = vmatpush1.msra.mxu0 0.0
    %1664 = vmatprep.subr.mxu0 0.0
    %1665 = vmatpush1.msra.mxu0 0.0
    %1666 = vmatprep.subr.mxu0 0.0
    %1667 = vmatpush1.msra.mxu0 0.0
    %1668 = vmatprep.subr.mxu0 0.0
    %1669 = vmatpush1.msra.mxu0 0.0
    %1670 = vmatprep.subr.mxu0 0.0
    %1671 = vmatpush1.msra.mxu0 0.0
    %1672 = vmatprep.subr.mxu0 0.0
    %1673 = vmatpush1.msra.mxu0 0.0
    %1674 = vmatprep.subr.mxu0 0.0
    %1675 = vmatpush1.msra.mxu0 0.0
    %1676 = vmatprep.subr.mxu0 0.0
    %1677 = vmatpush1.msra.mxu0 0.0
    %1678 = vmatprep.subr.mxu0 0.0
    %1679 = vmatpush1.msra.mxu0 0.0
    %1680 = vmatprep.subr.mxu0 0.0
    %1681 = vmatpush1.msra.mxu0 0.0
    %1682 = vmatprep.mubr.f32.mxu0 0.0
    %1683 = vmatmul.mubr.f32.gmra.mrb[0].mxu0 %v1546
    %v1684 = vpop.f32.mrb[0].mxu0
    %v1685 = vadd.f32 0.0, %v1684
    %v1686 = vpop.f32.mrb[0].mxu0
    %v1687 = vadd.f32 0.0, %v1686
    %1688 = vdwg.mxu0
    %1689 = vmatprep.subr.mxu0 %v74
    %1690 = vmatpush1.msra.mxu0 %v73
    %1691 = vmatprep.subr.mxu0 %v78
    %1692 = vmatpush1.msra.mxu0 %v77
    %1693 = vmatprep.subr.mxu0 %v82
    %1694 = vmatpush1.msra.mxu0 %v81
    %1695 = vmatprep.subr.mxu0 %v86
    %1696 = vmatpush1.msra.mxu0 %v85
    %1697 = vmatprep.subr.mxu0 %v90
    %1698 = vmatpush1.msra.mxu0 %v89
    %1699 = vmatprep.subr.mxu0 %v94
    %1700 = vmatpush1.msra.mxu0 %v93
    %1701 = vmatprep.subr.mxu0 %v98
    %1702 = vmatpush1.msra.mxu0 %v97
    %1703 = vmatprep.subr.mxu0 %v102
    %1704 = vmatpush1.msra.mxu0 %v101
    %1705 = vmatprep.subr.mxu0 %v106
    %1706 = vmatpush1.msra.mxu0 %v105
    %1707 = vmatprep.subr.mxu0 %v110
    %1708 = vmatpush1.msra.mxu0 %v109
    %1709 = vmatprep.subr.mxu0 %v114
    %1710 = vmatpush1.msra.mxu0 %v113
    %1711 = vmatprep.subr.mxu0 %v118
    %1712 = vmatpush1.msra.mxu0 %v117
    %1713 = vmatprep.subr.mxu0 %v122
    %1714 = vmatpush1.msra.mxu0 %v121
    %1715 = vmatprep.subr.mxu0 %v126
    %1716 = vmatpush1.msra.mxu0 %v125
    %1717 = vmatprep.subr.mxu0 %v130
    %1718 = vmatpush1.msra.mxu0 %v129
    %1719 = vmatprep.subr.mxu0 %v134
    %1720 = vmatpush1.msra.mxu0 %v133
    %1721 = vmatprep.subr.mxu0 0.0
    %1722 = vmatpush1.msra.mxu0 0.0
    %1723 = vmatprep.subr.mxu0 0.0
    %1724 = vmatpush1.msra.mxu0 0.0
    %1725 = vmatprep.subr.mxu0 0.0
    %1726 = vmatpush1.msra.mxu0 0.0
    %1727 = vmatprep.subr.mxu0 0.0
    %1728 = vmatpush1.msra.mxu0 0.0
    %1729 = vmatprep.subr.mxu0 0.0
    %1730 = vmatpush1.msra.mxu0 0.0
    %1731 = vmatprep.subr.mxu0 0.0
    %1732 = vmatpush1.msra.mxu0 0.0
    %1733 = vmatprep.subr.mxu0 0.0
    %1734 = vmatpush1.msra.mxu0 0.0
    %1735 = vmatprep.subr.mxu0 0.0
    %1736 = vmatpush1.msra.mxu0 0.0
    %1737 = vmatprep.subr.mxu0 0.0
    %1738 = vmatpush1.msra.mxu0 0.0
    %1739 = vmatprep.subr.mxu0 0.0
    %1740 = vmatpush1.msra.mxu0 0.0
    %1741 = vmatprep.subr.mxu0 0.0
    %1742 = vmatpush1.msra.mxu0 0.0
    %1743 = vmatprep.subr.mxu0 0.0
    %1744 = vmatpush1.msra.mxu0 0.0
    %1745 = vmatprep.subr.mxu0 0.0
    %1746 = vmatpush1.msra.mxu0 0.0
    %1747 = vmatprep.subr.mxu0 0.0
    %1748 = vmatpush1.msra.mxu0 0.0
    %1749 = vmatprep.subr.mxu0 0.0
    %1750 = vmatpush1.msra.mxu0 0.0
    %1751 = vmatprep.subr.mxu0 0.0
    %1752 = vmatpush1.msra.mxu0 0.0
    %1753 = vmatprep.mubr.f32.mxu0 0.0
    %1754 = vmatmul.mubr.f32.gmra.mrb[0].mxu0 %v1376
    %v1755 = vpop.f32.mrb[0].mxu0
    %v1756 = vadd.f32 0.0, %v1755
    %v1757 = vpop.f32.mrb[0].mxu0
    %v1758 = vadd.f32 0.0, %v1757
    %1759 = vdwg.mxu0
    %1760 = vmatprep.subr.mxu0 %v76
    %1761 = vmatpush1.msra.mxu0 %v75
    %1762 = vmatprep.subr.mxu0 %v80
    %1763 = vmatpush1.msra.mxu0 %v79
    %1764 = vmatprep.subr.mxu0 %v84
    %1765 = vmatpush1.msra.mxu0 %v83
    %1766 = vmatprep.subr.mxu0 %v88
    %1767 = vmatpush1.msra.mxu0 %v87
    %1768 = vmatprep.subr.mxu0 %v92
    %1769 = vmatpush1.msra.mxu0 %v91
    %1770 = vmatprep.subr.mxu0 %v96
    %1771 = vmatpush1.msra.mxu0 %v95
    %1772 = vmatprep.subr.mxu0 %v100
    %1773 = vmatpush1.msra.mxu0 %v99
    %1774 = vmatprep.subr.mxu0 %v104
    %1775 = vmatpush1.msra.mxu0 %v103
    %1776 = vmatprep.subr.mxu0 %v108
    %1777 = vmatpush1.msra.mxu0 %v107
    %1778 = vmatprep.subr.mxu0 %v112
    %1779 = vmatpush1.msra.mxu0 %v111
    %1780 = vmatprep.subr.mxu0 %v116
    %1781 = vmatpush1.msra.mxu0 %v115
    %1782 = vmatprep.subr.mxu0 %v120
    %1783 = vmatpush1.msra.mxu0 %v119
    %1784 = vmatprep.subr.mxu0 %v124
    %1785 = vmatpush1.msra.mxu0 %v123
    %1786 = vmatprep.subr.mxu0 %v128
    %1787 = vmatpush1.msra.mxu0 %v127
    %1788 = vmatprep.subr.mxu0 %v132
    %1789 = vmatpush1.msra.mxu0 %v131
    %1790 = vmatprep.subr.mxu0 %v136
    %1791 = vmatpush1.msra.mxu0 %v135
    %1792 = vmatprep.subr.mxu0 0.0
    %1793 = vmatpush1.msra.mxu0 0.0
    %1794 = vmatprep.subr.mxu0 0.0
    %1795 = vmatpush1.msra.mxu0 0.0
    %1796 = vmatprep.subr.mxu0 0.0
    %1797 = vmatpush1.msra.mxu0 0.0
    %1798 = vmatprep.subr.mxu0 0.0
    %1799 = vmatpush1.msra.mxu0 0.0
    %1800 = vmatprep.subr.mxu0 0.0
    %1801 = vmatpush1.msra.mxu0 0.0
    %1802 = vmatprep.subr.mxu0 0.0
    %1803 = vmatpush1.msra.mxu0 0.0
    %1804 = vmatprep.subr.mxu0 0.0
    %1805 = vmatpush1.msra.mxu0 0.0
    %1806 = vmatprep.subr.mxu0 0.0
    %1807 = vmatpush1.msra.mxu0 0.0
    %1808 = vmatprep.subr.mxu0 0.0
    %1809 = vmatpush1.msra.mxu0 0.0
    %1810 = vmatprep.subr.mxu0 0.0
    %1811 = vmatpush1.msra.mxu0 0.0
    %1812 = vmatprep.subr.mxu0 0.0
    %1813 = vmatpush1.msra.mxu0 0.0
    %1814 = vmatprep.subr.mxu0 0.0
    %1815 = vmatpush1.msra.mxu0 0.0
    %1816 = vmatprep.subr.mxu0 0.0
    %1817 = vmatpush1.msra.mxu0 0.0
    %1818 = vmatprep.subr.mxu0 0.0
    %1819 = vmatpush1.msra.mxu0 0.0
    %1820 = vmatprep.subr.mxu0 0.0
    %1821 = vmatpush1.msra.mxu0 0.0
    %1822 = vmatprep.subr.mxu0 0.0
    %1823 = vmatpush1.msra.mxu0 0.0
    %1824 = vmatprep.mubr.f32.mxu0 0.0
    %1825 = vmatmul.mubr.f32.gmra.mrb[0].mxu0 %v1376
    %v1826 = vpop.f32.mrb[0].mxu0
    %v1827 = vadd.f32 0.0, %v1826
    %v1828 = vpop.f32.mrb[0].mxu0
    %v1829 = vadd.f32 0.0, %v1828
    %1830 = vdwg.mxu0
    %v1831 = vadd.f32 %v436, %v1756
    %v1832 = vadd.f32 %v438, %v1758
    %v1833 = vadd.f32 %v549, %v1827
    %v1834 = vadd.f32 %v551, %v1829
    %v1835 = vxor.u32 %v1831, 2147483648
    %v1836 = vxor.u32 %v1832, 2147483648
    %v1837 = vxor.u32 %v1833, 2147483648
    %v1838 = vmul.f32 %v1835, 1.442695
    %v1839 = vpow.pop %v1838
    %v1840 = vmul.f32 %v1836, 1.442695
    %v1841 = vpow.pop %v1840
    %v1842 = vmul.f32 %v1837, 1.442695
    %v1843 = vpow.pop %v1842
    %v1844 = vadd.f32 %v1839, 1.0
    %v1845 = vadd.f32 %v1841, 1.0
    %v1846 = vadd.f32 %v1843, 1.0
    %v1847 = vrcp.pop %v1844
    %v1848 = vmul.f32 1.0, %v1847
    %v1849 = vrcp.pop %v1845
    %v1850 = vmul.f32 1.0, %v1849
    %v1851 = vrcp.pop %v1846
    %v1852 = vmul.f32 1.0, %v1851
    %v1853 = vtanh.pop %v1834
    %v1854 = vmul.f32 %v1850, %v1374
    %v1855 = vmul.f32 %v1848, %v1853
    %v1856 = vadd.f32 %v1854, %v1855
    %v1857 = vtanh.pop %v1856
    %v1858 = vmul.f32 %v1852, %v1857
    %1859 = vmatprep.subr.mxu0 %v138
    %1860 = vmatpush1.msra.mxu0 %v137
    %1861 = vmatprep.subr.mxu0 %v142
    %1862 = vmatpush1.msra.mxu0 %v141
    %1863 = vmatprep.subr.mxu0 %v146
    %1864 = vmatpush1.msra.mxu0 %v145
    %1865 = vmatprep.subr.mxu0 %v150
    %1866 = vmatpush1.msra.mxu0 %v149
    %1867 = vmatprep.subr.mxu0 %v154
    %1868 = vmatpush1.msra.mxu0 %v153
    %1869 = vmatprep.subr.mxu0 %v158
    %1870 = vmatpush1.msra.mxu0 %v157
    %1871 = vmatprep.subr.mxu0 %v162
    %1872 = vmatpush1.msra.mxu0 %v161
    %1873 = vmatprep.subr.mxu0 %v166
    %1874 = vmatpush1.msra.mxu0 %v165
    %1875 = vmatprep.subr.mxu0 %v170
    %1876 = vmatpush1.msra.mxu0 %v169
    %1877 = vmatprep.subr.mxu0 %v174
    %1878 = vmatpush1.msra.mxu0 %v173
    %1879 = vmatprep.subr.mxu0 %v178
    %1880 = vmatpush1.msra.mxu0 %v177
    %1881 = vmatprep.subr.mxu0 %v182
    %1882 = vmatpush1.msra.mxu0 %v181
    %1883 = vmatprep.subr.mxu0 %v186
    %1884 = vmatpush1.msra.mxu0 %v185
    %1885 = vmatprep.subr.mxu0 %v190
    %1886 = vmatpush1.msra.mxu0 %v189
    %1887 = vmatprep.subr.mxu0 %v194
    %1888 = vmatpush1.msra.mxu0 %v193
    %1889 = vmatprep.subr.mxu0 %v198
    %1890 = vmatpush1.msra.mxu0 %v197
    %1891 = vmatprep.subr.mxu0 0.0
    %1892 = vmatpush1.msra.mxu0 0.0
    %1893 = vmatprep.subr.mxu0 0.0
    %1894 = vmatpush1.msra.mxu0 0.0
    %1895 = vmatprep.subr.mxu0 0.0
    %1896 = vmatpush1.msra.mxu0 0.0
    %1897 = vmatprep.subr.mxu0 0.0
    %1898 = vmatpush1.msra.mxu0 0.0
    %1899 = vmatprep.subr.mxu0 0.0
    %1900 = vmatpush1.msra.mxu0 0.0
    %1901 = vmatprep.subr.mxu0 0.0
    %1902 = vmatpush1.msra.mxu0 0.0
    %1903 = vmatprep.subr.mxu0 0.0
    %1904 = vmatpush1.msra.mxu0 0.0
    %1905 = vmatprep.subr.mxu0 0.0
    %1906 = vmatpush1.msra.mxu0 0.0
    %1907 = vmatprep.subr.mxu0 0.0
    %1908 = vmatpush1.msra.mxu0 0.0
    %1909 = vmatprep.subr.mxu0 0.0
    %1910 = vmatpush1.msra.mxu0 0.0
    %1911 = vmatprep.subr.mxu0 0.0
    %1912 = vmatpush1.msra.mxu0 0.0
    %1913 = vmatprep.subr.mxu0 0.0
    %1914 = vmatpush1.msra.mxu0 0.0
    %1915 = vmatprep.subr.mxu0 0.0
    %1916 = vmatpush1.msra.mxu0 0.0
    %1917 = vmatprep.subr.mxu0 0.0
    %1918 = vmatpush1.msra.mxu0 0.0
    %1919 = vmatprep.subr.mxu0 0.0
    %1920 = vmatpush1.msra.mxu0 0.0
    %1921 = vmatprep.subr.mxu0 0.0
    %1922 = vmatpush1.msra.mxu0 0.0
    %1923 = vmatprep.mubr.f32.mxu0 0.0
    %1924 = vmatmul.mubr.f32.gmra.mrb[0].mxu0 %v1858
    %v1925 = vpop.f32.mrb[0].mxu0
    %v1926 = vadd.f32 %v1614, %v1925
    %v1927 = vpop.f32.mrb[0].mxu0
    %v1928 = vadd.f32 %v1616, %v1927
    %1929 = vdwg.mxu0
    %1930 = vmatprep.subr.mxu0 %v140
    %1931 = vmatpush1.msra.mxu0 %v139
    %1932 = vmatprep.subr.mxu0 %v144
    %1933 = vmatpush1.msra.mxu0 %v143
    %1934 = vmatprep.subr.mxu0 %v148
    %1935 = vmatpush1.msra.mxu0 %v147
    %1936 = vmatprep.subr.mxu0 %v152
    %1937 = vmatpush1.msra.mxu0 %v151
    %1938 = vmatprep.subr.mxu0 %v156
    %1939 = vmatpush1.msra.mxu0 %v155
    %1940 = vmatprep.subr.mxu0 %v160
    %1941 = vmatpush1.msra.mxu0 %v159
    %1942 = vmatprep.subr.mxu0 %v164
    %1943 = vmatpush1.msra.mxu0 %v163
    %1944 = vmatprep.subr.mxu0 %v168
    %1945 = vmatpush1.msra.mxu0 %v167
    %1946 = vmatprep.subr.mxu0 %v172
    %1947 = vmatpush1.msra.mxu0 %v171
    %1948 = vmatprep.subr.mxu0 %v176
    %1949 = vmatpush1.msra.mxu0 %v175
    %1950 = vmatprep.subr.mxu0 %v180
    %1951 = vmatpush1.msra.mxu0 %v179
    %1952 = vmatprep.subr.mxu0 %v184
    %1953 = vmatpush1.msra.mxu0 %v183
    %1954 = vmatprep.subr.mxu0 %v188
    %1955 = vmatpush1.msra.mxu0 %v187
    %1956 = vmatprep.subr.mxu0 %v192
    %1957 = vmatpush1.msra.mxu0 %v191
    %1958 = vmatprep.subr.mxu0 %v196
    %1959 = vmatpush1.msra.mxu0 %v195
    %1960 = vmatprep.subr.mxu0 %v200
    %1961 = vmatpush1.msra.mxu0 %v199
    %1962 = vmatprep.subr.mxu0 0.0
    %1963 = vmatpush1.msra.mxu0 0.0
    %1964 = vmatprep.subr.mxu0 0.0
    %1965 = vmatpush1.msra.mxu0 0.0
    %1966 = vmatprep.subr.mxu0 0.0
    %1967 = vmatpush1.msra.mxu0 0.0
    %1968 = vmatprep.subr.mxu0 0.0
    %1969 = vmatpush1.msra.mxu0 0.0
    %1970 = vmatprep.subr.mxu0 0.0
    %1971 = vmatpush1.msra.mxu0 0.0
    %1972 = vmatprep.subr.mxu0 0.0
    %1973 = vmatpush1.msra.mxu0 0.0
    %1974 = vmatprep.subr.mxu0 0.0
    %1975 = vmatpush1.msra.mxu0 0.0
    %1976 = vmatprep.subr.mxu0 0.0
    %1977 = vmatpush1.msra.mxu0 0.0
    %1978 = vmatprep.subr.mxu0 0.0
    %1979 = vmatpush1.msra.mxu0 0.0
    %1980 = vmatprep.subr.mxu0 0.0
    %1981 = vmatpush1.msra.mxu0 0.0
    %1982 = vmatprep.subr.mxu0 0.0
    %1983 = vmatpush1.msra.mxu0 0.0
    %1984 = vmatprep.subr.mxu0 0.0
    %1985 = vmatpush1.msra.mxu0 0.0
    %1986 = vmatprep.subr.mxu0 0.0
    %1987 = vmatpush1.msra.mxu0 0.0
    %1988 = vmatprep.subr.mxu0 0.0
    %1989 = vmatpush1.msra.mxu0 0.0
    %1990 = vmatprep.subr.mxu0 0.0
    %1991 = vmatpush1.msra.mxu0 0.0
    %1992 = vmatprep.subr.mxu0 0.0
    %1993 = vmatpush1.msra.mxu0 0.0
    %1994 = vmatprep.mubr.f32.mxu0 0.0
    %1995 = vmatmul.mubr.f32.gmra.mrb[0].mxu0 %v1858
    %v1996 = vpop.f32.mrb[0].mxu0
    %v1997 = vadd.f32 %v1685, %v1996
    %v1998 = vpop.f32.mrb[0].mxu0
    %v1999 = vadd.f32 %v1687, %v1998
    %2000 = vdwg.mxu0
    %v2001 = vadd.f32 %v1926, %v270
    %v2002 = vadd.f32 %v1928, %v274
    %v2003 = vadd.f32 %v1997, %v278
    %v2004 = vadd.f32 %v1999, %v282
    %v2005 = vxor.u32 %v2001, 2147483648
    %v2006 = vxor.u32 %v2002, 2147483648
    %v2007 = vxor.u32 %v2003, 2147483648
    %v2008 = vmul.f32 %v2005, 1.442695
    %v2009 = vpow.pop %v2008
    %v2010 = vmul.f32 %v2006, 1.442695
    %v2011 = vpow.pop %v2010
    %v2012 = vmul.f32 %v2007, 1.442695
    %v2013 = vpow.pop %v2012
    %v2014 = vadd.f32 %v2009, 1.0
    %v2015 = vadd.f32 %v2011, 1.0
    %v2016 = vadd.f32 %v2013, 1.0
    %v2017 = vrcp.pop %v2014
    %v2018 = vmul.f32 1.0, %v2017
    %v2019 = vrcp.pop %v2015
    %v2020 = vmul.f32 1.0, %v2019
    %v2021 = vrcp.pop %v2016
    %v2022 = vmul.f32 1.0, %v2021
    %v2023 = vtanh.pop %v2004
    %v2024 = vmul.f32 %v2020, %v1544
    %v2025 = vmul.f32 %v2018, %v2023
    %v2026 = vadd.f32 %v2024, %v2025
    %v2027 = vtanh.pop %v2026
    %v2028 = vmul.f32 %v2022, %v2027
    %2029 = vmatprep.subr.mxu0 %v202
    %2030 = vmatpush1.msra.mxu0 %v201
    %2031 = vmatprep.subr.mxu0 %v206
    %2032 = vmatpush1.msra.mxu0 %v205
    %2033 = vmatprep.subr.mxu0 %v210
    %2034 = vmatpush1.msra.mxu0 %v209
    %2035 = vmatprep.subr.mxu0 %v214
    %2036 = vmatpush1.msra.mxu0 %v213
    %2037 = vmatprep.subr.mxu0 %v218
    %2038 = vmatpush1.msra.mxu0 %v217
    %2039 = vmatprep.subr.mxu0 %v222
    %2040 = vmatpush1.msra.mxu0 %v221
    %2041 = vmatprep.subr.mxu0 %v226
    %2042 = vmatpush1.msra.mxu0 %v225
    %2043 = vmatprep.subr.mxu0 %v230
    %2044 = vmatpush1.msra.mxu0 %v229
    %2045 = vmatprep.subr.mxu0 %v234
    %2046 = vmatpush1.msra.mxu0 %v233
    %2047 = vmatprep.subr.mxu0 %v238
    %2048 = vmatpush1.msra.mxu0 %v237
    %2049 = vmatprep.subr.mxu0 %v242
    %2050 = vmatpush1.msra.mxu0 %v241
    %2051 = vmatprep.subr.mxu0 %v246
    %2052 = vmatpush1.msra.mxu0 %v245
    %2053 = vmatprep.subr.mxu0 %v250
    %2054 = vmatpush1.msra.mxu0 %v249
    %2055 = vmatprep.subr.mxu0 %v254
    %2056 = vmatpush1.msra.mxu0 %v253
    %2057 = vmatprep.subr.mxu0 %v258
    %2058 = vmatpush1.msra.mxu0 %v257
    %2059 = vmatprep.subr.mxu0 %v262
    %2060 = vmatpush1.msra.mxu0 %v261
    %2061 = vmatprep.subr.mxu0 0.0
    %2062 = vmatpush1.msra.mxu0 0.0
    %2063 = vmatprep.subr.mxu0 0.0
    %2064 = vmatpush1.msra.mxu0 0.0
    %2065 = vmatprep.subr.mxu0 0.0
    %2066 = vmatpush1.msra.mxu0 0.0
    %2067 = vmatprep.subr.mxu0 0.0
    %2068 = vmatpush1.msra.mxu0 0.0
    %2069 = vmatprep.subr.mxu0 0.0
    %2070 = vmatpush1.msra.mxu0 0.0
    %2071 = vmatprep.subr.mxu0 0.0
    %2072 = vmatpush1.msra.mxu0 0.0
    %2073 = vmatprep.subr.mxu0 0.0
    %2074 = vmatpush1.msra.mxu0 0.0
    %2075 = vmatprep.subr.mxu0 0.0
    %2076 = vmatpush1.msra.mxu0 0.0
    %2077 = vmatprep.subr.mxu0 0.0
    %2078 = vmatpush1.msra.mxu0 0.0
    %2079 = vmatprep.subr.mxu0 0.0
    %2080 = vmatpush1.msra.mxu0 0.0
    %2081 = vmatprep.subr.mxu0 0.0
    %2082 = vmatpush1.msra.mxu0 0.0
    %2083 = vmatprep.subr.mxu0 0.0
    %2084 = vmatpush1.msra.mxu0 0.0
    %2085 = vmatprep.subr.mxu0 0.0
    %2086 = vmatpush1.msra.mxu0 0.0
    %2087 = vmatprep.subr.mxu0 0.0
    %2088 = vmatpush1.msra.mxu0 0.0
    %2089 = vmatprep.subr.mxu0 0.0
    %2090 = vmatpush1.msra.mxu0 0.0
    %2091 = vmatprep.subr.mxu0 0.0
    %2092 = vmatpush1.msra.mxu0 0.0
    %2093 = vmatprep.mubr.f32.mxu0 0.0
    %2094 = vmatmul.mubr.f32.gmra.mrb[0].mxu0 %v2028
    %v2095 = vpop.f32.mrb[0].mxu0
    %v2096 = vadd.f32 0.0, %v2095
    %v2097 = vpop.f32.mrb[0].mxu0
    %v2098 = vadd.f32 0.0, %v2097
    %2099 = vdwg.mxu0
    %2100 = vmatprep.subr.mxu0 %v204
    %2101 = vmatpush1.msra.mxu0 %v203
    %2102 = vmatprep.subr.mxu0 %v208
    %2103 = vmatpush1.msra.mxu0 %v207
    %2104 = vmatprep.subr.mxu0 %v212
    %2105 = vmatpush1.msra.mxu0 %v211
    %2106 = vmatprep.subr.mxu0 %v216
    %2107 = vmatpush1.msra.mxu0 %v215
    %2108 = vmatprep.subr.mxu0 %v220
    %2109 = vmatpush1.msra.mxu0 %v219
    %2110 = vmatprep.subr.mxu0 %v224
    %2111 = vmatpush1.msra.mxu0 %v223
    %2112 = vmatprep.subr.mxu0 %v228
    %2113 = vmatpush1.msra.mxu0 %v227
    %2114 = vmatprep.subr.mxu0 %v232
    %2115 = vmatpush1.msra.mxu0 %v231
    %2116 = vmatprep.subr.mxu0 %v236
    %2117 = vmatpush1.msra.mxu0 %v235
    %2118 = vmatprep.subr.mxu0 %v240
    %2119 = vmatpush1.msra.mxu0 %v239
    %2120 = vmatprep.subr.mxu0 %v244
    %2121 = vmatpush1.msra.mxu0 %v243
    %2122 = vmatprep.subr.mxu0 %v248
    %2123 = vmatpush1.msra.mxu0 %v247
    %2124 = vmatprep.subr.mxu0 %v252
    %2125 = vmatpush1.msra.mxu0 %v251
    %2126 = vmatprep.subr.mxu0 %v256
    %2127 = vmatpush1.msra.mxu0 %v255
    %2128 = vmatprep.subr.mxu0 %v260
    %2129 = vmatpush1.msra.mxu0 %v259
    %2130 = vmatprep.subr.mxu0 %v264
    %2131 = vmatpush1.msra.mxu0 %v263
    %2132 = vmatprep.subr.mxu0 0.0
    %2133 = vmatpush1.msra.mxu0 0.0
    %2134 = vmatprep.subr.mxu0 0.0
    %2135 = vmatpush1.msra.mxu0 0.0
    %2136 = vmatprep.subr.mxu0 0.0
    %2137 = vmatpush1.msra.mxu0 0.0
    %2138 = vmatprep.subr.mxu0 0.0
    %2139 = vmatpush1.msra.mxu0 0.0
    %2140 = vmatprep.subr.mxu0 0.0
    %2141 = vmatpush1.msra.mxu0 0.0
    %2142 = vmatprep.subr.mxu0 0.0
    %2143 = vmatpush1.msra.mxu0 0.0
    %2144 = vmatprep.subr.mxu0 0.0
    %2145 = vmatpush1.msra.mxu0 0.0
    %2146 = vmatprep.subr.mxu0 0.0
    %2147 = vmatpush1.msra.mxu0 0.0
    %2148 = vmatprep.subr.mxu0 0.0
    %2149 = vmatpush1.msra.mxu0 0.0
    %2150 = vmatprep.subr.mxu0 0.0
    %2151 = vmatpush1.msra.mxu0 0.0
    %2152 = vmatprep.subr.mxu0 0.0
    %2153 = vmatpush1.msra.mxu0 0.0
    %2154 = vmatprep.subr.mxu0 0.0
    %2155 = vmatpush1.msra.mxu0 0.0
    %2156 = vmatprep.subr.mxu0 0.0
    %2157 = vmatpush1.msra.mxu0 0.0
    %2158 = vmatprep.subr.mxu0 0.0
    %2159 = vmatpush1.msra.mxu0 0.0
    %2160 = vmatprep.subr.mxu0 0.0
    %2161 = vmatpush1.msra.mxu0 0.0
    %2162 = vmatprep.subr.mxu0 0.0
    %2163 = vmatpush1.msra.mxu0 0.0
    %2164 = vmatprep.mubr.f32.mxu0 0.0
    %2165 = vmatmul.mubr.f32.gmra.mrb[0].mxu0 %v2028
    %v2166 = vpop.f32.mrb[0].mxu0
    %v2167 = vadd.f32 0.0, %v2166
    %v2168 = vpop.f32.mrb[0].mxu0
    %v2169 = vadd.f32 0.0, %v2168
    %2170 = vdwg.mxu0
    %2171 = vmatprep.subr.mxu0 %v74
    %2172 = vmatpush1.msra.mxu0 %v73
    %2173 = vmatprep.subr.mxu0 %v78
    %2174 = vmatpush1.msra.mxu0 %v77
    %2175 = vmatprep.subr.mxu0 %v82
    %2176 = vmatpush1.msra.mxu0 %v81
    %2177 = vmatprep.subr.mxu0 %v86
    %2178 = vmatpush1.msra.mxu0 %v85
    %2179 = vmatprep.subr.mxu0 %v90
    %2180 = vmatpush1.msra.mxu0 %v89
    %2181 = vmatprep.subr.mxu0 %v94
    %2182 = vmatpush1.msra.mxu0 %v93
    %2183 = vmatprep.subr.mxu0 %v98
    %2184 = vmatpush1.msra.mxu0 %v97
    %2185 = vmatprep.subr.mxu0 %v102
    %2186 = vmatpush1.msra.mxu0 %v101
    %2187 = vmatprep.subr.mxu0 %v106
    %2188 = vmatpush1.msra.mxu0 %v105
    %2189 = vmatprep.subr.mxu0 %v110
    %2190 = vmatpush1.msra.mxu0 %v109
    %2191 = vmatprep.subr.mxu0 %v114
    %2192 = vmatpush1.msra.mxu0 %v113
    %2193 = vmatprep.subr.mxu0 %v118
    %2194 = vmatpush1.msra.mxu0 %v117
    %2195 = vmatprep.subr.mxu0 %v122
    %2196 = vmatpush1.msra.mxu0 %v121
    %2197 = vmatprep.subr.mxu0 %v126
    %2198 = vmatpush1.msra.mxu0 %v125
    %2199 = vmatprep.subr.mxu0 %v130
    %2200 = vmatpush1.msra.mxu0 %v129
    %2201 = vmatprep.subr.mxu0 %v134
    %2202 = vmatpush1.msra.mxu0 %v133
    %2203 = vmatprep.subr.mxu0 0.0
    %2204 = vmatpush1.msra.mxu0 0.0
    %2205 = vmatprep.subr.mxu0 0.0
    %2206 = vmatpush1.msra.mxu0 0.0
    %2207 = vmatprep.subr.mxu0 0.0
    %2208 = vmatpush1.msra.mxu0 0.0
    %2209 = vmatprep.subr.mxu0 0.0
    %2210 = vmatpush1.msra.mxu0 0.0
    %2211 = vmatprep.subr.mxu0 0.0
    %2212 = vmatpush1.msra.mxu0 0.0
    %2213 = vmatprep.subr.mxu0 0.0
    %2214 = vmatpush1.msra.mxu0 0.0
    %2215 = vmatprep.subr.mxu0 0.0
    %2216 = vmatpush1.msra.mxu0 0.0
    %2217 = vmatprep.subr.mxu0 0.0
    %2218 = vmatpush1.msra.mxu0 0.0
    %2219 = vmatprep.subr.mxu0 0.0
    %2220 = vmatpush1.msra.mxu0 0.0
    %2221 = vmatprep.subr.mxu0 0.0
    %2222 = vmatpush1.msra.mxu0 0.0
    %2223 = vmatprep.subr.mxu0 0.0
    %2224 = vmatpush1.msra.mxu0 0.0
    %2225 = vmatprep.subr.mxu0 0.0
    %2226 = vmatpush1.msra.mxu0 0.0
    %2227 = vmatprep.subr.mxu0 0.0
    %2228 = vmatpush1.msra.mxu0 0.0
    %2229 = vmatprep.subr.mxu0 0.0
    %2230 = vmatpush1.msra.mxu0 0.0
    %2231 = vmatprep.subr.mxu0 0.0
    %2232 = vmatpush1.msra.mxu0 0.0
    %2233 = vmatprep.subr.mxu0 0.0
    %2234 = vmatpush1.msra.mxu0 0.0
    %2235 = vmatprep.mubr.f32.mxu0 0.0
    %2236 = vmatmul.mubr.f32.gmra.mrb[0].mxu0 %v1858
    %v2237 = vpop.f32.mrb[0].mxu0
    %v2238 = vadd.f32 0.0, %v2237
    %v2239 = vpop.f32.mrb[0].mxu0
    %v2240 = vadd.f32 0.0, %v2239
    %2241 = vdwg.mxu0
    %2242 = vmatprep.subr.mxu0 %v76
    %2243 = vmatpush1.msra.mxu0 %v75
    %2244 = vmatprep.subr.mxu0 %v80
    %2245 = vmatpush1.msra.mxu0 %v79
    %2246 = vmatprep.subr.mxu0 %v84
    %2247 = vmatpush1.msra.mxu0 %v83
    %2248 = vmatprep.subr.mxu0 %v88
    %2249 = vmatpush1.msra.mxu0 %v87
    %2250 = vmatprep.subr.mxu0 %v92
    %2251 = vmatpush1.msra.mxu0 %v91
    %2252 = vmatprep.subr.mxu0 %v96
    %2253 = vmatpush1.msra.mxu0 %v95
    %2254 = vmatprep.subr.mxu0 %v100
    %2255 = vmatpush1.msra.mxu0 %v99
    %2256 = vmatprep.subr.mxu0 %v104
    %2257 = vmatpush1.msra.mxu0 %v103
    %2258 = vmatprep.subr.mxu0 %v108
    %2259 = vmatpush1.msra.mxu0 %v107
    %2260 = vmatprep.subr.mxu0 %v112
    %2261 = vmatpush1.msra.mxu0 %v111
    %2262 = vmatprep.subr.mxu0 %v116
    %2263 = vmatpush1.msra.mxu0 %v115
    %2264 = vmatprep.subr.mxu0 %v120
    %2265 = vmatpush1.msra.mxu0 %v119
    %2266 = vmatprep.subr.mxu0 %v124
    %2267 = vmatpush1.msra.mxu0 %v123
    %2268 = vmatprep.subr.mxu0 %v128
    %2269 = vmatpush1.msra.mxu0 %v127
    %2270 = vmatprep.subr.mxu0 %v132
    %2271 = vmatpush1.msra.mxu0 %v131
    %2272 = vmatprep.subr.mxu0 %v136
    %2273 = vmatpush1.msra.mxu0 %v135
    %2274 = vmatprep.subr.mxu0 0.0
    %2275 = vmatpush1.msra.mxu0 0.0
    %2276 = vmatprep.subr.mxu0 0.0
    %2277 = vmatpush1.msra.mxu0 0.0
    %2278 = vmatprep.subr.mxu0 0.0
    %2279 = vmatpush1.msra.mxu0 0.0
    %2280 = vmatprep.subr.mxu0 0.0
    %2281 = vmatpush1.msra.mxu0 0.0
    %2282 = vmatprep.subr.mxu0 0.0
    %2283 = vmatpush1.msra.mxu0 0.0
    %2284 = vmatprep.subr.mxu0 0.0
    %2285 = vmatpush1.msra.mxu0 0.0
    %2286 = vmatprep.subr.mxu0 0.0
    %2287 = vmatpush1.msra.mxu0 0.0
    %2288 = vmatprep.subr.mxu0 0.0
    %2289 = vmatpush1.msra.mxu0 0.0
    %2290 = vmatprep.subr.mxu0 0.0
    %2291 = vmatpush1.msra.mxu0 0.0
    %2292 = vmatprep.subr.mxu0 0.0
    %2293 = vmatpush1.msra.mxu0 0.0
    %2294 = vmatprep.subr.mxu0 0.0
    %2295 = vmatpush1.msra.mxu0 0.0
    %2296 = vmatprep.subr.mxu0 0.0
    %2297 = vmatpush1.msra.mxu0 0.0
    %2298 = vmatprep.subr.mxu0 0.0
    %2299 = vmatpush1.msra.mxu0 0.0
    %2300 = vmatprep.subr.mxu0 0.0
    %2301 = vmatpush1.msra.mxu0 0.0
    %2302 = vmatprep.subr.mxu0 0.0
    %2303 = vmatpush1.msra.mxu0 0.0
    %2304 = vmatprep.subr.mxu0 0.0
    %2305 = vmatpush1.msra.mxu0 0.0
    %2306 = vmatprep.mubr.f32.mxu0 0.0
    %2307 = vmatmul.mubr.f32.gmra.mrb[0].mxu0 %v1858
    %v2308 = vpop.f32.mrb[0].mxu0
    %v2309 = vadd.f32 0.0, %v2308
    %v2310 = vpop.f32.mrb[0].mxu0
    %v2311 = vadd.f32 0.0, %v2310
    %2312 = vdwg.mxu0
    %v2313 = vadd.f32 %v442, %v2238
    %v2314 = vadd.f32 %v444, %v2240
    %v2315 = vadd.f32 %v555, %v2309
    %v2316 = vadd.f32 %v557, %v2311
    %v2317 = vxor.u32 %v2313, 2147483648
    %v2318 = vxor.u32 %v2314, 2147483648
    %v2319 = vxor.u32 %v2315, 2147483648
    %v2320 = vmul.f32 %v2317, 1.442695
    %v2321 = vpow.pop %v2320
    %v2322 = vmul.f32 %v2318, 1.442695
    %v2323 = vpow.pop %v2322
    %v2324 = vmul.f32 %v2319, 1.442695
    %v2325 = vpow.pop %v2324
    %v2326 = vadd.f32 %v2321, 1.0
    %v2327 = vadd.f32 %v2323, 1.0
    %v2328 = vadd.f32 %v2325, 1.0
    %v2329 = vrcp.pop %v2326
    %v2330 = vmul.f32 1.0, %v2329
    %v2331 = vrcp.pop %v2327
    %v2332 = vmul.f32 1.0, %v2331
    %v2333 = vrcp.pop %v2328
    %v2334 = vmul.f32 1.0, %v2333
    %v2335 = vtanh.pop %v2316
    %v2336 = vmul.f32 %v2332, %v1856
    %v2337 = vmul.f32 %v2330, %v2335
    %v2338 = vadd.f32 %v2336, %v2337
    %v2339 = vtanh.pop %v2338
    %v2340 = vmul.f32 %v2334, %v2339
    %2341 = vmatprep.subr.mxu0 %v138
    %2342 = vmatpush1.msra.mxu0 %v137
    %2343 = vmatprep.subr.mxu0 %v142
    %2344 = vmatpush1.msra.mxu0 %v141
    %2345 = vmatprep.subr.mxu0 %v146
    %2346 = vmatpush1.msra.mxu0 %v145
    %2347 = vmatprep.subr.mxu0 %v150
    %2348 = vmatpush1.msra.mxu0 %v149
    %2349 = vmatprep.subr.mxu0 %v154
    %2350 = vmatpush1.msra.mxu0 %v153
    %2351 = vmatprep.subr.mxu0 %v158
    %2352 = vmatpush1.msra.mxu0 %v157
    %2353 = vmatprep.subr.mxu0 %v162
    %2354 = vmatpush1.msra.mxu0 %v161
    %2355 = vmatprep.subr.mxu0 %v166
    %2356 = vmatpush1.msra.mxu0 %v165
    %2357 = vmatprep.subr.mxu0 %v170
    %2358 = vmatpush1.msra.mxu0 %v169
    %2359 = vmatprep.subr.mxu0 %v174
    %2360 = vmatpush1.msra.mxu0 %v173
    %2361 = vmatprep.subr.mxu0 %v178
    %2362 = vmatpush1.msra.mxu0 %v177
    %2363 = vmatprep.subr.mxu0 %v182
    %2364 = vmatpush1.msra.mxu0 %v181
    %2365 = vmatprep.subr.mxu0 %v186
    %2366 = vmatpush1.msra.mxu0 %v185
    %2367 = vmatprep.subr.mxu0 %v190
    %2368 = vmatpush1.msra.mxu0 %v189
    %2369 = vmatprep.subr.mxu0 %v194
    %2370 = vmatpush1.msra.mxu0 %v193
    %2371 = vmatprep.subr.mxu0 %v198
    %2372 = vmatpush1.msra.mxu0 %v197
    %2373 = vmatprep.subr.mxu0 0.0
    %2374 = vmatpush1.msra.mxu0 0.0
    %2375 = vmatprep.subr.mxu0 0.0
    %2376 = vmatpush1.msra.mxu0 0.0
    %2377 = vmatprep.subr.mxu0 0.0
    %2378 = vmatpush1.msra.mxu0 0.0
    %2379 = vmatprep.subr.mxu0 0.0
    %2380 = vmatpush1.msra.mxu0 0.0
    %2381 = vmatprep.subr.mxu0 0.0
    %2382 = vmatpush1.msra.mxu0 0.0
    %2383 = vmatprep.subr.mxu0 0.0
    %2384 = vmatpush1.msra.mxu0 0.0
    %2385 = vmatprep.subr.mxu0 0.0
    %2386 = vmatpush1.msra.mxu0 0.0
    %2387 = vmatprep.subr.mxu0 0.0
    %2388 = vmatpush1.msra.mxu0 0.0
    %2389 = vmatprep.subr.mxu0 0.0
    %2390 = vmatpush1.msra.mxu0 0.0
    %2391 = vmatprep.subr.mxu0 0.0
    %2392 = vmatpush1.msra.mxu0 0.0
    %2393 = vmatprep.subr.mxu0 0.0
    %2394 = vmatpush1.msra.mxu0 0.0
    %2395 = vmatprep.subr.mxu0 0.0
    %2396 = vmatpush1.msra.mxu0 0.0
    %2397 = vmatprep.subr.mxu0 0.0
    %2398 = vmatpush1.msra.mxu0 0.0
    %2399 = vmatprep.subr.mxu0 0.0
    %2400 = vmatpush1.msra.mxu0 0.0
    %2401 = vmatprep.subr.mxu0 0.0
    %2402 = vmatpush1.msra.mxu0 0.0
    %2403 = vmatprep.subr.mxu0 0.0
    %2404 = vmatpush1.msra.mxu0 0.0
    %2405 = vmatprep.mubr.f32.mxu0 0.0
    %2406 = vmatmul.mubr.f32.gmra.mrb[0].mxu0 %v2340
    %v2407 = vpop.f32.mrb[0].mxu0
    %v2408 = vadd.f32 %v2096, %v2407
    %v2409 = vpop.f32.mrb[0].mxu0
    %v2410 = vadd.f32 %v2098, %v2409
    %2411 = vdwg.mxu0
    %2412 = vmatprep.subr.mxu0 %v140
    %2413 = vmatpush1.msra.mxu0 %v139
    %2414 = vmatprep.subr.mxu0 %v144
    %2415 = vmatpush1.msra.mxu0 %v143
    %2416 = vmatprep.subr.mxu0 %v148
    %2417 = vmatpush1.msra.mxu0 %v147
    %2418 = vmatprep.subr.mxu0 %v152
    %2419 = vmatpush1.msra.mxu0 %v151
    %2420 = vmatprep.subr.mxu0 %v156
    %2421 = vmatpush1.msra.mxu0 %v155
    %2422 = vmatprep.subr.mxu0 %v160
    %2423 = vmatpush1.msra.mxu0 %v159
    %2424 = vmatprep.subr.mxu0 %v164
    %2425 = vmatpush1.msra.mxu0 %v163
    %2426 = vmatprep.subr.mxu0 %v168
    %2427 = vmatpush1.msra.mxu0 %v167
    %2428 = vmatprep.subr.mxu0 %v172
    %2429 = vmatpush1.msra.mxu0 %v171
    %2430 = vmatprep.subr.mxu0 %v176
    %2431 = vmatpush1.msra.mxu0 %v175
    %2432 = vmatprep.subr.mxu0 %v180
    %2433 = vmatpush1.msra.mxu0 %v179
    %2434 = vmatprep.subr.mxu0 %v184
    %2435 = vmatpush1.msra.mxu0 %v183
    %2436 = vmatprep.subr.mxu0 %v188
    %2437 = vmatpush1.msra.mxu0 %v187
    %2438 = vmatprep.subr.mxu0 %v192
    %2439 = vmatpush1.msra.mxu0 %v191
    %2440 = vmatprep.subr.mxu0 %v196
    %2441 = vmatpush1.msra.mxu0 %v195
    %2442 = vmatprep.subr.mxu0 %v200
    %2443 = vmatpush1.msra.mxu0 %v199
    %2444 = vmatprep.subr.mxu0 0.0
    %2445 = vmatpush1.msra.mxu0 0.0
    %2446 = vmatprep.subr.mxu0 0.0
    %2447 = vmatpush1.msra.mxu0 0.0
    %2448 = vmatprep.subr.mxu0 0.0
    %2449 = vmatpush1.msra.mxu0 0.0
    %2450 = vmatprep.subr.mxu0 0.0
    %2451 = vmatpush1.msra.mxu0 0.0
    %2452 = vmatprep.subr.mxu0 0.0
    %2453 = vmatpush1.msra.mxu0 0.0
    %2454 = vmatprep.subr.mxu0 0.0
    %2455 = vmatpush1.msra.mxu0 0.0
    %2456 = vmatprep.subr.mxu0 0.0
    %2457 = vmatpush1.msra.mxu0 0.0
    %2458 = vmatprep.subr.mxu0 0.0
    %2459 = vmatpush1.msra.mxu0 0.0
    %2460 = vmatprep.subr.mxu0 0.0
    %2461 = vmatpush1.msra.mxu0 0.0
    %2462 = vmatprep.subr.mxu0 0.0
    %2463 = vmatpush1.msra.mxu0 0.0
    %2464 = vmatprep.subr.mxu0 0.0
    %2465 = vmatpush1.msra.mxu0 0.0
    %2466 = vmatprep.subr.mxu0 0.0
    %2467 = vmatpush1.msra.mxu0 0.0
    %2468 = vmatprep.subr.mxu0 0.0
    %2469 = vmatpush1.msra.mxu0 0.0
    %2470 = vmatprep.subr.mxu0 0.0
    %2471 = vmatpush1.msra.mxu0 0.0
    %2472 = vmatprep.subr.mxu0 0.0
    %2473 = vmatpush1.msra.mxu0 0.0
    %2474 = vmatprep.subr.mxu0 0.0
    %2475 = vmatpush1.msra.mxu0 0.0
    %2476 = vmatprep.mubr.f32.mxu0 0.0
    %2477 = vmatmul.mubr.f32.gmra.mrb[0].mxu0 %v2340
    %v2478 = vpop.f32.mrb[0].mxu0
    %v2479 = vadd.f32 %v2167, %v2478
    %v2480 = vpop.f32.mrb[0].mxu0
    %v2481 = vadd.f32 %v2169, %v2480
    %2482 = vdwg.mxu0
    %v2483 = vadd.f32 %v2408, %v270
    %v2484 = vadd.f32 %v2410, %v274
    %v2485 = vadd.f32 %v2479, %v278
    %v2486 = vadd.f32 %v2481, %v282
    %v2487 = vxor.u32 %v2483, 2147483648
    %v2488 = vxor.u32 %v2484, 2147483648
    %v2489 = vxor.u32 %v2485, 2147483648
    %v2490 = vmul.f32 %v2487, 1.442695
    %v2491 = vpow.pop %v2490
    %v2492 = vmul.f32 %v2488, 1.442695
    %v2493 = vpow.pop %v2492
    %v2494 = vmul.f32 %v2489, 1.442695
    %v2495 = vpow.pop %v2494
    %v2496 = vadd.f32 %v2491, 1.0
    %v2497 = vadd.f32 %v2493, 1.0
    %v2498 = vadd.f32 %v2495, 1.0
    %v2499 = vrcp.pop %v2496
    %v2500 = vmul.f32 1.0, %v2499
    %v2501 = vrcp.pop %v2497
    %v2502 = vmul.f32 1.0, %v2501
    %v2503 = vrcp.pop %v2498
    %v2504 = vmul.f32 1.0, %v2503
    %v2505 = vtanh.pop %v2486
    %v2506 = vmul.f32 %v2502, %v2026
    %v2507 = vmul.f32 %v2500, %v2505
    %v2508 = vadd.f32 %v2506, %v2507
    %v2509 = vtanh.pop %v2508
    %v2510 = vmul.f32 %v2504, %v2509
    %2511 = vmatprep.subr.mxu0 %v202
    %2512 = vmatpush1.msra.mxu0 %v201
    %2513 = vmatprep.subr.mxu0 %v206
    %2514 = vmatpush1.msra.mxu0 %v205
    %2515 = vmatprep.subr.mxu0 %v210
    %2516 = vmatpush1.msra.mxu0 %v209
    %2517 = vmatprep.subr.mxu0 %v214
    %2518 = vmatpush1.msra.mxu0 %v213
    %2519 = vmatprep.subr.mxu0 %v218
    %2520 = vmatpush1.msra.mxu0 %v217
    %2521 = vmatprep.subr.mxu0 %v222
    %2522 = vmatpush1.msra.mxu0 %v221
    %2523 = vmatprep.subr.mxu0 %v226
    %2524 = vmatpush1.msra.mxu0 %v225
    %2525 = vmatprep.subr.mxu0 %v230
    %2526 = vmatpush1.msra.mxu0 %v229
    %2527 = vmatprep.subr.mxu0 %v234
    %2528 = vmatpush1.msra.mxu0 %v233
    %2529 = vmatprep.subr.mxu0 %v238
    %2530 = vmatpush1.msra.mxu0 %v237
    %2531 = vmatprep.subr.mxu0 %v242
    %2532 = vmatpush1.msra.mxu0 %v241
    %2533 = vmatprep.subr.mxu0 %v246
    %2534 = vmatpush1.msra.mxu0 %v245
    %2535 = vmatprep.subr.mxu0 %v250
    %2536 = vmatpush1.msra.mxu0 %v249
    %2537 = vmatprep.subr.mxu0 %v254
    %2538 = vmatpush1.msra.mxu0 %v253
    %2539 = vmatprep.subr.mxu0 %v258
    %2540 = vmatpush1.msra.mxu0 %v257
    %2541 = vmatprep.subr.mxu0 %v262
    %2542 = vmatpush1.msra.mxu0 %v261
    %2543 = vmatprep.subr.mxu0 0.0
    %2544 = vmatpush1.msra.mxu0 0.0
    %2545 = vmatprep.subr.mxu0 0.0
    %2546 = vmatpush1.msra.mxu0 0.0
    %2547 = vmatprep.subr.mxu0 0.0
    %2548 = vmatpush1.msra.mxu0 0.0
    %2549 = vmatprep.subr.mxu0 0.0
    %2550 = vmatpush1.msra.mxu0 0.0
    %2551 = vmatprep.subr.mxu0 0.0
    %2552 = vmatpush1.msra.mxu0 0.0
    %2553 = vmatprep.subr.mxu0 0.0
    %2554 = vmatpush1.msra.mxu0 0.0
    %2555 = vmatprep.subr.mxu0 0.0
    %2556 = vmatpush1.msra.mxu0 0.0
    %2557 = vmatprep.subr.mxu0 0.0
    %2558 = vmatpush1.msra.mxu0 0.0
    %2559 = vmatprep.subr.mxu0 0.0
    %2560 = vmatpush1.msra.mxu0 0.0
    %2561 = vmatprep.subr.mxu0 0.0
    %2562 = vmatpush1.msra.mxu0 0.0
    %2563 = vmatprep.subr.mxu0 0.0
    %2564 = vmatpush1.msra.mxu0 0.0
    %2565 = vmatprep.subr.mxu0 0.0
    %2566 = vmatpush1.msra.mxu0 0.0
    %2567 = vmatprep.subr.mxu0 0.0
    %2568 = vmatpush1.msra.mxu0 0.0
    %2569 = vmatprep.subr.mxu0 0.0
    %2570 = vmatpush1.msra.mxu0 0.0
    %2571 = vmatprep.subr.mxu0 0.0
    %2572 = vmatpush1.msra.mxu0 0.0
    %2573 = vmatprep.subr.mxu0 0.0
    %2574 = vmatpush1.msra.mxu0 0.0
    %2575 = vmatprep.mubr.f32.mxu0 0.0
    %2576 = vmatmul.mubr.f32.gmra.mrb[0].mxu0 %v2510
    %v2577 = vpop.f32.mrb[0].mxu0
    %v2578 = vadd.f32 0.0, %v2577
    %v2579 = vpop.f32.mrb[0].mxu0
    %v2580 = vadd.f32 0.0, %v2579
    %2581 = vdwg.mxu0
    %2582 = vmatprep.subr.mxu0 %v204
    %2583 = vmatpush1.msra.mxu0 %v203
    %2584 = vmatprep.subr.mxu0 %v208
    %2585 = vmatpush1.msra.mxu0 %v207
    %2586 = vmatprep.subr.mxu0 %v212
    %2587 = vmatpush1.msra.mxu0 %v211
    %2588 = vmatprep.subr.mxu0 %v216
    %2589 = vmatpush1.msra.mxu0 %v215
    %2590 = vmatprep.subr.mxu0 %v220
    %2591 = vmatpush1.msra.mxu0 %v219
    %2592 = vmatprep.subr.mxu0 %v224
    %2593 = vmatpush1.msra.mxu0 %v223
    %2594 = vmatprep.subr.mxu0 %v228
    %2595 = vmatpush1.msra.mxu0 %v227
    %2596 = vmatprep.subr.mxu0 %v232
    %2597 = vmatpush1.msra.mxu0 %v231
    %2598 = vmatprep.subr.mxu0 %v236
    %2599 = vmatpush1.msra.mxu0 %v235
    %2600 = vmatprep.subr.mxu0 %v240
    %2601 = vmatpush1.msra.mxu0 %v239
    %2602 = vmatprep.subr.mxu0 %v244
    %2603 = vmatpush1.msra.mxu0 %v243
    %2604 = vmatprep.subr.mxu0 %v248
    %2605 = vmatpush1.msra.mxu0 %v247
    %2606 = vmatprep.subr.mxu0 %v252
    %2607 = vmatpush1.msra.mxu0 %v251
    %2608 = vmatprep.subr.mxu0 %v256
    %2609 = vmatpush1.msra.mxu0 %v255
    %2610 = vmatprep.subr.mxu0 %v260
    %2611 = vmatpush1.msra.mxu0 %v259
    %2612 = vmatprep.subr.mxu0 %v264
    %2613 = vmatpush1.msra.mxu0 %v263
    %2614 = vmatprep.subr.mxu0 0.0
    %2615 = vmatpush1.msra.mxu0 0.0
    %2616 = vmatprep.subr.mxu0 0.0
    %2617 = vmatpush1.msra.mxu0 0.0
    %2618 = vmatprep.subr.mxu0 0.0
    %2619 = vmatpush1.msra.mxu0 0.0
    %2620 = vmatprep.subr.mxu0 0.0
    %2621 = vmatpush1.msra.mxu0 0.0
    %2622 = vmatprep.subr.mxu0 0.0
    %2623 = vmatpush1.msra.mxu0 0.0
    %2624 = vmatprep.subr.mxu0 0.0
    %2625 = vmatpush1.msra.mxu0 0.0
    %2626 = vmatprep.subr.mxu0 0.0
    %2627 = vmatpush1.msra.mxu0 0.0
    %2628 = vmatprep.subr.mxu0 0.0
    %2629 = vmatpush1.msra.mxu0 0.0
    %2630 = vmatprep.subr.mxu0 0.0
    %2631 = vmatpush1.msra.mxu0 0.0
    %2632 = vmatprep.subr.mxu0 0.0
    %2633 = vmatpush1.msra.mxu0 0.0
    %2634 = vmatprep.subr.mxu0 0.0
    %2635 = vmatpush1.msra.mxu0 0.0
    %2636 = vmatprep.subr.mxu0 0.0
    %2637 = vmatpush1.msra.mxu0 0.0
    %2638 = vmatprep.subr.mxu0 0.0
    %2639 = vmatpush1.msra.mxu0 0.0
    %2640 = vmatprep.subr.mxu0 0.0
    %2641 = vmatpush1.msra.mxu0 0.0
    %2642 = vmatprep.subr.mxu0 0.0
    %2643 = vmatpush1.msra.mxu0 0.0
    %2644 = vmatprep.subr.mxu0 0.0
    %2645 = vmatpush1.msra.mxu0 0.0
    %2646 = vmatprep.mubr.f32.mxu0 0.0
    %2647 = vmatmul.mubr.f32.gmra.mrb[0].mxu0 %v2510
    %v2648 = vpop.f32.mrb[0].mxu0
    %v2649 = vadd.f32 0.0, %v2648
    %v2650 = vpop.f32.mrb[0].mxu0
    %v2651 = vadd.f32 0.0, %v2650
    %2652 = vdwg.mxu0
    %2653 = vmatprep.subr.mxu0 %v74
    %2654 = vmatpush1.msra.mxu0 %v73
    %2655 = vmatprep.subr.mxu0 %v78
    %2656 = vmatpush1.msra.mxu0 %v77
    %2657 = vmatprep.subr.mxu0 %v82
    %2658 = vmatpush1.msra.mxu0 %v81
    %2659 = vmatprep.subr.mxu0 %v86
    %2660 = vmatpush1.msra.mxu0 %v85
    %2661 = vmatprep.subr.mxu0 %v90
    %2662 = vmatpush1.msra.mxu0 %v89
    %2663 = vmatprep.subr.mxu0 %v94
    %2664 = vmatpush1.msra.mxu0 %v93
    %2665 = vmatprep.subr.mxu0 %v98
    %2666 = vmatpush1.msra.mxu0 %v97
    %2667 = vmatprep.subr.mxu0 %v102
    %2668 = vmatpush1.msra.mxu0 %v101
    %2669 = vmatprep.subr.mxu0 %v106
    %2670 = vmatpush1.msra.mxu0 %v105
    %2671 = vmatprep.subr.mxu0 %v110
    %2672 = vmatpush1.msra.mxu0 %v109
    %2673 = vmatprep.subr.mxu0 %v114
    %2674 = vmatpush1.msra.mxu0 %v113
    %2675 = vmatprep.subr.mxu0 %v118
    %2676 = vmatpush1.msra.mxu0 %v117
    %2677 = vmatprep.subr.mxu0 %v122
    %2678 = vmatpush1.msra.mxu0 %v121
    %2679 = vmatprep.subr.mxu0 %v126
    %2680 = vmatpush1.msra.mxu0 %v125
    %2681 = vmatprep.subr.mxu0 %v130
    %2682 = vmatpush1.msra.mxu0 %v129
    %2683 = vmatprep.subr.mxu0 %v134
    %2684 = vmatpush1.msra.mxu0 %v133
    %2685 = vmatprep.subr.mxu0 0.0
    %2686 = vmatpush1.msra.mxu0 0.0
    %2687 = vmatprep.subr.mxu0 0.0
    %2688 = vmatpush1.msra.mxu0 0.0
    %2689 = vmatprep.subr.mxu0 0.0
    %2690 = vmatpush1.msra.mxu0 0.0
    %2691 = vmatprep.subr.mxu0 0.0
    %2692 = vmatpush1.msra.mxu0 0.0
    %2693 = vmatprep.subr.mxu0 0.0
    %2694 = vmatpush1.msra.mxu0 0.0
    %2695 = vmatprep.subr.mxu0 0.0
    %2696 = vmatpush1.msra.mxu0 0.0
    %2697 = vmatprep.subr.mxu0 0.0
    %2698 = vmatpush1.msra.mxu0 0.0
    %2699 = vmatprep.subr.mxu0 0.0
    %2700 = vmatpush1.msra.mxu0 0.0
    %2701 = vmatprep.subr.mxu0 0.0
    %2702 = vmatpush1.msra.mxu0 0.0
    %2703 = vmatprep.subr.mxu0 0.0
    %2704 = vmatpush1.msra.mxu0 0.0
    %2705 = vmatprep.subr.mxu0 0.0
    %2706 = vmatpush1.msra.mxu0 0.0
    %2707 = vmatprep.subr.mxu0 0.0
    %2708 = vmatpush1.msra.mxu0 0.0
    %2709 = vmatprep.subr.mxu0 0.0
    %2710 = vmatpush1.msra.mxu0 0.0
    %2711 = vmatprep.subr.mxu0 0.0
    %2712 = vmatpush1.msra.mxu0 0.0
    %2713 = vmatprep.subr.mxu0 0.0
    %2714 = vmatpush1.msra.mxu0 0.0
    %2715 = vmatprep.subr.mxu0 0.0
    %2716 = vmatpush1.msra.mxu0 0.0
    %2717 = vmatprep.mubr.f32.mxu0 0.0
    %2718 = vmatmul.mubr.f32.gmra.mrb[0].mxu0 %v2340
    %v2719 = vpop.f32.mrb[0].mxu0
    %v2720 = vadd.f32 0.0, %v2719
    %v2721 = vpop.f32.mrb[0].mxu0
    %v2722 = vadd.f32 0.0, %v2721
    %2723 = vdwg.mxu0
    %2724 = vmatprep.subr.mxu0 %v76
    %2725 = vmatpush1.msra.mxu0 %v75
    %2726 = vmatprep.subr.mxu0 %v80
    %2727 = vmatpush1.msra.mxu0 %v79
    %2728 = vmatprep.subr.mxu0 %v84
    %2729 = vmatpush1.msra.mxu0 %v83
    %2730 = vmatprep.subr.mxu0 %v88
    %2731 = vmatpush1.msra.mxu0 %v87
    %2732 = vmatprep.subr.mxu0 %v92
    %2733 = vmatpush1.msra.mxu0 %v91
    %2734 = vmatprep.subr.mxu0 %v96
    %2735 = vmatpush1.msra.mxu0 %v95
    %2736 = vmatprep.subr.mxu0 %v100
    %2737 = vmatpush1.msra.mxu0 %v99
    %2738 = vmatprep.subr.mxu0 %v104
    %2739 = vmatpush1.msra.mxu0 %v103
    %2740 = vmatprep.subr.mxu0 %v108
    %2741 = vmatpush1.msra.mxu0 %v107
    %2742 = vmatprep.subr.mxu0 %v112
    %2743 = vmatpush1.msra.mxu0 %v111
    %2744 = vmatprep.subr.mxu0 %v116
    %2745 = vmatpush1.msra.mxu0 %v115
    %2746 = vmatprep.subr.mxu0 %v120
    %2747 = vmatpush1.msra.mxu0 %v119
    %2748 = vmatprep.subr.mxu0 %v124
    %2749 = vmatpush1.msra.mxu0 %v123
    %2750 = vmatprep.subr.mxu0 %v128
    %2751 = vmatpush1.msra.mxu0 %v127
    %2752 = vmatprep.subr.mxu0 %v132
    %2753 = vmatpush1.msra.mxu0 %v131
    %2754 = vmatprep.subr.mxu0 %v136
    %2755 = vmatpush1.msra.mxu0 %v135
    %2756 = vmatprep.subr.mxu0 0.0
    %2757 = vmatpush1.msra.mxu0 0.0
    %2758 = vmatprep.subr.mxu0 0.0
    %2759 = vmatpush1.msra.mxu0 0.0
    %2760 = vmatprep.subr.mxu0 0.0
    %2761 = vmatpush1.msra.mxu0 0.0
    %2762 = vmatprep.subr.mxu0 0.0
    %2763 = vmatpush1.msra.mxu0 0.0
    %2764 = vmatprep.subr.mxu0 0.0
    %2765 = vmatpush1.msra.mxu0 0.0
    %2766 = vmatprep.subr.mxu0 0.0
    %2767 = vmatpush1.msra.mxu0 0.0
    %2768 = vmatprep.subr.mxu0 0.0
    %2769 = vmatpush1.msra.mxu0 0.0
    %2770 = vmatprep.subr.mxu0 0.0
    %2771 = vmatpush1.msra.mxu0 0.0
    %2772 = vmatprep.subr.mxu0 0.0
    %2773 = vmatpush1.msra.mxu0 0.0
    %2774 = vmatprep.subr.mxu0 0.0
    %2775 = vmatpush1.msra.mxu0 0.0
    %2776 = vmatprep.subr.mxu0 0.0
    %2777 = vmatpush1.msra.mxu0 0.0
    %2778 = vmatprep.subr.mxu0 0.0
    %2779 = vmatpush1.msra.mxu0 0.0
    %2780 = vmatprep.subr.mxu0 0.0
    %2781 = vmatpush1.msra.mxu0 0.0
    %2782 = vmatprep.subr.mxu0 0.0
    %2783 = vmatpush1.msra.mxu0 0.0
    %2784 = vmatprep.subr.mxu0 0.0
    %2785 = vmatpush1.msra.mxu0 0.0
    %2786 = vmatprep.subr.mxu0 0.0
    %2787 = vmatpush1.msra.mxu0 0.0
    %2788 = vmatprep.mubr.f32.mxu0 0.0
    %2789 = vmatmul.mubr.f32.gmra.mrb[0].mxu0 %v2340
    %v2790 = vpop.f32.mrb[0].mxu0
    %v2791 = vadd.f32 0.0, %v2790
    %v2792 = vpop.f32.mrb[0].mxu0
    %v2793 = vadd.f32 0.0, %v2792
    %2794 = vdwg.mxu0
    %v2795 = vadd.f32 %v448, %v2720
    %v2796 = vadd.f32 %v450, %v2722
    %v2797 = vadd.f32 %v561, %v2791
    %v2798 = vadd.f32 %v563, %v2793
    %v2799 = vxor.u32 %v2795, 2147483648
    %v2800 = vxor.u32 %v2796, 2147483648
    %v2801 = vxor.u32 %v2797, 2147483648
    %v2802 = vmul.f32 %v2799, 1.442695
    %v2803 = vpow.pop %v2802
    %v2804 = vmul.f32 %v2800, 1.442695
    %v2805 = vpow.pop %v2804
    %v2806 = vmul.f32 %v2801, 1.442695
    %v2807 = vpow.pop %v2806
    %v2808 = vadd.f32 %v2803, 1.0
    %v2809 = vadd.f32 %v2805, 1.0
    %v2810 = vadd.f32 %v2807, 1.0
    %v2811 = vrcp.pop %v2808
    %v2812 = vmul.f32 1.0, %v2811
    %v2813 = vrcp.pop %v2809
    %v2814 = vmul.f32 1.0, %v2813
    %v2815 = vrcp.pop %v2810
    %v2816 = vmul.f32 1.0, %v2815
    %v2817 = vtanh.pop %v2798
    %v2818 = vmul.f32 %v2814, %v2338
    %v2819 = vmul.f32 %v2812, %v2817
    %v2820 = vadd.f32 %v2818, %v2819
    %v2821 = vtanh.pop %v2820
    %v2822 = vmul.f32 %v2816, %v2821
    %2823 = vmatprep.subr.mxu0 %v138
    %2824 = vmatpush1.msra.mxu0 %v137
    %2825 = vmatprep.subr.mxu0 %v142
    %2826 = vmatpush1.msra.mxu0 %v141
    %2827 = vmatprep.subr.mxu0 %v146
    %2828 = vmatpush1.msra.mxu0 %v145
    %2829 = vmatprep.subr.mxu0 %v150
    %2830 = vmatpush1.msra.mxu0 %v149
    %2831 = vmatprep.subr.mxu0 %v154
    %2832 = vmatpush1.msra.mxu0 %v153
    %2833 = vmatprep.subr.mxu0 %v158
    %2834 = vmatpush1.msra.mxu0 %v157
    %2835 = vmatprep.subr.mxu0 %v162
    %2836 = vmatpush1.msra.mxu0 %v161
    %2837 = vmatprep.subr.mxu0 %v166
    %2838 = vmatpush1.msra.mxu0 %v165
    %2839 = vmatprep.subr.mxu0 %v170
    %2840 = vmatpush1.msra.mxu0 %v169
    %2841 = vmatprep.subr.mxu0 %v174
    %2842 = vmatpush1.msra.mxu0 %v173
    %2843 = vmatprep.subr.mxu0 %v178
    %2844 = vmatpush1.msra.mxu0 %v177
    %2845 = vmatprep.subr.mxu0 %v182
    %2846 = vmatpush1.msra.mxu0 %v181
    %2847 = vmatprep.subr.mxu0 %v186
    %2848 = vmatpush1.msra.mxu0 %v185
    %2849 = vmatprep.subr.mxu0 %v190
    %2850 = vmatpush1.msra.mxu0 %v189
    %2851 = vmatprep.subr.mxu0 %v194
    %2852 = vmatpush1.msra.mxu0 %v193
    %2853 = vmatprep.subr.mxu0 %v198
    %2854 = vmatpush1.msra.mxu0 %v197
    %2855 = vmatprep.subr.mxu0 0.0
    %2856 = vmatpush1.msra.mxu0 0.0
    %2857 = vmatprep.subr.mxu0 0.0
    %2858 = vmatpush1.msra.mxu0 0.0
    %2859 = vmatprep.subr.mxu0 0.0
    %2860 = vmatpush1.msra.mxu0 0.0
    %2861 = vmatprep.subr.mxu0 0.0
    %2862 = vmatpush1.msra.mxu0 0.0
    %2863 = vmatprep.subr.mxu0 0.0
    %2864 = vmatpush1.msra.mxu0 0.0
    %2865 = vmatprep.subr.mxu0 0.0
    %2866 = vmatpush1.msra.mxu0 0.0
    %2867 = vmatprep.subr.mxu0 0.0
    %2868 = vmatpush1.msra.mxu0 0.0
    %2869 = vmatprep.subr.mxu0 0.0
    %2870 = vmatpush1.msra.mxu0 0.0
    %2871 = vmatprep.subr.mxu0 0.0
    %2872 = vmatpush1.msra.mxu0 0.0
    %2873 = vmatprep.subr.mxu0 0.0
    %2874 = vmatpush1.msra.mxu0 0.0
    %2875 = vmatprep.subr.mxu0 0.0
    %2876 = vmatpush1.msra.mxu0 0.0
    %2877 = vmatprep.subr.mxu0 0.0
    %2878 = vmatpush1.msra.mxu0 0.0
    %2879 = vmatprep.subr.mxu0 0.0
    %2880 = vmatpush1.msra.mxu0 0.0
    %2881 = vmatprep.subr.mxu0 0.0
    %2882 = vmatpush1.msra.mxu0 0.0
    %2883 = vmatprep.subr.mxu0 0.0
    %2884 = vmatpush1.msra.mxu0 0.0
    %2885 = vmatprep.subr.mxu0 0.0
    %2886 = vmatpush1.msra.mxu0 0.0
    %2887 = vmatprep.mubr.f32.mxu0 0.0
    %2888 = vmatmul.mubr.f32.gmra.mrb[0].mxu0 %v2822
    %v2889 = vpop.f32.mrb[0].mxu0
    %v2890 = vadd.f32 %v2578, %v2889
    %v2891 = vpop.f32.mrb[0].mxu0
    %v2892 = vadd.f32 %v2580, %v2891
    %2893 = vdwg.mxu0
    %2894 = vmatprep.subr.mxu0 %v140
    %2895 = vmatpush1.msra.mxu0 %v139
    %2896 = vmatprep.subr.mxu0 %v144
    %2897 = vmatpush1.msra.mxu0 %v143
    %2898 = vmatprep.subr.mxu0 %v148
    %2899 = vmatpush1.msra.mxu0 %v147
    %2900 = vmatprep.subr.mxu0 %v152
    %2901 = vmatpush1.msra.mxu0 %v151
    %2902 = vmatprep.subr.mxu0 %v156
    %2903 = vmatpush1.msra.mxu0 %v155
    %2904 = vmatprep.subr.mxu0 %v160
    %2905 = vmatpush1.msra.mxu0 %v159
    %2906 = vmatprep.subr.mxu0 %v164
    %2907 = vmatpush1.msra.mxu0 %v163
    %2908 = vmatprep.subr.mxu0 %v168
    %2909 = vmatpush1.msra.mxu0 %v167
    %2910 = vmatprep.subr.mxu0 %v172
    %2911 = vmatpush1.msra.mxu0 %v171
    %2912 = vmatprep.subr.mxu0 %v176
    %2913 = vmatpush1.msra.mxu0 %v175
    %2914 = vmatprep.subr.mxu0 %v180
    %2915 = vmatpush1.msra.mxu0 %v179
    %2916 = vmatprep.subr.mxu0 %v184
    %2917 = vmatpush1.msra.mxu0 %v183
    %2918 = vmatprep.subr.mxu0 %v188
    %2919 = vmatpush1.msra.mxu0 %v187
    %2920 = vmatprep.subr.mxu0 %v192
    %2921 = vmatpush1.msra.mxu0 %v191
    %2922 = vmatprep.subr.mxu0 %v196
    %2923 = vmatpush1.msra.mxu0 %v195
    %2924 = vmatprep.subr.mxu0 %v200
    %2925 = vmatpush1.msra.mxu0 %v199
    %2926 = vmatprep.subr.mxu0 0.0
    %2927 = vmatpush1.msra.mxu0 0.0
    %2928 = vmatprep.subr.mxu0 0.0
    %2929 = vmatpush1.msra.mxu0 0.0
    %2930 = vmatprep.subr.mxu0 0.0
    %2931 = vmatpush1.msra.mxu0 0.0
    %2932 = vmatprep.subr.mxu0 0.0
    %2933 = vmatpush1.msra.mxu0 0.0
    %2934 = vmatprep.subr.mxu0 0.0
    %2935 = vmatpush1.msra.mxu0 0.0
    %2936 = vmatprep.subr.mxu0 0.0
    %2937 = vmatpush1.msra.mxu0 0.0
    %2938 = vmatprep.subr.mxu0 0.0
    %2939 = vmatpush1.msra.mxu0 0.0
    %2940 = vmatprep.subr.mxu0 0.0
    %2941 = vmatpush1.msra.mxu0 0.0
    %2942 = vmatprep.subr.mxu0 0.0
    %2943 = vmatpush1.msra.mxu0 0.0
    %2944 = vmatprep.subr.mxu0 0.0
    %2945 = vmatpush1.msra.mxu0 0.0
    %2946 = vmatprep.subr.mxu0 0.0
    %2947 = vmatpush1.msra.mxu0 0.0
    %2948 = vmatprep.subr.mxu0 0.0
    %2949 = vmatpush1.msra.mxu0 0.0
    %2950 = vmatprep.subr.mxu0 0.0
    %2951 = vmatpush1.msra.mxu0 0.0
    %2952 = vmatprep.subr.mxu0 0.0
    %2953 = vmatpush1.msra.mxu0 0.0
    %2954 = vmatprep.subr.mxu0 0.0
    %2955 = vmatpush1.msra.mxu0 0.0
    %2956 = vmatprep.subr.mxu0 0.0
    %2957 = vmatpush1.msra.mxu0 0.0
    %2958 = vmatprep.mubr.f32.mxu0 0.0
    %2959 = vmatmul.mubr.f32.gmra.mrb[0].mxu0 %v2822
    %v2960 = vpop.f32.mrb[0].mxu0
    %v2961 = vadd.f32 %v2649, %v2960
    %v2962 = vpop.f32.mrb[0].mxu0
    %v2963 = vadd.f32 %v2651, %v2962
    %2964 = vdwg.mxu0
    %v2965 = vadd.f32 %v2890, %v270
    %v2966 = vadd.f32 %v2892, %v274
    %v2967 = vadd.f32 %v2961, %v278
    %v2968 = vadd.f32 %v2963, %v282
    %v2969 = vxor.u32 %v2965, 2147483648
    %v2970 = vxor.u32 %v2966, 2147483648
    %v2971 = vxor.u32 %v2967, 2147483648
    %v2972 = vmul.f32 %v2969, 1.442695
    %v2973 = vpow.pop %v2972
    %v2974 = vmul.f32 %v2970, 1.442695
    %v2975 = vpow.pop %v2974
    %v2976 = vmul.f32 %v2971, 1.442695
    %v2977 = vpow.pop %v2976
    %v2978 = vadd.f32 %v2973, 1.0
    %v2979 = vadd.f32 %v2975, 1.0
    %v2980 = vadd.f32 %v2977, 1.0
    %v2981 = vrcp.pop %v2978
    %v2982 = vmul.f32 1.0, %v2981
    %v2983 = vrcp.pop %v2979
    %v2984 = vmul.f32 1.0, %v2983
    %v2985 = vrcp.pop %v2980
    %v2986 = vmul.f32 1.0, %v2985
    %v2987 = vtanh.pop %v2968
    %v2988 = vmul.f32 %v2984, %v2508
    %v2989 = vmul.f32 %v2982, %v2987
    %v2990 = vadd.f32 %v2988, %v2989
    %v2991 = vtanh.pop %v2990
    %v2992 = vmul.f32 %v2986, %v2991
    %2993 = vmatprep.subr.mxu0 %v202
    %2994 = vmatpush1.msra.mxu0 %v201
    %2995 = vmatprep.subr.mxu0 %v206
    %2996 = vmatpush1.msra.mxu0 %v205
    %2997 = vmatprep.subr.mxu0 %v210
    %2998 = vmatpush1.msra.mxu0 %v209
    %2999 = vmatprep.subr.mxu0 %v214
    %3000 = vmatpush1.msra.mxu0 %v213
    %3001 = vmatprep.subr.mxu0 %v218
    %3002 = vmatpush1.msra.mxu0 %v217
    %3003 = vmatprep.subr.mxu0 %v222
    %3004 = vmatpush1.msra.mxu0 %v221
    %3005 = vmatprep.subr.mxu0 %v226
    %3006 = vmatpush1.msra.mxu0 %v225
    %3007 = vmatprep.subr.mxu0 %v230
    %3008 = vmatpush1.msra.mxu0 %v229
    %3009 = vmatprep.subr.mxu0 %v234
    %3010 = vmatpush1.msra.mxu0 %v233
    %3011 = vmatprep.subr.mxu0 %v238
    %3012 = vmatpush1.msra.mxu0 %v237
    %3013 = vmatprep.subr.mxu0 %v242
    %3014 = vmatpush1.msra.mxu0 %v241
    %3015 = vmatprep.subr.mxu0 %v246
    %3016 = vmatpush1.msra.mxu0 %v245
    %3017 = vmatprep.subr.mxu0 %v250
    %3018 = vmatpush1.msra.mxu0 %v249
    %3019 = vmatprep.subr.mxu0 %v254
    %3020 = vmatpush1.msra.mxu0 %v253
    %3021 = vmatprep.subr.mxu0 %v258
    %3022 = vmatpush1.msra.mxu0 %v257
    %3023 = vmatprep.subr.mxu0 %v262
    %3024 = vmatpush1.msra.mxu0 %v261
    %3025 = vmatprep.subr.mxu0 0.0
    %3026 = vmatpush1.msra.mxu0 0.0
    %3027 = vmatprep.subr.mxu0 0.0
    %3028 = vmatpush1.msra.mxu0 0.0
    %3029 = vmatprep.subr.mxu0 0.0
    %3030 = vmatpush1.msra.mxu0 0.0
    %3031 = vmatprep.subr.mxu0 0.0
    %3032 = vmatpush1.msra.mxu0 0.0
    %3033 = vmatprep.subr.mxu0 0.0
    %3034 = vmatpush1.msra.mxu0 0.0
    %3035 = vmatprep.subr.mxu0 0.0
    %3036 = vmatpush1.msra.mxu0 0.0
    %3037 = vmatprep.subr.mxu0 0.0
    %3038 = vmatpush1.msra.mxu0 0.0
    %3039 = vmatprep.subr.mxu0 0.0
    %3040 = vmatpush1.msra.mxu0 0.0
    %3041 = vmatprep.subr.mxu0 0.0
    %3042 = vmatpush1.msra.mxu0 0.0
    %3043 = vmatprep.subr.mxu0 0.0
    %3044 = vmatpush1.msra.mxu0 0.0
    %3045 = vmatprep.subr.mxu0 0.0
    %3046 = vmatpush1.msra.mxu0 0.0
    %3047 = vmatprep.subr.mxu0 0.0
    %3048 = vmatpush1.msra.mxu0 0.0
    %3049 = vmatprep.subr.mxu0 0.0
    %3050 = vmatpush1.msra.mxu0 0.0
    %3051 = vmatprep.subr.mxu0 0.0
    %3052 = vmatpush1.msra.mxu0 0.0
    %3053 = vmatprep.subr.mxu0 0.0
    %3054 = vmatpush1.msra.mxu0 0.0
    %3055 = vmatprep.subr.mxu0 0.0
    %3056 = vmatpush1.msra.mxu0 0.0
    %3057 = vmatprep.mubr.f32.mxu0 0.0
    %3058 = vmatmul.mubr.f32.gmra.mrb[0].mxu0 %v2992
    %v3059 = vpop.f32.mrb[0].mxu0
    %v3060 = vadd.f32 0.0, %v3059
    %v3061 = vpop.f32.mrb[0].mxu0
    %v3062 = vadd.f32 0.0, %v3061
    %3063 = vdwg.mxu0
    %3064 = vmatprep.subr.mxu0 %v204
    %3065 = vmatpush1.msra.mxu0 %v203
    %3066 = vmatprep.subr.mxu0 %v208
    %3067 = vmatpush1.msra.mxu0 %v207
    %3068 = vmatprep.subr.mxu0 %v212
    %3069 = vmatpush1.msra.mxu0 %v211
    %3070 = vmatprep.subr.mxu0 %v216
    %3071 = vmatpush1.msra.mxu0 %v215
    %3072 = vmatprep.subr.mxu0 %v220
    %3073 = vmatpush1.msra.mxu0 %v219
    %3074 = vmatprep.subr.mxu0 %v224
    %3075 = vmatpush1.msra.mxu0 %v223
    %3076 = vmatprep.subr.mxu0 %v228
    %3077 = vmatpush1.msra.mxu0 %v227
    %3078 = vmatprep.subr.mxu0 %v232
    %3079 = vmatpush1.msra.mxu0 %v231
    %3080 = vmatprep.subr.mxu0 %v236
    %3081 = vmatpush1.msra.mxu0 %v235
    %3082 = vmatprep.subr.mxu0 %v240
    %3083 = vmatpush1.msra.mxu0 %v239
    %3084 = vmatprep.subr.mxu0 %v244
    %3085 = vmatpush1.msra.mxu0 %v243
    %3086 = vmatprep.subr.mxu0 %v248
    %3087 = vmatpush1.msra.mxu0 %v247
    %3088 = vmatprep.subr.mxu0 %v252
    %3089 = vmatpush1.msra.mxu0 %v251
    %3090 = vmatprep.subr.mxu0 %v256
    %3091 = vmatpush1.msra.mxu0 %v255
    %3092 = vmatprep.subr.mxu0 %v260
    %3093 = vmatpush1.msra.mxu0 %v259
    %3094 = vmatprep.subr.mxu0 %v264
    %3095 = vmatpush1.msra.mxu0 %v263
    %3096 = vmatprep.subr.mxu0 0.0
    %3097 = vmatpush1.msra.mxu0 0.0
    %3098 = vmatprep.subr.mxu0 0.0
    %3099 = vmatpush1.msra.mxu0 0.0
    %3100 = vmatprep.subr.mxu0 0.0
    %3101 = vmatpush1.msra.mxu0 0.0
    %3102 = vmatprep.subr.mxu0 0.0
    %3103 = vmatpush1.msra.mxu0 0.0
    %3104 = vmatprep.subr.mxu0 0.0
    %3105 = vmatpush1.msra.mxu0 0.0
    %3106 = vmatprep.subr.mxu0 0.0
    %3107 = vmatpush1.msra.mxu0 0.0
    %3108 = vmatprep.subr.mxu0 0.0
    %3109 = vmatpush1.msra.mxu0 0.0
    %3110 = vmatprep.subr.mxu0 0.0
    %3111 = vmatpush1.msra.mxu0 0.0
    %3112 = vmatprep.subr.mxu0 0.0
    %3113 = vmatpush1.msra.mxu0 0.0
    %3114 = vmatprep.subr.mxu0 0.0
    %3115 = vmatpush1.msra.mxu0 0.0
    %3116 = vmatprep.subr.mxu0 0.0
    %3117 = vmatpush1.msra.mxu0 0.0
    %3118 = vmatprep.subr.mxu0 0.0
    %3119 = vmatpush1.msra.mxu0 0.0
    %3120 = vmatprep.subr.mxu0 0.0
    %3121 = vmatpush1.msra.mxu0 0.0
    %3122 = vmatprep.subr.mxu0 0.0
    %3123 = vmatpush1.msra.mxu0 0.0
    %3124 = vmatprep.subr.mxu0 0.0
    %3125 = vmatpush1.msra.mxu0 0.0
    %3126 = vmatprep.subr.mxu0 0.0
    %3127 = vmatpush1.msra.mxu0 0.0
    %3128 = vmatprep.mubr.f32.mxu0 0.0
    %3129 = vmatmul.mubr.f32.gmra.mrb[0].mxu0 %v2992
    %v3130 = vpop.f32.mrb[0].mxu0
    %v3131 = vadd.f32 0.0, %v3130
    %v3132 = vpop.f32.mrb[0].mxu0
    %v3133 = vadd.f32 0.0, %v3132
    %3134 = vdwg.mxu0
    %3135 = vmatprep.subr.mxu0 %v74
    %3136 = vmatpush1.msra.mxu0 %v73
    %3137 = vmatprep.subr.mxu0 %v78
    %3138 = vmatpush1.msra.mxu0 %v77
    %3139 = vmatprep.subr.mxu0 %v82
    %3140 = vmatpush1.msra.mxu0 %v81
    %3141 = vmatprep.subr.mxu0 %v86
    %3142 = vmatpush1.msra.mxu0 %v85
    %3143 = vmatprep.subr.mxu0 %v90
    %3144 = vmatpush1.msra.mxu0 %v89
    %3145 = vmatprep.subr.mxu0 %v94
    %3146 = vmatpush1.msra.mxu0 %v93
    %3147 = vmatprep.subr.mxu0 %v98
    %3148 = vmatpush1.msra.mxu0 %v97
    %3149 = vmatprep.subr.mxu0 %v102
    %3150 = vmatpush1.msra.mxu0 %v101
    %3151 = vmatprep.subr.mxu0 %v106
    %3152 = vmatpush1.msra.mxu0 %v105
    %3153 = vmatprep.subr.mxu0 %v110
    %3154 = vmatpush1.msra.mxu0 %v109
    %3155 = vmatprep.subr.mxu0 %v114
    %3156 = vmatpush1.msra.mxu0 %v113
    %3157 = vmatprep.subr.mxu0 %v118
    %3158 = vmatpush1.msra.mxu0 %v117
    %3159 = vmatprep.subr.mxu0 %v122
    %3160 = vmatpush1.msra.mxu0 %v121
    %3161 = vmatprep.subr.mxu0 %v126
    %3162 = vmatpush1.msra.mxu0 %v125
    %3163 = vmatprep.subr.mxu0 %v130
    %3164 = vmatpush1.msra.mxu0 %v129
    %3165 = vmatprep.subr.mxu0 %v134
    %3166 = vmatpush1.msra.mxu0 %v133
    %3167 = vmatprep.subr.mxu0 0.0
    %3168 = vmatpush1.msra.mxu0 0.0
    %3169 = vmatprep.subr.mxu0 0.0
    %3170 = vmatpush1.msra.mxu0 0.0
    %3171 = vmatprep.subr.mxu0 0.0
    %3172 = vmatpush1.msra.mxu0 0.0
    %3173 = vmatprep.subr.mxu0 0.0
    %3174 = vmatpush1.msra.mxu0 0.0
    %3175 = vmatprep.subr.mxu0 0.0
    %3176 = vmatpush1.msra.mxu0 0.0
    %3177 = vmatprep.subr.mxu0 0.0
    %3178 = vmatpush1.msra.mxu0 0.0
    %3179 = vmatprep.subr.mxu0 0.0
    %3180 = vmatpush1.msra.mxu0 0.0
    %3181 = vmatprep.subr.mxu0 0.0
    %3182 = vmatpush1.msra.mxu0 0.0
    %3183 = vmatprep.subr.mxu0 0.0
    %3184 = vmatpush1.msra.mxu0 0.0
    %3185 = vmatprep.subr.mxu0 0.0
    %3186 = vmatpush1.msra.mxu0 0.0
    %3187 = vmatprep.subr.mxu0 0.0
    %3188 = vmatpush1.msra.mxu0 0.0
    %3189 = vmatprep.subr.mxu0 0.0
    %3190 = vmatpush1.msra.mxu0 0.0
    %3191 = vmatprep.subr.mxu0 0.0
    %3192 = vmatpush1.msra.mxu0 0.0
    %3193 = vmatprep.subr.mxu0 0.0
    %3194 = vmatpush1.msra.mxu0 0.0
    %3195 = vmatprep.subr.mxu0 0.0
    %3196 = vmatpush1.msra.mxu0 0.0
    %3197 = vmatprep.subr.mxu0 0.0
    %3198 = vmatpush1.msra.mxu0 0.0
    %3199 = vmatprep.mubr.f32.mxu0 0.0
    %3200 = vmatmul.mubr.f32.gmra.mrb[0].mxu0 %v2822
    %v3201 = vpop.f32.mrb[0].mxu0
    %v3202 = vadd.f32 0.0, %v3201
    %v3203 = vpop.f32.mrb[0].mxu0
    %v3204 = vadd.f32 0.0, %v3203
    %3205 = vdwg.mxu0
    %3206 = vmatprep.subr.mxu0 %v76
    %3207 = vmatpush1.msra.mxu0 %v75
    %3208 = vmatprep.subr.mxu0 %v80
    %3209 = vmatpush1.msra.mxu0 %v79
    %3210 = vmatprep.subr.mxu0 %v84
    %3211 = vmatpush1.msra.mxu0 %v83
    %3212 = vmatprep.subr.mxu0 %v88
    %3213 = vmatpush1.msra.mxu0 %v87
    %3214 = vmatprep.subr.mxu0 %v92
    %3215 = vmatpush1.msra.mxu0 %v91
    %3216 = vmatprep.subr.mxu0 %v96
    %3217 = vmatpush1.msra.mxu0 %v95
    %3218 = vmatprep.subr.mxu0 %v100
    %3219 = vmatpush1.msra.mxu0 %v99
    %3220 = vmatprep.subr.mxu0 %v104
    %3221 = vmatpush1.msra.mxu0 %v103
    %3222 = vmatprep.subr.mxu0 %v108
    %3223 = vmatpush1.msra.mxu0 %v107
    %3224 = vmatprep.subr.mxu0 %v112
    %3225 = vmatpush1.msra.mxu0 %v111
    %3226 = vmatprep.subr.mxu0 %v116
    %3227 = vmatpush1.msra.mxu0 %v115
    %3228 = vmatprep.subr.mxu0 %v120
    %3229 = vmatpush1.msra.mxu0 %v119
    %3230 = vmatprep.subr.mxu0 %v124
    %3231 = vmatpush1.msra.mxu0 %v123
    %3232 = vmatprep.subr.mxu0 %v128
    %3233 = vmatpush1.msra.mxu0 %v127
    %3234 = vmatprep.subr.mxu0 %v132
    %3235 = vmatpush1.msra.mxu0 %v131
    %3236 = vmatprep.subr.mxu0 %v136
    %3237 = vmatpush1.msra.mxu0 %v135
    %3238 = vmatprep.subr.mxu0 0.0
    %3239 = vmatpush1.msra.mxu0 0.0
    %3240 = vmatprep.subr.mxu0 0.0
    %3241 = vmatpush1.msra.mxu0 0.0
    %3242 = vmatprep.subr.mxu0 0.0
    %3243 = vmatpush1.msra.mxu0 0.0
    %3244 = vmatprep.subr.mxu0 0.0
    %3245 = vmatpush1.msra.mxu0 0.0
    %3246 = vmatprep.subr.mxu0 0.0
    %3247 = vmatpush1.msra.mxu0 0.0
    %3248 = vmatprep.subr.mxu0 0.0
    %3249 = vmatpush1.msra.mxu0 0.0
    %3250 = vmatprep.subr.mxu0 0.0
    %3251 = vmatpush1.msra.mxu0 0.0
    %3252 = vmatprep.subr.mxu0 0.0
    %3253 = vmatpush1.msra.mxu0 0.0
    %3254 = vmatprep.subr.mxu0 0.0
    %3255 = vmatpush1.msra.mxu0 0.0
    %3256 = vmatprep.subr.mxu0 0.0
    %3257 = vmatpush1.msra.mxu0 0.0
    %3258 = vmatprep.subr.mxu0 0.0
    %3259 = vmatpush1.msra.mxu0 0.0
    %3260 = vmatprep.subr.mxu0 0.0
    %3261 = vmatpush1.msra.mxu0 0.0
    %3262 = vmatprep.subr.mxu0 0.0
    %3263 = vmatpush1.msra.mxu0 0.0
    %3264 = vmatprep.subr.mxu0 0.0
    %3265 = vmatpush1.msra.mxu0 0.0
    %3266 = vmatprep.subr.mxu0 0.0
    %3267 = vmatpush1.msra.mxu0 0.0
    %3268 = vmatprep.subr.mxu0 0.0
    %3269 = vmatpush1.msra.mxu0 0.0
    %3270 = vmatprep.mubr.f32.mxu0 0.0
    %3271 = vmatmul.mubr.f32.gmra.mrb[0].mxu0 %v2822
    %v3272 = vpop.f32.mrb[0].mxu0
    %v3273 = vadd.f32 0.0, %v3272
    %v3274 = vpop.f32.mrb[0].mxu0
    %v3275 = vadd.f32 0.0, %v3274
    %3276 = vdwg.mxu0
    %v3277 = vadd.f32 %v454, %v3202
    %v3278 = vadd.f32 %v456, %v3204
    %v3279 = vadd.f32 %v567, %v3273
    %v3280 = vadd.f32 %v569, %v3275
    %v3281 = vxor.u32 %v3277, 2147483648
    %v3282 = vxor.u32 %v3278, 2147483648
    %v3283 = vxor.u32 %v3279, 2147483648
    %v3284 = vmul.f32 %v3281, 1.442695
    %v3285 = vpow.pop %v3284
    %v3286 = vmul.f32 %v3282, 1.442695
    %v3287 = vpow.pop %v3286
    %v3288 = vmul.f32 %v3283, 1.442695
    %v3289 = vpow.pop %v3288
    %v3290 = vadd.f32 %v3285, 1.0
    %v3291 = vadd.f32 %v3287, 1.0
    %v3292 = vadd.f32 %v3289, 1.0
    %v3293 = vrcp.pop %v3290
    %v3294 = vmul.f32 1.0, %v3293
    %v3295 = vrcp.pop %v3291
    %v3296 = vmul.f32 1.0, %v3295
    %v3297 = vrcp.pop %v3292
    %v3298 = vmul.f32 1.0, %v3297
    %v3299 = vtanh.pop %v3280
    %v3300 = vmul.f32 %v3296, %v2820
    %v3301 = vmul.f32 %v3294, %v3299
    %v3302 = vadd.f32 %v3300, %v3301
    %v3303 = vtanh.pop %v3302
    %v3304 = vmul.f32 %v3298, %v3303
    %3305 = vmatprep.subr.mxu0 %v138
    %3306 = vmatpush1.msra.mxu0 %v137
    %3307 = vmatprep.subr.mxu0 %v142
    %3308 = vmatpush1.msra.mxu0 %v141
    %3309 = vmatprep.subr.mxu0 %v146
    %3310 = vmatpush1.msra.mxu0 %v145
    %3311 = vmatprep.subr.mxu0 %v150
    %3312 = vmatpush1.msra.mxu0 %v149
    %3313 = vmatprep.subr.mxu0 %v154
    %3314 = vmatpush1.msra.mxu0 %v153
    %3315 = vmatprep.subr.mxu0 %v158
    %3316 = vmatpush1.msra.mxu0 %v157
    %3317 = vmatprep.subr.mxu0 %v162
    %3318 = vmatpush1.msra.mxu0 %v161
    %3319 = vmatprep.subr.mxu0 %v166
    %3320 = vmatpush1.msra.mxu0 %v165
    %3321 = vmatprep.subr.mxu0 %v170
    %3322 = vmatpush1.msra.mxu0 %v169
    %3323 = vmatprep.subr.mxu0 %v174
    %3324 = vmatpush1.msra.mxu0 %v173
    %3325 = vmatprep.subr.mxu0 %v178
    %3326 = vmatpush1.msra.mxu0 %v177
    %3327 = vmatprep.subr.mxu0 %v182
    %3328 = vmatpush1.msra.mxu0 %v181
    %3329 = vmatprep.subr.mxu0 %v186
    %3330 = vmatpush1.msra.mxu0 %v185
    %3331 = vmatprep.subr.mxu0 %v190
    %3332 = vmatpush1.msra.mxu0 %v189
    %3333 = vmatprep.subr.mxu0 %v194
    %3334 = vmatpush1.msra.mxu0 %v193
    %3335 = vmatprep.subr.mxu0 %v198
    %3336 = vmatpush1.msra.mxu0 %v197
    %3337 = vmatprep.subr.mxu0 0.0
    %3338 = vmatpush1.msra.mxu0 0.0
    %3339 = vmatprep.subr.mxu0 0.0
    %3340 = vmatpush1.msra.mxu0 0.0
    %3341 = vmatprep.subr.mxu0 0.0
    %3342 = vmatpush1.msra.mxu0 0.0
    %3343 = vmatprep.subr.mxu0 0.0
    %3344 = vmatpush1.msra.mxu0 0.0
    %3345 = vmatprep.subr.mxu0 0.0
    %3346 = vmatpush1.msra.mxu0 0.0
    %3347 = vmatprep.subr.mxu0 0.0
    %3348 = vmatpush1.msra.mxu0 0.0
    %3349 = vmatprep.subr.mxu0 0.0
    %3350 = vmatpush1.msra.mxu0 0.0
    %3351 = vmatprep.subr.mxu0 0.0
    %3352 = vmatpush1.msra.mxu0 0.0
    %3353 = vmatprep.subr.mxu0 0.0
    %3354 = vmatpush1.msra.mxu0 0.0
    %3355 = vmatprep.subr.mxu0 0.0
    %3356 = vmatpush1.msra.mxu0 0.0
    %3357 = vmatprep.subr.mxu0 0.0
    %3358 = vmatpush1.msra.mxu0 0.0
    %3359 = vmatprep.subr.mxu0 0.0
    %3360 = vmatpush1.msra.mxu0 0.0
    %3361 = vmatprep.subr.mxu0 0.0
    %3362 = vmatpush1.msra.mxu0 0.0
    %3363 = vmatprep.subr.mxu0 0.0
    %3364 = vmatpush1.msra.mxu0 0.0
    %3365 = vmatprep.subr.mxu0 0.0
    %3366 = vmatpush1.msra.mxu0 0.0
    %3367 = vmatprep.subr.mxu0 0.0
    %3368 = vmatpush1.msra.mxu0 0.0
    %3369 = vmatprep.mubr.f32.mxu0 0.0
    %3370 = vmatmul.mubr.f32.gmra.mrb[0].mxu0 %v3304
    %v3371 = vpop.f32.mrb[0].mxu0
    %v3372 = vadd.f32 %v3060, %v3371
    %v3373 = vpop.f32.mrb[0].mxu0
    %v3374 = vadd.f32 %v3062, %v3373
    %3375 = vdwg.mxu0
    %3376 = vmatprep.subr.mxu0 %v140
    %3377 = vmatpush1.msra.mxu0 %v139
    %3378 = vmatprep.subr.mxu0 %v144
    %3379 = vmatpush1.msra.mxu0 %v143
    %3380 = vmatprep.subr.mxu0 %v148
    %3381 = vmatpush1.msra.mxu0 %v147
    %3382 = vmatprep.subr.mxu0 %v152
    %3383 = vmatpush1.msra.mxu0 %v151
    %3384 = vmatprep.subr.mxu0 %v156
    %3385 = vmatpush1.msra.mxu0 %v155
    %3386 = vmatprep.subr.mxu0 %v160
    %3387 = vmatpush1.msra.mxu0 %v159
    %3388 = vmatprep.subr.mxu0 %v164
    %3389 = vmatpush1.msra.mxu0 %v163
    %3390 = vmatprep.subr.mxu0 %v168
    %3391 = vmatpush1.msra.mxu0 %v167
    %3392 = vmatprep.subr.mxu0 %v172
    %3393 = vmatpush1.msra.mxu0 %v171
    %3394 = vmatprep.subr.mxu0 %v176
    %3395 = vmatpush1.msra.mxu0 %v175
    %3396 = vmatprep.subr.mxu0 %v180
    %3397 = vmatpush1.msra.mxu0 %v179
    %3398 = vmatprep.subr.mxu0 %v184
    %3399 = vmatpush1.msra.mxu0 %v183
    %3400 = vmatprep.subr.mxu0 %v188
    %3401 = vmatpush1.msra.mxu0 %v187
    %3402 = vmatprep.subr.mxu0 %v192
    %3403 = vmatpush1.msra.mxu0 %v191
    %3404 = vmatprep.subr.mxu0 %v196
    %3405 = vmatpush1.msra.mxu0 %v195
    %3406 = vmatprep.subr.mxu0 %v200
    %3407 = vmatpush1.msra.mxu0 %v199
    %3408 = vmatprep.subr.mxu0 0.0
    %3409 = vmatpush1.msra.mxu0 0.0
    %3410 = vmatprep.subr.mxu0 0.0
    %3411 = vmatpush1.msra.mxu0 0.0
    %3412 = vmatprep.subr.mxu0 0.0
    %3413 = vmatpush1.msra.mxu0 0.0
    %3414 = vmatprep.subr.mxu0 0.0
    %3415 = vmatpush1.msra.mxu0 0.0
    %3416 = vmatprep.subr.mxu0 0.0
    %3417 = vmatpush1.msra.mxu0 0.0
    %3418 = vmatprep.subr.mxu0 0.0
    %3419 = vmatpush1.msra.mxu0 0.0
    %3420 = vmatprep.subr.mxu0 0.0
    %3421 = vmatpush1.msra.mxu0 0.0
    %3422 = vmatprep.subr.mxu0 0.0
    %3423 = vmatpush1.msra.mxu0 0.0
    %3424 = vmatprep.subr.mxu0 0.0
    %3425 = vmatpush1.msra.mxu0 0.0
    %3426 = vmatprep.subr.mxu0 0.0
    %3427 = vmatpush1.msra.mxu0 0.0
    %3428 = vmatprep.subr.mxu0 0.0
    %3429 = vmatpush1.msra.mxu0 0.0
    %3430 = vmatprep.subr.mxu0 0.0
    %3431 = vmatpush1.msra.mxu0 0.0
    %3432 = vmatprep.subr.mxu0 0.0
    %3433 = vmatpush1.msra.mxu0 0.0
    %3434 = vmatprep.subr.mxu0 0.0
    %3435 = vmatpush1.msra.mxu0 0.0
    %3436 = vmatprep.subr.mxu0 0.0
    %3437 = vmatpush1.msra.mxu0 0.0
    %3438 = vmatprep.subr.mxu0 0.0
    %3439 = vmatpush1.msra.mxu0 0.0
    %3440 = vmatprep.mubr.f32.mxu0 0.0
    %3441 = vmatmul.mubr.f32.gmra.mrb[0].mxu0 %v3304
    %v3442 = vpop.f32.mrb[0].mxu0
    %v3443 = vadd.f32 %v3131, %v3442
    %v3444 = vpop.f32.mrb[0].mxu0
    %v3445 = vadd.f32 %v3133, %v3444
    %3446 = vdwg.mxu0
    %v3447 = vadd.f32 %v3372, %v270
    %v3448 = vadd.f32 %v3374, %v274
    %v3449 = vadd.f32 %v3443, %v278
    %v3450 = vadd.f32 %v3445, %v282
    %v3451 = vxor.u32 %v3447, 2147483648
    %v3452 = vxor.u32 %v3448, 2147483648
    %v3453 = vxor.u32 %v3449, 2147483648
    %v3454 = vmul.f32 %v3451, 1.442695
    %v3455 = vpow.pop %v3454
    %v3456 = vmul.f32 %v3452, 1.442695
    %v3457 = vpow.pop %v3456
    %v3458 = vmul.f32 %v3453, 1.442695
    %v3459 = vpow.pop %v3458
    %v3460 = vadd.f32 %v3455, 1.0
    %v3461 = vadd.f32 %v3457, 1.0
    %v3462 = vadd.f32 %v3459, 1.0
    %v3463 = vrcp.pop %v3460
    %v3464 = vmul.f32 1.0, %v3463
    %v3465 = vrcp.pop %v3461
    %v3466 = vmul.f32 1.0, %v3465
    %v3467 = vrcp.pop %v3462
    %v3468 = vmul.f32 1.0, %v3467
    %v3469 = vtanh.pop %v3450
    %v3470 = vmul.f32 %v3466, %v2990
    %v3471 = vmul.f32 %v3464, %v3469
    %v3472 = vadd.f32 %v3470, %v3471
    %v3473 = vtanh.pop %v3472
    %v3474 = vmul.f32 %v3468, %v3473
    %3475 = vmatprep.subr.mxu0 %v202
    %3476 = vmatpush1.msra.mxu0 %v201
    %3477 = vmatprep.subr.mxu0 %v206
    %3478 = vmatpush1.msra.mxu0 %v205
    %3479 = vmatprep.subr.mxu0 %v210
    %3480 = vmatpush1.msra.mxu0 %v209
    %3481 = vmatprep.subr.mxu0 %v214
    %3482 = vmatpush1.msra.mxu0 %v213
    %3483 = vmatprep.subr.mxu0 %v218
    %3484 = vmatpush1.msra.mxu0 %v217
    %3485 = vmatprep.subr.mxu0 %v222
    %3486 = vmatpush1.msra.mxu0 %v221
    %3487 = vmatprep.subr.mxu0 %v226
    %3488 = vmatpush1.msra.mxu0 %v225
    %3489 = vmatprep.subr.mxu0 %v230
    %3490 = vmatpush1.msra.mxu0 %v229
    %3491 = vmatprep.subr.mxu0 %v234
    %3492 = vmatpush1.msra.mxu0 %v233
    %3493 = vmatprep.subr.mxu0 %v238
    %3494 = vmatpush1.msra.mxu0 %v237
    %3495 = vmatprep.subr.mxu0 %v242
    %3496 = vmatpush1.msra.mxu0 %v241
    %3497 = vmatprep.subr.mxu0 %v246
    %3498 = vmatpush1.msra.mxu0 %v245
    %3499 = vmatprep.subr.mxu0 %v250
    %3500 = vmatpush1.msra.mxu0 %v249
    %3501 = vmatprep.subr.mxu0 %v254
    %3502 = vmatpush1.msra.mxu0 %v253
    %3503 = vmatprep.subr.mxu0 %v258
    %3504 = vmatpush1.msra.mxu0 %v257
    %3505 = vmatprep.subr.mxu0 %v262
    %3506 = vmatpush1.msra.mxu0 %v261
    %3507 = vmatprep.subr.mxu0 0.0
    %3508 = vmatpush1.msra.mxu0 0.0
    %3509 = vmatprep.subr.mxu0 0.0
    %3510 = vmatpush1.msra.mxu0 0.0
    %3511 = vmatprep.subr.mxu0 0.0
    %3512 = vmatpush1.msra.mxu0 0.0
    %3513 = vmatprep.subr.mxu0 0.0
    %3514 = vmatpush1.msra.mxu0 0.0
    %3515 = vmatprep.subr.mxu0 0.0
    %3516 = vmatpush1.msra.mxu0 0.0
    %3517 = vmatprep.subr.mxu0 0.0
    %3518 = vmatpush1.msra.mxu0 0.0
    %3519 = vmatprep.subr.mxu0 0.0
    %3520 = vmatpush1.msra.mxu0 0.0
    %3521 = vmatprep.subr.mxu0 0.0
    %3522 = vmatpush1.msra.mxu0 0.0
    %3523 = vmatprep.subr.mxu0 0.0
    %3524 = vmatpush1.msra.mxu0 0.0
    %3525 = vmatprep.subr.mxu0 0.0
    %3526 = vmatpush1.msra.mxu0 0.0
    %3527 = vmatprep.subr.mxu0 0.0
    %3528 = vmatpush1.msra.mxu0 0.0
    %3529 = vmatprep.subr.mxu0 0.0
    %3530 = vmatpush1.msra.mxu0 0.0
    %3531 = vmatprep.subr.mxu0 0.0
    %3532 = vmatpush1.msra.mxu0 0.0
    %3533 = vmatprep.subr.mxu0 0.0
    %3534 = vmatpush1.msra.mxu0 0.0
    %3535 = vmatprep.subr.mxu0 0.0
    %3536 = vmatpush1.msra.mxu0 0.0
    %3537 = vmatprep.subr.mxu0 0.0
    %3538 = vmatpush1.msra.mxu0 0.0
    %3539 = vmatprep.mubr.f32.mxu0 0.0
    %3540 = vmatmul.mubr.f32.gmra.mrb[0].mxu0 %v3474
    %v3541 = vpop.f32.mrb[0].mxu0
    %v3542 = vadd.f32 0.0, %v3541
    %v3543 = vpop.f32.mrb[0].mxu0
    %v3544 = vadd.f32 0.0, %v3543
    %3545 = vdwg.mxu0
    %3546 = vmatprep.subr.mxu0 %v204
    %3547 = vmatpush1.msra.mxu0 %v203
    %3548 = vmatprep.subr.mxu0 %v208
    %3549 = vmatpush1.msra.mxu0 %v207
    %3550 = vmatprep.subr.mxu0 %v212
    %3551 = vmatpush1.msra.mxu0 %v211
    %3552 = vmatprep.subr.mxu0 %v216
    %3553 = vmatpush1.msra.mxu0 %v215
    %3554 = vmatprep.subr.mxu0 %v220
    %3555 = vmatpush1.msra.mxu0 %v219
    %3556 = vmatprep.subr.mxu0 %v224
    %3557 = vmatpush1.msra.mxu0 %v223
    %3558 = vmatprep.subr.mxu0 %v228
    %3559 = vmatpush1.msra.mxu0 %v227
    %3560 = vmatprep.subr.mxu0 %v232
    %3561 = vmatpush1.msra.mxu0 %v231
    %3562 = vmatprep.subr.mxu0 %v236
    %3563 = vmatpush1.msra.mxu0 %v235
    %3564 = vmatprep.subr.mxu0 %v240
    %3565 = vmatpush1.msra.mxu0 %v239
    %3566 = vmatprep.subr.mxu0 %v244
    %3567 = vmatpush1.msra.mxu0 %v243
    %3568 = vmatprep.subr.mxu0 %v248
    %3569 = vmatpush1.msra.mxu0 %v247
    %3570 = vmatprep.subr.mxu0 %v252
    %3571 = vmatpush1.msra.mxu0 %v251
    %3572 = vmatprep.subr.mxu0 %v256
    %3573 = vmatpush1.msra.mxu0 %v255
    %3574 = vmatprep.subr.mxu0 %v260
    %3575 = vmatpush1.msra.mxu0 %v259
    %3576 = vmatprep.subr.mxu0 %v264
    %3577 = vmatpush1.msra.mxu0 %v263
    %3578 = vmatprep.subr.mxu0 0.0
    %3579 = vmatpush1.msra.mxu0 0.0
    %3580 = vmatprep.subr.mxu0 0.0
    %3581 = vmatpush1.msra.mxu0 0.0
    %3582 = vmatprep.subr.mxu0 0.0
    %3583 = vmatpush1.msra.mxu0 0.0
    %3584 = vmatprep.subr.mxu0 0.0
    %3585 = vmatpush1.msra.mxu0 0.0
    %3586 = vmatprep.subr.mxu0 0.0
    %3587 = vmatpush1.msra.mxu0 0.0
    %3588 = vmatprep.subr.mxu0 0.0
    %3589 = vmatpush1.msra.mxu0 0.0
    %3590 = vmatprep.subr.mxu0 0.0
    %3591 = vmatpush1.msra.mxu0 0.0
    %3592 = vmatprep.subr.mxu0 0.0
    %3593 = vmatpush1.msra.mxu0 0.0
    %3594 = vmatprep.subr.mxu0 0.0
    %3595 = vmatpush1.msra.mxu0 0.0
    %3596 = vmatprep.subr.mxu0 0.0
    %3597 = vmatpush1.msra.mxu0 0.0
    %3598 = vmatprep.subr.mxu0 0.0
    %3599 = vmatpush1.msra.mxu0 0.0
    %3600 = vmatprep.subr.mxu0 0.0
    %3601 = vmatpush1.msra.mxu0 0.0
    %3602 = vmatprep.subr.mxu0 0.0
    %3603 = vmatpush1.msra.mxu0 0.0
    %3604 = vmatprep.subr.mxu0 0.0
    %3605 = vmatpush1.msra.mxu0 0.0
    %3606 = vmatprep.subr.mxu0 0.0
    %3607 = vmatpush1.msra.mxu0 0.0
    %3608 = vmatprep.subr.mxu0 0.0
    %3609 = vmatpush1.msra.mxu0 0.0
    %3610 = vmatprep.mubr.f32.mxu0 0.0
    %3611 = vmatmul.mubr.f32.gmra.mrb[0].mxu0 %v3474
    %v3612 = vpop.f32.mrb[0].mxu0
    %v3613 = vadd.f32 0.0, %v3612
    %v3614 = vpop.f32.mrb[0].mxu0
    %v3615 = vadd.f32 0.0, %v3614
    %3616 = vdwg.mxu0
    %3617 = vmatprep.subr.mxu0 %v74
    %3618 = vmatpush1.msra.mxu0 %v73
    %3619 = vmatprep.subr.mxu0 %v78
    %3620 = vmatpush1.msra.mxu0 %v77
    %3621 = vmatprep.subr.mxu0 %v82
    %3622 = vmatpush1.msra.mxu0 %v81
    %3623 = vmatprep.subr.mxu0 %v86
    %3624 = vmatpush1.msra.mxu0 %v85
    %3625 = vmatprep.subr.mxu0 %v90
    %3626 = vmatpush1.msra.mxu0 %v89
    %3627 = vmatprep.subr.mxu0 %v94
    %3628 = vmatpush1.msra.mxu0 %v93
    %3629 = vmatprep.subr.mxu0 %v98
    %3630 = vmatpush1.msra.mxu0 %v97
    %3631 = vmatprep.subr.mxu0 %v102
    %3632 = vmatpush1.msra.mxu0 %v101
    %3633 = vmatprep.subr.mxu0 %v106
    %3634 = vmatpush1.msra.mxu0 %v105
    %3635 = vmatprep.subr.mxu0 %v110
    %3636 = vmatpush1.msra.mxu0 %v109
    %3637 = vmatprep.subr.mxu0 %v114
    %3638 = vmatpush1.msra.mxu0 %v113
    %3639 = vmatprep.subr.mxu0 %v118
    %3640 = vmatpush1.msra.mxu0 %v117
    %3641 = vmatprep.subr.mxu0 %v122
    %3642 = vmatpush1.msra.mxu0 %v121
    %3643 = vmatprep.subr.mxu0 %v126
    %3644 = vmatpush1.msra.mxu0 %v125
    %3645 = vmatprep.subr.mxu0 %v130
    %3646 = vmatpush1.msra.mxu0 %v129
    %3647 = vmatprep.subr.mxu0 %v134
    %3648 = vmatpush1.msra.mxu0 %v133
    %3649 = vmatprep.subr.mxu0 0.0
    %3650 = vmatpush1.msra.mxu0 0.0
    %3651 = vmatprep.subr.mxu0 0.0
    %3652 = vmatpush1.msra.mxu0 0.0
    %3653 = vmatprep.subr.mxu0 0.0
    %3654 = vmatpush1.msra.mxu0 0.0
    %3655 = vmatprep.subr.mxu0 0.0
    %3656 = vmatpush1.msra.mxu0 0.0
    %3657 = vmatprep.subr.mxu0 0.0
    %3658 = vmatpush1.msra.mxu0 0.0
    %3659 = vmatprep.subr.mxu0 0.0
    %3660 = vmatpush1.msra.mxu0 0.0
    %3661 = vmatprep.subr.mxu0 0.0
    %3662 = vmatpush1.msra.mxu0 0.0
    %3663 = vmatprep.subr.mxu0 0.0
    %3664 = vmatpush1.msra.mxu0 0.0
    %3665 = vmatprep.subr.mxu0 0.0
    %3666 = vmatpush1.msra.mxu0 0.0
    %3667 = vmatprep.subr.mxu0 0.0
    %3668 = vmatpush1.msra.mxu0 0.0
    %3669 = vmatprep.subr.mxu0 0.0
    %3670 = vmatpush1.msra.mxu0 0.0
    %3671 = vmatprep.subr.mxu0 0.0
    %3672 = vmatpush1.msra.mxu0 0.0
    %3673 = vmatprep.subr.mxu0 0.0
    %3674 = vmatpush1.msra.mxu0 0.0
    %3675 = vmatprep.subr.mxu0 0.0
    %3676 = vmatpush1.msra.mxu0 0.0
    %3677 = vmatprep.subr.mxu0 0.0
    %3678 = vmatpush1.msra.mxu0 0.0
    %3679 = vmatprep.subr.mxu0 0.0
    %3680 = vmatpush1.msra.mxu0 0.0
    %3681 = vmatprep.mubr.f32.mxu0 0.0
    %3682 = vmatmul.mubr.f32.gmra.mrb[0].mxu0 %v3304
    %v3683 = vpop.f32.mrb[0].mxu0
    %v3684 = vadd.f32 0.0, %v3683
    %v3685 = vpop.f32.mrb[0].mxu0
    %v3686 = vadd.f32 0.0, %v3685
    %3687 = vdwg.mxu0
    %3688 = vmatprep.subr.mxu0 %v76
    %3689 = vmatpush1.msra.mxu0 %v75
    %3690 = vmatprep.subr.mxu0 %v80
    %3691 = vmatpush1.msra.mxu0 %v79
    %3692 = vmatprep.subr.mxu0 %v84
    %3693 = vmatpush1.msra.mxu0 %v83
    %3694 = vmatprep.subr.mxu0 %v88
    %3695 = vmatpush1.msra.mxu0 %v87
    %3696 = vmatprep.subr.mxu0 %v92
    %3697 = vmatpush1.msra.mxu0 %v91
    %3698 = vmatprep.subr.mxu0 %v96
    %3699 = vmatpush1.msra.mxu0 %v95
    %3700 = vmatprep.subr.mxu0 %v100
    %3701 = vmatpush1.msra.mxu0 %v99
    %3702 = vmatprep.subr.mxu0 %v104
    %3703 = vmatpush1.msra.mxu0 %v103
    %3704 = vmatprep.subr.mxu0 %v108
    %3705 = vmatpush1.msra.mxu0 %v107
    %3706 = vmatprep.subr.mxu0 %v112
    %3707 = vmatpush1.msra.mxu0 %v111
    %3708 = vmatprep.subr.mxu0 %v116
    %3709 = vmatpush1.msra.mxu0 %v115
    %3710 = vmatprep.subr.mxu0 %v120
    %3711 = vmatpush1.msra.mxu0 %v119
    %3712 = vmatprep.subr.mxu0 %v124
    %3713 = vmatpush1.msra.mxu0 %v123
    %3714 = vmatprep.subr.mxu0 %v128
    %3715 = vmatpush1.msra.mxu0 %v127
    %3716 = vmatprep.subr.mxu0 %v132
    %3717 = vmatpush1.msra.mxu0 %v131
    %3718 = vmatprep.subr.mxu0 %v136
    %3719 = vmatpush1.msra.mxu0 %v135
    %3720 = vmatprep.subr.mxu0 0.0
    %3721 = vmatpush1.msra.mxu0 0.0
    %3722 = vmatprep.subr.mxu0 0.0
    %3723 = vmatpush1.msra.mxu0 0.0
    %3724 = vmatprep.subr.mxu0 0.0
    %3725 = vmatpush1.msra.mxu0 0.0
    %3726 = vmatprep.subr.mxu0 0.0
    %3727 = vmatpush1.msra.mxu0 0.0
    %3728 = vmatprep.subr.mxu0 0.0
    %3729 = vmatpush1.msra.mxu0 0.0
    %3730 = vmatprep.subr.mxu0 0.0
    %3731 = vmatpush1.msra.mxu0 0.0
    %3732 = vmatprep.subr.mxu0 0.0
    %3733 = vmatpush1.msra.mxu0 0.0
    %3734 = vmatprep.subr.mxu0 0.0
    %3735 = vmatpush1.msra.mxu0 0.0
    %3736 = vmatprep.subr.mxu0 0.0
    %3737 = vmatpush1.msra.mxu0 0.0
    %3738 = vmatprep.subr.mxu0 0.0
    %3739 = vmatpush1.msra.mxu0 0.0
    %3740 = vmatprep.subr.mxu0 0.0
    %3741 = vmatpush1.msra.mxu0 0.0
    %3742 = vmatprep.subr.mxu0 0.0
    %3743 = vmatpush1.msra.mxu0 0.0
    %3744 = vmatprep.subr.mxu0 0.0
    %3745 = vmatpush1.msra.mxu0 0.0
    %3746 = vmatprep.subr.mxu0 0.0
    %3747 = vmatpush1.msra.mxu0 0.0
    %3748 = vmatprep.subr.mxu0 0.0
    %3749 = vmatpush1.msra.mxu0 0.0
    %3750 = vmatprep.subr.mxu0 0.0
    %3751 = vmatpush1.msra.mxu0 0.0
    %3752 = vmatprep.mubr.f32.mxu0 0.0
    %3753 = vmatmul.mubr.f32.gmra.mrb[0].mxu0 %v3304
    %v3754 = vpop.f32.mrb[0].mxu0
    %v3755 = vadd.f32 0.0, %v3754
    %v3756 = vpop.f32.mrb[0].mxu0
    %v3757 = vadd.f32 0.0, %v3756
    %3758 = vdwg.mxu0
    %v3759 = vadd.f32 %v460, %v3684
    %v3760 = vadd.f32 %v462, %v3686
    %v3761 = vadd.f32 %v573, %v3755
    %v3762 = vadd.f32 %v575, %v3757
    %v3763 = vxor.u32 %v3759, 2147483648
    %v3764 = vxor.u32 %v3760, 2147483648
    %v3765 = vxor.u32 %v3761, 2147483648
    %v3766 = vmul.f32 %v3763, 1.442695
    %v3767 = vpow.pop %v3766
    %v3768 = vmul.f32 %v3764, 1.442695
    %v3769 = vpow.pop %v3768
    %v3770 = vmul.f32 %v3765, 1.442695
    %v3771 = vpow.pop %v3770
    %v3772 = vadd.f32 %v3767, 1.0
    %v3773 = vadd.f32 %v3769, 1.0
    %v3774 = vadd.f32 %v3771, 1.0
    %v3775 = vrcp.pop %v3772
    %v3776 = vmul.f32 1.0, %v3775
    %v3777 = vrcp.pop %v3773
    %v3778 = vmul.f32 1.0, %v3777
    %v3779 = vrcp.pop %v3774
    %v3780 = vmul.f32 1.0, %v3779
    %v3781 = vtanh.pop %v3762
    %v3782 = vmul.f32 %v3778, %v3302
    %v3783 = vmul.f32 %v3776, %v3781
    %v3784 = vadd.f32 %v3782, %v3783
    %v3785 = vtanh.pop %v3784
    %v3786 = vmul.f32 %v3780, %v3785
    %3787 = vmatprep.subr.mxu0 %v138
    %3788 = vmatpush1.msra.mxu0 %v137
    %3789 = vmatprep.subr.mxu0 %v142
    %3790 = vmatpush1.msra.mxu0 %v141
    %3791 = vmatprep.subr.mxu0 %v146
    %3792 = vmatpush1.msra.mxu0 %v145
    %3793 = vmatprep.subr.mxu0 %v150
    %3794 = vmatpush1.msra.mxu0 %v149
    %3795 = vmatprep.subr.mxu0 %v154
    %3796 = vmatpush1.msra.mxu0 %v153
    %3797 = vmatprep.subr.mxu0 %v158
    %3798 = vmatpush1.msra.mxu0 %v157
    %3799 = vmatprep.subr.mxu0 %v162
    %3800 = vmatpush1.msra.mxu0 %v161
    %3801 = vmatprep.subr.mxu0 %v166
    %3802 = vmatpush1.msra.mxu0 %v165
    %3803 = vmatprep.subr.mxu0 %v170
    %3804 = vmatpush1.msra.mxu0 %v169
    %3805 = vmatprep.subr.mxu0 %v174
    %3806 = vmatpush1.msra.mxu0 %v173
    %3807 = vmatprep.subr.mxu0 %v178
    %3808 = vmatpush1.msra.mxu0 %v177
    %3809 = vmatprep.subr.mxu0 %v182
    %3810 = vmatpush1.msra.mxu0 %v181
    %3811 = vmatprep.subr.mxu0 %v186
    %3812 = vmatpush1.msra.mxu0 %v185
    %3813 = vmatprep.subr.mxu0 %v190
    %3814 = vmatpush1.msra.mxu0 %v189
    %3815 = vmatprep.subr.mxu0 %v194
    %3816 = vmatpush1.msra.mxu0 %v193
    %3817 = vmatprep.subr.mxu0 %v198
    %3818 = vmatpush1.msra.mxu0 %v197
    %3819 = vmatprep.subr.mxu0 0.0
    %3820 = vmatpush1.msra.mxu0 0.0
    %3821 = vmatprep.subr.mxu0 0.0
    %3822 = vmatpush1.msra.mxu0 0.0
    %3823 = vmatprep.subr.mxu0 0.0
    %3824 = vmatpush1.msra.mxu0 0.0
    %3825 = vmatprep.subr.mxu0 0.0
    %3826 = vmatpush1.msra.mxu0 0.0
    %3827 = vmatprep.subr.mxu0 0.0
    %3828 = vmatpush1.msra.mxu0 0.0
    %3829 = vmatprep.subr.mxu0 0.0
    %3830 = vmatpush1.msra.mxu0 0.0
    %3831 = vmatprep.subr.mxu0 0.0
    %3832 = vmatpush1.msra.mxu0 0.0
    %3833 = vmatprep.subr.mxu0 0.0
    %3834 = vmatpush1.msra.mxu0 0.0
    %3835 = vmatprep.subr.mxu0 0.0
    %3836 = vmatpush1.msra.mxu0 0.0
    %3837 = vmatprep.subr.mxu0 0.0
    %3838 = vmatpush1.msra.mxu0 0.0
    %3839 = vmatprep.subr.mxu0 0.0
    %3840 = vmatpush1.msra.mxu0 0.0
    %3841 = vmatprep.subr.mxu0 0.0
    %3842 = vmatpush1.msra.mxu0 0.0
    %3843 = vmatprep.subr.mxu0 0.0
    %3844 = vmatpush1.msra.mxu0 0.0
    %3845 = vmatprep.subr.mxu0 0.0
    %3846 = vmatpush1.msra.mxu0 0.0
    %3847 = vmatprep.subr.mxu0 0.0
    %3848 = vmatpush1.msra.mxu0 0.0
    %3849 = vmatprep.subr.mxu0 0.0
    %3850 = vmatpush1.msra.mxu0 0.0
    %3851 = vmatprep.mubr.f32.mxu0 0.0
    %3852 = vmatmul.mubr.f32.gmra.mrb[0].mxu0 %v3786
    %v3853 = vpop.f32.mrb[0].mxu0
    %v3854 = vadd.f32 %v3542, %v3853
    %v3855 = vpop.f32.mrb[0].mxu0
    %v3856 = vadd.f32 %v3544, %v3855
    %3857 = vdwg.mxu0
    %3858 = vmatprep.subr.mxu0 %v140
    %3859 = vmatpush1.msra.mxu0 %v139
    %3860 = vmatprep.subr.mxu0 %v144
    %3861 = vmatpush1.msra.mxu0 %v143
    %3862 = vmatprep.subr.mxu0 %v148
    %3863 = vmatpush1.msra.mxu0 %v147
    %3864 = vmatprep.subr.mxu0 %v152
    %3865 = vmatpush1.msra.mxu0 %v151
    %3866 = vmatprep.subr.mxu0 %v156
    %3867 = vmatpush1.msra.mxu0 %v155
    %3868 = vmatprep.subr.mxu0 %v160
    %3869 = vmatpush1.msra.mxu0 %v159
    %3870 = vmatprep.subr.mxu0 %v164
    %3871 = vmatpush1.msra.mxu0 %v163
    %3872 = vmatprep.subr.mxu0 %v168
    %3873 = vmatpush1.msra.mxu0 %v167
    %3874 = vmatprep.subr.mxu0 %v172
    %3875 = vmatpush1.msra.mxu0 %v171
    %3876 = vmatprep.subr.mxu0 %v176
    %3877 = vmatpush1.msra.mxu0 %v175
    %3878 = vmatprep.subr.mxu0 %v180
    %3879 = vmatpush1.msra.mxu0 %v179
    %3880 = vmatprep.subr.mxu0 %v184
    %3881 = vmatpush1.msra.mxu0 %v183
    %3882 = vmatprep.subr.mxu0 %v188
    %3883 = vmatpush1.msra.mxu0 %v187
    %3884 = vmatprep.subr.mxu0 %v192
    %3885 = vmatpush1.msra.mxu0 %v191
    %3886 = vmatprep.subr.mxu0 %v196
    %3887 = vmatpush1.msra.mxu0 %v195
    %3888 = vmatprep.subr.mxu0 %v200
    %3889 = vmatpush1.msra.mxu0 %v199
    %3890 = vmatprep.subr.mxu0 0.0
    %3891 = vmatpush1.msra.mxu0 0.0
    %3892 = vmatprep.subr.mxu0 0.0
    %3893 = vmatpush1.msra.mxu0 0.0
    %3894 = vmatprep.subr.mxu0 0.0
    %3895 = vmatpush1.msra.mxu0 0.0
    %3896 = vmatprep.subr.mxu0 0.0
    %3897 = vmatpush1.msra.mxu0 0.0
    %3898 = vmatprep.subr.mxu0 0.0
    %3899 = vmatpush1.msra.mxu0 0.0
    %3900 = vmatprep.subr.mxu0 0.0
    %3901 = vmatpush1.msra.mxu0 0.0
    %3902 = vmatprep.subr.mxu0 0.0
    %3903 = vmatpush1.msra.mxu0 0.0
    %3904 = vmatprep.subr.mxu0 0.0
    %3905 = vmatpush1.msra.mxu0 0.0
    %3906 = vmatprep.subr.mxu0 0.0
    %3907 = vmatpush1.msra.mxu0 0.0
    %3908 = vmatprep.subr.mxu0 0.0
    %3909 = vmatpush1.msra.mxu0 0.0
    %3910 = vmatprep.subr.mxu0 0.0
    %3911 = vmatpush1.msra.mxu0 0.0
    %3912 = vmatprep.subr.mxu0 0.0
    %3913 = vmatpush1.msra.mxu0 0.0
    %3914 = vmatprep.subr.mxu0 0.0
    %3915 = vmatpush1.msra.mxu0 0.0
    %3916 = vmatprep.subr.mxu0 0.0
    %3917 = vmatpush1.msra.mxu0 0.0
    %3918 = vmatprep.subr.mxu0 0.0
    %3919 = vmatpush1.msra.mxu0 0.0
    %3920 = vmatprep.subr.mxu0 0.0
    %3921 = vmatpush1.msra.mxu0 0.0
    %3922 = vmatprep.mubr.f32.mxu0 0.0
    %3923 = vmatmul.mubr.f32.gmra.mrb[0].mxu0 %v3786
    %v3924 = vpop.f32.mrb[0].mxu0
    %v3925 = vadd.f32 %v3613, %v3924
    %v3926 = vpop.f32.mrb[0].mxu0
    %v3927 = vadd.f32 %v3615, %v3926
    %3928 = vdwg.mxu0
    %v3929 = vadd.f32 %v3854, %v270
    %v3930 = vadd.f32 %v3856, %v274
    %v3931 = vadd.f32 %v3925, %v278
    %v3932 = vadd.f32 %v3927, %v282
    %v3933 = vxor.u32 %v3929, 2147483648
    %v3934 = vxor.u32 %v3930, 2147483648
    %v3935 = vxor.u32 %v3931, 2147483648
    %v3936 = vmul.f32 %v3933, 1.442695
    %v3937 = vpow.pop %v3936
    %v3938 = vmul.f32 %v3934, 1.442695
    %v3939 = vpow.pop %v3938
    %v3940 = vmul.f32 %v3935, 1.442695
    %v3941 = vpow.pop %v3940
    %v3942 = vadd.f32 %v3937, 1.0
    %v3943 = vadd.f32 %v3939, 1.0
    %v3944 = vadd.f32 %v3941, 1.0
    %v3945 = vrcp.pop %v3942
    %v3946 = vmul.f32 1.0, %v3945
    %v3947 = vrcp.pop %v3943
    %v3948 = vmul.f32 1.0, %v3947
    %v3949 = vrcp.pop %v3944
    %v3950 = vmul.f32 1.0, %v3949
    %v3951 = vtanh.pop %v3932
    %v3952 = vmul.f32 %v3948, %v3472
    %v3953 = vmul.f32 %v3946, %v3951
    %v3954 = vadd.f32 %v3952, %v3953
    %v3955 = vtanh.pop %v3954
    %v3956 = vmul.f32 %v3950, %v3955
    %3957 = vmatprep.subr.mxu0 %v202
    %3958 = vmatpush1.msra.mxu0 %v201
    %3959 = vmatprep.subr.mxu0 %v206
    %3960 = vmatpush1.msra.mxu0 %v205
    %3961 = vmatprep.subr.mxu0 %v210
    %3962 = vmatpush1.msra.mxu0 %v209
    %3963 = vmatprep.subr.mxu0 %v214
    %3964 = vmatpush1.msra.mxu0 %v213
    %3965 = vmatprep.subr.mxu0 %v218
    %3966 = vmatpush1.msra.mxu0 %v217
    %3967 = vmatprep.subr.mxu0 %v222
    %3968 = vmatpush1.msra.mxu0 %v221
    %3969 = vmatprep.subr.mxu0 %v226
    %3970 = vmatpush1.msra.mxu0 %v225
    %3971 = vmatprep.subr.mxu0 %v230
    %3972 = vmatpush1.msra.mxu0 %v229
    %3973 = vmatprep.subr.mxu0 %v234
    %3974 = vmatpush1.msra.mxu0 %v233
    %3975 = vmatprep.subr.mxu0 %v238
    %3976 = vmatpush1.msra.mxu0 %v237
    %3977 = vmatprep.subr.mxu0 %v242
    %3978 = vmatpush1.msra.mxu0 %v241
    %3979 = vmatprep.subr.mxu0 %v246
    %3980 = vmatpush1.msra.mxu0 %v245
    %3981 = vmatprep.subr.mxu0 %v250
    %3982 = vmatpush1.msra.mxu0 %v249
    %3983 = vmatprep.subr.mxu0 %v254
    %3984 = vmatpush1.msra.mxu0 %v253
    %3985 = vmatprep.subr.mxu0 %v258
    %3986 = vmatpush1.msra.mxu0 %v257
    %3987 = vmatprep.subr.mxu0 %v262
    %3988 = vmatpush1.msra.mxu0 %v261
    %3989 = vmatprep.subr.mxu0 0.0
    %3990 = vmatpush1.msra.mxu0 0.0
    %3991 = vmatprep.subr.mxu0 0.0
    %3992 = vmatpush1.msra.mxu0 0.0
    %3993 = vmatprep.subr.mxu0 0.0
    %3994 = vmatpush1.msra.mxu0 0.0
    %3995 = vmatprep.subr.mxu0 0.0
    %3996 = vmatpush1.msra.mxu0 0.0
    %3997 = vmatprep.subr.mxu0 0.0
    %3998 = vmatpush1.msra.mxu0 0.0
    %3999 = vmatprep.subr.mxu0 0.0
    %4000 = vmatpush1.msra.mxu0 0.0
    %4001 = vmatprep.subr.mxu0 0.0
    %4002 = vmatpush1.msra.mxu0 0.0
    %4003 = vmatprep.subr.mxu0 0.0
    %4004 = vmatpush1.msra.mxu0 0.0
    %4005 = vmatprep.subr.mxu0 0.0
    %4006 = vmatpush1.msra.mxu0 0.0
    %4007 = vmatprep.subr.mxu0 0.0
    %4008 = vmatpush1.msra.mxu0 0.0
    %4009 = vmatprep.subr.mxu0 0.0
    %4010 = vmatpush1.msra.mxu0 0.0
    %4011 = vmatprep.subr.mxu0 0.0
    %4012 = vmatpush1.msra.mxu0 0.0
    %4013 = vmatprep.subr.mxu0 0.0
    %4014 = vmatpush1.msra.mxu0 0.0
    %4015 = vmatprep.subr.mxu0 0.0
    %4016 = vmatpush1.msra.mxu0 0.0
    %4017 = vmatprep.subr.mxu0 0.0
    %4018 = vmatpush1.msra.mxu0 0.0
    %4019 = vmatprep.subr.mxu0 0.0
    %4020 = vmatpush1.msra.mxu0 0.0
    %4021 = vmatprep.mubr.f32.mxu0 0.0
    %4022 = vmatmul.mubr.f32.gmra.mrb[0].mxu0 %v3956
    %v4023 = vpop.f32.mrb[0].mxu0
    %v4024 = vadd.f32 0.0, %v4023
    %v4025 = vpop.f32.mrb[0].mxu0
    %v4026 = vadd.f32 0.0, %v4025
    %4027 = vdwg.mxu0
    %4028 = vmatprep.subr.mxu0 %v204
    %4029 = vmatpush1.msra.mxu0 %v203
    %4030 = vmatprep.subr.mxu0 %v208
    %4031 = vmatpush1.msra.mxu0 %v207
    %4032 = vmatprep.subr.mxu0 %v212
    %4033 = vmatpush1.msra.mxu0 %v211
    %4034 = vmatprep.subr.mxu0 %v216
    %4035 = vmatpush1.msra.mxu0 %v215
    %4036 = vmatprep.subr.mxu0 %v220
    %4037 = vmatpush1.msra.mxu0 %v219
    %4038 = vmatprep.subr.mxu0 %v224
    %4039 = vmatpush1.msra.mxu0 %v223
    %4040 = vmatprep.subr.mxu0 %v228
    %4041 = vmatpush1.msra.mxu0 %v227
    %4042 = vmatprep.subr.mxu0 %v232
    %4043 = vmatpush1.msra.mxu0 %v231
    %4044 = vmatprep.subr.mxu0 %v236
    %4045 = vmatpush1.msra.mxu0 %v235
    %4046 = vmatprep.subr.mxu0 %v240
    %4047 = vmatpush1.msra.mxu0 %v239
    %4048 = vmatprep.subr.mxu0 %v244
    %4049 = vmatpush1.msra.mxu0 %v243
    %4050 = vmatprep.subr.mxu0 %v248
    %4051 = vmatpush1.msra.mxu0 %v247
    %4052 = vmatprep.subr.mxu0 %v252
    %4053 = vmatpush1.msra.mxu0 %v251
    %4054 = vmatprep.subr.mxu0 %v256
    %4055 = vmatpush1.msra.mxu0 %v255
    %4056 = vmatprep.subr.mxu0 %v260
    %4057 = vmatpush1.msra.mxu0 %v259
    %4058 = vmatprep.subr.mxu0 %v264
    %4059 = vmatpush1.msra.mxu0 %v263
    %4060 = vmatprep.subr.mxu0 0.0
    %4061 = vmatpush1.msra.mxu0 0.0
    %4062 = vmatprep.subr.mxu0 0.0
    %4063 = vmatpush1.msra.mxu0 0.0
    %4064 = vmatprep.subr.mxu0 0.0
    %4065 = vmatpush1.msra.mxu0 0.0
    %4066 = vmatprep.subr.mxu0 0.0
    %4067 = vmatpush1.msra.mxu0 0.0
    %4068 = vmatprep.subr.mxu0 0.0
    %4069 = vmatpush1.msra.mxu0 0.0
    %4070 = vmatprep.subr.mxu0 0.0
    %4071 = vmatpush1.msra.mxu0 0.0
    %4072 = vmatprep.subr.mxu0 0.0
    %4073 = vmatpush1.msra.mxu0 0.0
    %4074 = vmatprep.subr.mxu0 0.0
    %4075 = vmatpush1.msra.mxu0 0.0
    %4076 = vmatprep.subr.mxu0 0.0
    %4077 = vmatpush1.msra.mxu0 0.0
    %4078 = vmatprep.subr.mxu0 0.0
    %4079 = vmatpush1.msra.mxu0 0.0
    %4080 = vmatprep.subr.mxu0 0.0
    %4081 = vmatpush1.msra.mxu0 0.0
    %4082 = vmatprep.subr.mxu0 0.0
    %4083 = vmatpush1.msra.mxu0 0.0
    %4084 = vmatprep.subr.mxu0 0.0
    %4085 = vmatpush1.msra.mxu0 0.0
    %4086 = vmatprep.subr.mxu0 0.0
    %4087 = vmatpush1.msra.mxu0 0.0
    %4088 = vmatprep.subr.mxu0 0.0
    %4089 = vmatpush1.msra.mxu0 0.0
    %4090 = vmatprep.subr.mxu0 0.0
    %4091 = vmatpush1.msra.mxu0 0.0
    %4092 = vmatprep.mubr.f32.mxu0 0.0
    %4093 = vmatmul.mubr.f32.gmra.mrb[0].mxu0 %v3956
    %v4094 = vpop.f32.mrb[0].mxu0
    %v4095 = vadd.f32 0.0, %v4094
    %v4096 = vpop.f32.mrb[0].mxu0
    %v4097 = vadd.f32 0.0, %v4096
    %4098 = vdwg.mxu0
    %4099 = vmatprep.subr.mxu0 %v74
    %4100 = vmatpush1.msra.mxu0 %v73
    %4101 = vmatprep.subr.mxu0 %v78
    %4102 = vmatpush1.msra.mxu0 %v77
    %4103 = vmatprep.subr.mxu0 %v82
    %4104 = vmatpush1.msra.mxu0 %v81
    %4105 = vmatprep.subr.mxu0 %v86
    %4106 = vmatpush1.msra.mxu0 %v85
    %4107 = vmatprep.subr.mxu0 %v90
    %4108 = vmatpush1.msra.mxu0 %v89
    %4109 = vmatprep.subr.mxu0 %v94
    %4110 = vmatpush1.msra.mxu0 %v93
    %4111 = vmatprep.subr.mxu0 %v98
    %4112 = vmatpush1.msra.mxu0 %v97
    %4113 = vmatprep.subr.mxu0 %v102
    %4114 = vmatpush1.msra.mxu0 %v101
    %4115 = vmatprep.subr.mxu0 %v106
    %4116 = vmatpush1.msra.mxu0 %v105
    %4117 = vmatprep.subr.mxu0 %v110
    %4118 = vmatpush1.msra.mxu0 %v109
    %4119 = vmatprep.subr.mxu0 %v114
    %4120 = vmatpush1.msra.mxu0 %v113
    %4121 = vmatprep.subr.mxu0 %v118
    %4122 = vmatpush1.msra.mxu0 %v117
    %4123 = vmatprep.subr.mxu0 %v122
    %4124 = vmatpush1.msra.mxu0 %v121
    %4125 = vmatprep.subr.mxu0 %v126
    %4126 = vmatpush1.msra.mxu0 %v125
    %4127 = vmatprep.subr.mxu0 %v130
    %4128 = vmatpush1.msra.mxu0 %v129
    %4129 = vmatprep.subr.mxu0 %v134
    %4130 = vmatpush1.msra.mxu0 %v133
    %4131 = vmatprep.subr.mxu0 0.0
    %4132 = vmatpush1.msra.mxu0 0.0
    %4133 = vmatprep.subr.mxu0 0.0
    %4134 = vmatpush1.msra.mxu0 0.0
    %4135 = vmatprep.subr.mxu0 0.0
    %4136 = vmatpush1.msra.mxu0 0.0
    %4137 = vmatprep.subr.mxu0 0.0
    %4138 = vmatpush1.msra.mxu0 0.0
    %4139 = vmatprep.subr.mxu0 0.0
    %4140 = vmatpush1.msra.mxu0 0.0
    %4141 = vmatprep.subr.mxu0 0.0
    %4142 = vmatpush1.msra.mxu0 0.0
    %4143 = vmatprep.subr.mxu0 0.0
    %4144 = vmatpush1.msra.mxu0 0.0
    %4145 = vmatprep.subr.mxu0 0.0
    %4146 = vmatpush1.msra.mxu0 0.0
    %4147 = vmatprep.subr.mxu0 0.0
    %4148 = vmatpush1.msra.mxu0 0.0
    %4149 = vmatprep.subr.mxu0 0.0
    %4150 = vmatpush1.msra.mxu0 0.0
    %4151 = vmatprep.subr.mxu0 0.0
    %4152 = vmatpush1.msra.mxu0 0.0
    %4153 = vmatprep.subr.mxu0 0.0
    %4154 = vmatpush1.msra.mxu0 0.0
    %4155 = vmatprep.subr.mxu0 0.0
    %4156 = vmatpush1.msra.mxu0 0.0
    %4157 = vmatprep.subr.mxu0 0.0
    %4158 = vmatpush1.msra.mxu0 0.0
    %4159 = vmatprep.subr.mxu0 0.0
    %4160 = vmatpush1.msra.mxu0 0.0
    %4161 = vmatprep.subr.mxu0 0.0
    %4162 = vmatpush1.msra.mxu0 0.0
    %4163 = vmatprep.mubr.f32.mxu0 0.0
    %4164 = vmatmul.mubr.f32.gmra.mrb[0].mxu0 %v3786
    %v4165 = vpop.f32.mrb[0].mxu0
    %v4166 = vadd.f32 0.0, %v4165
    %v4167 = vpop.f32.mrb[0].mxu0
    %v4168 = vadd.f32 0.0, %v4167
    %4169 = vdwg.mxu0
    %4170 = vmatprep.subr.mxu0 %v76
    %4171 = vmatpush1.msra.mxu0 %v75
    %4172 = vmatprep.subr.mxu0 %v80
    %4173 = vmatpush1.msra.mxu0 %v79
    %4174 = vmatprep.subr.mxu0 %v84
    %4175 = vmatpush1.msra.mxu0 %v83
    %4176 = vmatprep.subr.mxu0 %v88
    %4177 = vmatpush1.msra.mxu0 %v87
    %4178 = vmatprep.subr.mxu0 %v92
    %4179 = vmatpush1.msra.mxu0 %v91
    %4180 = vmatprep.subr.mxu0 %v96
    %4181 = vmatpush1.msra.mxu0 %v95
    %4182 = vmatprep.subr.mxu0 %v100
    %4183 = vmatpush1.msra.mxu0 %v99
    %4184 = vmatprep.subr.mxu0 %v104
    %4185 = vmatpush1.msra.mxu0 %v103
    %4186 = vmatprep.subr.mxu0 %v108
    %4187 = vmatpush1.msra.mxu0 %v107
    %4188 = vmatprep.subr.mxu0 %v112
    %4189 = vmatpush1.msra.mxu0 %v111
    %4190 = vmatprep.subr.mxu0 %v116
    %4191 = vmatpush1.msra.mxu0 %v115
    %4192 = vmatprep.subr.mxu0 %v120
    %4193 = vmatpush1.msra.mxu0 %v119
    %4194 = vmatprep.subr.mxu0 %v124
    %4195 = vmatpush1.msra.mxu0 %v123
    %4196 = vmatprep.subr.mxu0 %v128
    %4197 = vmatpush1.msra.mxu0 %v127
    %4198 = vmatprep.subr.mxu0 %v132
    %4199 = vmatpush1.msra.mxu0 %v131
    %4200 = vmatprep.subr.mxu0 %v136
    %4201 = vmatpush1.msra.mxu0 %v135
    %4202 = vmatprep.subr.mxu0 0.0
    %4203 = vmatpush1.msra.mxu0 0.0
    %4204 = vmatprep.subr.mxu0 0.0
    %4205 = vmatpush1.msra.mxu0 0.0
    %4206 = vmatprep.subr.mxu0 0.0
    %4207 = vmatpush1.msra.mxu0 0.0
    %4208 = vmatprep.subr.mxu0 0.0
    %4209 = vmatpush1.msra.mxu0 0.0
    %4210 = vmatprep.subr.mxu0 0.0
    %4211 = vmatpush1.msra.mxu0 0.0
    %4212 = vmatprep.subr.mxu0 0.0
    %4213 = vmatpush1.msra.mxu0 0.0
    %4214 = vmatprep.subr.mxu0 0.0
    %4215 = vmatpush1.msra.mxu0 0.0
    %4216 = vmatprep.subr.mxu0 0.0
    %4217 = vmatpush1.msra.mxu0 0.0
    %4218 = vmatprep.subr.mxu0 0.0
    %4219 = vmatpush1.msra.mxu0 0.0
    %4220 = vmatprep.subr.mxu0 0.0
    %4221 = vmatpush1.msra.mxu0 0.0
    %4222 = vmatprep.subr.mxu0 0.0
    %4223 = vmatpush1.msra.mxu0 0.0
    %4224 = vmatprep.subr.mxu0 0.0
    %4225 = vmatpush1.msra.mxu0 0.0
    %4226 = vmatprep.subr.mxu0 0.0
    %4227 = vmatpush1.msra.mxu0 0.0
    %4228 = vmatprep.subr.mxu0 0.0
    %4229 = vmatpush1.msra.mxu0 0.0
    %4230 = vmatprep.subr.mxu0 0.0
    %4231 = vmatpush1.msra.mxu0 0.0
    %4232 = vmatprep.subr.mxu0 0.0
    %4233 = vmatpush1.msra.mxu0 0.0
    %4234 = vmatprep.mubr.f32.mxu0 0.0
    %4235 = vmatmul.mubr.f32.gmra.mrb[0].mxu0 %v3786
    %v4236 = vpop.f32.mrb[0].mxu0
    %v4237 = vadd.f32 0.0, %v4236
    %v4238 = vpop.f32.mrb[0].mxu0
    %v4239 = vadd.f32 0.0, %v4238
    %4240 = vdwg.mxu0
    %v4241 = vadd.f32 %v466, %v4166
    %v4242 = vadd.f32 %v468, %v4168
    %v4243 = vadd.f32 %v579, %v4237
    %v4244 = vadd.f32 %v581, %v4239
    %v4245 = vxor.u32 %v4241, 2147483648
    %v4246 = vxor.u32 %v4242, 2147483648
    %v4247 = vxor.u32 %v4243, 2147483648
    %v4248 = vmul.f32 %v4245, 1.442695
    %v4249 = vpow.pop %v4248
    %v4250 = vmul.f32 %v4246, 1.442695
    %v4251 = vpow.pop %v4250
    %v4252 = vmul.f32 %v4247, 1.442695
    %v4253 = vpow.pop %v4252
    %v4254 = vadd.f32 %v4249, 1.0
    %v4255 = vadd.f32 %v4251, 1.0
    %v4256 = vadd.f32 %v4253, 1.0
    %v4257 = vrcp.pop %v4254
    %v4258 = vmul.f32 1.0, %v4257
    %v4259 = vrcp.pop %v4255
    %v4260 = vmul.f32 1.0, %v4259
    %v4261 = vrcp.pop %v4256
    %v4262 = vmul.f32 1.0, %v4261
    %v4263 = vtanh.pop %v4244
    %v4264 = vmul.f32 %v4260, %v3784
    %v4265 = vmul.f32 %v4258, %v4263
    %v4266 = vadd.f32 %v4264, %v4265
    %v4267 = vtanh.pop %v4266
    %v4268 = vmul.f32 %v4262, %v4267
    %4269 = vmatprep.subr.mxu0 %v138
    %4270 = vmatpush1.msra.mxu0 %v137
    %4271 = vmatprep.subr.mxu0 %v142
    %4272 = vmatpush1.msra.mxu0 %v141
    %4273 = vmatprep.subr.mxu0 %v146
    %4274 = vmatpush1.msra.mxu0 %v145
    %4275 = vmatprep.subr.mxu0 %v150
    %4276 = vmatpush1.msra.mxu0 %v149
    %4277 = vmatprep.subr.mxu0 %v154
    %4278 = vmatpush1.msra.mxu0 %v153
    %4279 = vmatprep.subr.mxu0 %v158
    %4280 = vmatpush1.msra.mxu0 %v157
    %4281 = vmatprep.subr.mxu0 %v162
    %4282 = vmatpush1.msra.mxu0 %v161
    %4283 = vmatprep.subr.mxu0 %v166
    %4284 = vmatpush1.msra.mxu0 %v165
    %4285 = vmatprep.subr.mxu0 %v170
    %4286 = vmatpush1.msra.mxu0 %v169
    %4287 = vmatprep.subr.mxu0 %v174
    %4288 = vmatpush1.msra.mxu0 %v173
    %4289 = vmatprep.subr.mxu0 %v178
    %4290 = vmatpush1.msra.mxu0 %v177
    %4291 = vmatprep.subr.mxu0 %v182
    %4292 = vmatpush1.msra.mxu0 %v181
    %4293 = vmatprep.subr.mxu0 %v186
    %4294 = vmatpush1.msra.mxu0 %v185
    %4295 = vmatprep.subr.mxu0 %v190
    %4296 = vmatpush1.msra.mxu0 %v189
    %4297 = vmatprep.subr.mxu0 %v194
    %4298 = vmatpush1.msra.mxu0 %v193
    %4299 = vmatprep.subr.mxu0 %v198
    %4300 = vmatpush1.msra.mxu0 %v197
    %4301 = vmatprep.subr.mxu0 0.0
    %4302 = vmatpush1.msra.mxu0 0.0
    %4303 = vmatprep.subr.mxu0 0.0
    %4304 = vmatpush1.msra.mxu0 0.0
    %4305 = vmatprep.subr.mxu0 0.0
    %4306 = vmatpush1.msra.mxu0 0.0
    %4307 = vmatprep.subr.mxu0 0.0
    %4308 = vmatpush1.msra.mxu0 0.0
    %4309 = vmatprep.subr.mxu0 0.0
    %4310 = vmatpush1.msra.mxu0 0.0
    %4311 = vmatprep.subr.mxu0 0.0
    %4312 = vmatpush1.msra.mxu0 0.0
    %4313 = vmatprep.subr.mxu0 0.0
    %4314 = vmatpush1.msra.mxu0 0.0
    %4315 = vmatprep.subr.mxu0 0.0
    %4316 = vmatpush1.msra.mxu0 0.0
    %4317 = vmatprep.subr.mxu0 0.0
    %4318 = vmatpush1.msra.mxu0 0.0
    %4319 = vmatprep.subr.mxu0 0.0
    %4320 = vmatpush1.msra.mxu0 0.0
    %4321 = vmatprep.subr.mxu0 0.0
    %4322 = vmatpush1.msra.mxu0 0.0
    %4323 = vmatprep.subr.mxu0 0.0
    %4324 = vmatpush1.msra.mxu0 0.0
    %4325 = vmatprep.subr.mxu0 0.0
    %4326 = vmatpush1.msra.mxu0 0.0
    %4327 = vmatprep.subr.mxu0 0.0
    %4328 = vmatpush1.msra.mxu0 0.0
    %4329 = vmatprep.subr.mxu0 0.0
    %4330 = vmatpush1.msra.mxu0 0.0
    %4331 = vmatprep.subr.mxu0 0.0
    %4332 = vmatpush1.msra.mxu0 0.0
    %4333 = vmatprep.mubr.f32.mxu0 0.0
    %4334 = vmatmul.mubr.f32.gmra.mrb[0].mxu0 %v4268
    %v4335 = vpop.f32.mrb[0].mxu0
    %v4336 = vadd.f32 %v4024, %v4335
    %v4337 = vpop.f32.mrb[0].mxu0
    %v4338 = vadd.f32 %v4026, %v4337
    %4339 = vdwg.mxu0
    %4340 = vmatprep.subr.mxu0 %v140
    %4341 = vmatpush1.msra.mxu0 %v139
    %4342 = vmatprep.subr.mxu0 %v144
    %4343 = vmatpush1.msra.mxu0 %v143
    %4344 = vmatprep.subr.mxu0 %v148
    %4345 = vmatpush1.msra.mxu0 %v147
    %4346 = vmatprep.subr.mxu0 %v152
    %4347 = vmatpush1.msra.mxu0 %v151
    %4348 = vmatprep.subr.mxu0 %v156
    %4349 = vmatpush1.msra.mxu0 %v155
    %4350 = vmatprep.subr.mxu0 %v160
    %4351 = vmatpush1.msra.mxu0 %v159
    %4352 = vmatprep.subr.mxu0 %v164
    %4353 = vmatpush1.msra.mxu0 %v163
    %4354 = vmatprep.subr.mxu0 %v168
    %4355 = vmatpush1.msra.mxu0 %v167
    %4356 = vmatprep.subr.mxu0 %v172
    %4357 = vmatpush1.msra.mxu0 %v171
    %4358 = vmatprep.subr.mxu0 %v176
    %4359 = vmatpush1.msra.mxu0 %v175
    %4360 = vmatprep.subr.mxu0 %v180
    %4361 = vmatpush1.msra.mxu0 %v179
    %4362 = vmatprep.subr.mxu0 %v184
    %4363 = vmatpush1.msra.mxu0 %v183
    %4364 = vmatprep.subr.mxu0 %v188
    %4365 = vmatpush1.msra.mxu0 %v187
    %4366 = vmatprep.subr.mxu0 %v192
    %4367 = vmatpush1.msra.mxu0 %v191
    %4368 = vmatprep.subr.mxu0 %v196
    %4369 = vmatpush1.msra.mxu0 %v195
    %4370 = vmatprep.subr.mxu0 %v200
    %4371 = vmatpush1.msra.mxu0 %v199
    %4372 = vmatprep.subr.mxu0 0.0
    %4373 = vmatpush1.msra.mxu0 0.0
    %4374 = vmatprep.subr.mxu0 0.0
    %4375 = vmatpush1.msra.mxu0 0.0
    %4376 = vmatprep.subr.mxu0 0.0
    %4377 = vmatpush1.msra.mxu0 0.0
    %4378 = vmatprep.subr.mxu0 0.0
    %4379 = vmatpush1.msra.mxu0 0.0
    %4380 = vmatprep.subr.mxu0 0.0
    %4381 = vmatpush1.msra.mxu0 0.0
    %4382 = vmatprep.subr.mxu0 0.0
    %4383 = vmatpush1.msra.mxu0 0.0
    %4384 = vmatprep.subr.mxu0 0.0
    %4385 = vmatpush1.msra.mxu0 0.0
    %4386 = vmatprep.subr.mxu0 0.0
    %4387 = vmatpush1.msra.mxu0 0.0
    %4388 = vmatprep.subr.mxu0 0.0
    %4389 = vmatpush1.msra.mxu0 0.0
    %4390 = vmatprep.subr.mxu0 0.0
    %4391 = vmatpush1.msra.mxu0 0.0
    %4392 = vmatprep.subr.mxu0 0.0
    %4393 = vmatpush1.msra.mxu0 0.0
    %4394 = vmatprep.subr.mxu0 0.0
    %4395 = vmatpush1.msra.mxu0 0.0
    %4396 = vmatprep.subr.mxu0 0.0
    %4397 = vmatpush1.msra.mxu0 0.0
    %4398 = vmatprep.subr.mxu0 0.0
    %4399 = vmatpush1.msra.mxu0 0.0
    %4400 = vmatprep.subr.mxu0 0.0
    %4401 = vmatpush1.msra.mxu0 0.0
    %4402 = vmatprep.subr.mxu0 0.0
    %4403 = vmatpush1.msra.mxu0 0.0
    %4404 = vmatprep.mubr.f32.mxu0 0.0
    %4405 = vmatmul.mubr.f32.gmra.mrb[0].mxu0 %v4268
    %v4406 = vpop.f32.mrb[0].mxu0
    %v4407 = vadd.f32 %v4095, %v4406
    %v4408 = vpop.f32.mrb[0].mxu0
    %v4409 = vadd.f32 %v4097, %v4408
    %4410 = vdwg.mxu0
    %v4411 = vadd.f32 %v4336, %v270
    %v4412 = vadd.f32 %v4338, %v274
    %v4413 = vadd.f32 %v4407, %v278
    %v4414 = vadd.f32 %v4409, %v282
    %v4415 = vxor.u32 %v4411, 2147483648
    %v4416 = vxor.u32 %v4412, 2147483648
    %v4417 = vxor.u32 %v4413, 2147483648
    %v4418 = vmul.f32 %v4415, 1.442695
    %v4419 = vpow.pop %v4418
    %v4420 = vmul.f32 %v4416, 1.442695
    %v4421 = vpow.pop %v4420
    %v4422 = vmul.f32 %v4417, 1.442695
    %v4423 = vpow.pop %v4422
    %v4424 = vadd.f32 %v4419, 1.0
    %v4425 = vadd.f32 %v4421, 1.0
    %v4426 = vadd.f32 %v4423, 1.0
    %v4427 = vrcp.pop %v4424
    %v4428 = vmul.f32 1.0, %v4427
    %v4429 = vrcp.pop %v4425
    %v4430 = vmul.f32 1.0, %v4429
    %v4431 = vrcp.pop %v4426
    %v4432 = vmul.f32 1.0, %v4431
    %v4433 = vtanh.pop %v4414
    %v4434 = vmul.f32 %v4430, %v3954
    %v4435 = vmul.f32 %v4428, %v4433
    %v4436 = vadd.f32 %v4434, %v4435
    %v4437 = vtanh.pop %v4436
    %v4438 = vmul.f32 %v4432, %v4437
    %v4439 = vld [vmem:[%s7] sm:$0xff]
    %v4440 = vld [vmem:[%s7 + $0x8] sm:$0xff]
    %v4441 = vld [vmem:[%s7 + $0x10] sm:$0xff]
    %v4442 = vld [vmem:[%s7 + $0x18] sm:$0xff]
    %v4443 = vld [vmem:[%s7 + $0x20] sm:$0xff]
    %v4444 = vld [vmem:[%s7 + $0x28] sm:$0xff]
    %v4445 = vld [vmem:[%s7 + $0x30] sm:$0xff]
    %v4446 = vld [vmem:[%s7 + $0x38] sm:$0xff]
    %v4447 = vld [vmem:[%s7 + $0x40] sm:$0xff]
    %v4448 = vld [vmem:[%s7 + $0x48] sm:$0xff]
    %v4449 = vld [vmem:[%s7 + $0x50] sm:$0xff]
    %v4450 = vld [vmem:[%s7 + $0x58] sm:$0xff]
    %v4451 = vld [vmem:[%s7 + $0x60] sm:$0xff]
    %v4452 = vld [vmem:[%s7 + $0x68] sm:$0xff]
    %v4453 = vld [vmem:[%s7 + $0x70] sm:$0xff]
    %v4454 = vld [vmem:[%s7 + $0x78] sm:$0xff]
    %v4455 = vld [vmem:[%s8] sm:$0x1]
    %v4457 = vlaneseq
    %v4458 = vshrl.u32 %v4457, 7
    %v4459 = vsub.s32 0, %v4458
    %v4460 = vrot.slane %v4455, %v4459
    %4462 = vmatprep.subr.mxu0 0.0
    %4463 = vmatpush1.msra.mxu0 %v4439
    %4464 = vmatprep.subr.mxu0 0.0
    %4465 = vmatpush1.msra.mxu0 %v4440
    %4466 = vmatprep.subr.mxu0 0.0
    %4467 = vmatpush1.msra.mxu0 %v4441
    %4468 = vmatprep.subr.mxu0 0.0
    %4469 = vmatpush1.msra.mxu0 %v4442
    %4470 = vmatprep.subr.mxu0 0.0
    %4471 = vmatpush1.msra.mxu0 %v4443
    %4472 = vmatprep.subr.mxu0 0.0
    %4473 = vmatpush1.msra.mxu0 %v4444
    %4474 = vmatprep.subr.mxu0 0.0
    %4475 = vmatpush1.msra.mxu0 %v4445
    %4476 = vmatprep.subr.mxu0 0.0
    %4477 = vmatpush1.msra.mxu0 %v4446
    %4478 = vmatprep.subr.mxu0 0.0
    %4479 = vmatpush1.msra.mxu0 %v4447
    %4480 = vmatprep.subr.mxu0 0.0
    %4481 = vmatpush1.msra.mxu0 %v4448
    %4482 = vmatprep.subr.mxu0 0.0
    %4483 = vmatpush1.msra.mxu0 %v4449
    %4484 = vmatprep.subr.mxu0 0.0
    %4485 = vmatpush1.msra.mxu0 %v4450
    %4486 = vmatprep.subr.mxu0 0.0
    %4487 = vmatpush1.msra.mxu0 %v4451
    %4488 = vmatprep.subr.mxu0 0.0
    %4489 = vmatpush1.msra.mxu0 %v4452
    %4490 = vmatprep.subr.mxu0 0.0
    %4491 = vmatpush1.msra.mxu0 %v4453
    %4492 = vmatprep.subr.mxu0 0.0
    %4493 = vmatpush1.msra.mxu0 %v4454
    %4494 = vmatprep.subr.mxu0 0.0
    %4495 = vmatpush1.msra.mxu0 0.0
    %4496 = vmatprep.subr.mxu0 0.0
    %4497 = vmatpush1.msra.mxu0 0.0
    %4498 = vmatprep.subr.mxu0 0.0
    %4499 = vmatpush1.msra.mxu0 0.0
    %4500 = vmatprep.subr.mxu0 0.0
    %4501 = vmatpush1.msra.mxu0 0.0
    %4502 = vmatprep.subr.mxu0 0.0
    %4503 = vmatpush1.msra.mxu0 0.0
    %4504 = vmatprep.subr.mxu0 0.0
    %4505 = vmatpush1.msra.mxu0 0.0
    %4506 = vmatprep.subr.mxu0 0.0
    %4507 = vmatpush1.msra.mxu0 0.0
    %4508 = vmatprep.subr.mxu0 0.0
    %4509 = vmatpush1.msra.mxu0 0.0
    %4510 = vmatprep.subr.mxu0 0.0
    %4511 = vmatpush1.msra.mxu0 0.0
    %4512 = vmatprep.subr.mxu0 0.0
    %4513 = vmatpush1.msra.mxu0 0.0
    %4514 = vmatprep.subr.mxu0 0.0
    %4515 = vmatpush1.msra.mxu0 0.0
    %4516 = vmatprep.subr.mxu0 0.0
    %4517 = vmatpush1.msra.mxu0 0.0
    %4518 = vmatprep.subr.mxu0 0.0
    %4519 = vmatpush1.msra.mxu0 0.0
    %4520 = vmatprep.subr.mxu0 0.0
    %4521 = vmatpush1.msra.mxu0 0.0
    %4522 = vmatprep.subr.mxu0 0.0
    %4523 = vmatpush1.msra.mxu0 0.0
    %4524 = vmatprep.subr.mxu0 0.0
    %4525 = vmatpush1.msra.mxu0 0.0
    %4526 = vmatprep.mubr.f32.mxu0 0.0
    %4527 = vmatmul.mubr.f32.gmra.mrb[0].mxu0 %v4438
    %v4528 = vpop.f32.mrb[0].mxu0
    %v4529 = vadd.f32 %v4460, %v4528
    %v4530 = vpop.f32.mrb[0].mxu0
    %4531 = vdwg.mxu0
    %vm4532 = vcmask 31744
    %v4533 = vsel %vm4532, %v4529, -inf
    %4534 = vmax.xlane.f32.xlu0 %v4533
    %v4535 = vpop.xlane.xlu0 %4534
    %v4536 = vsub.f32 %v4529, %v4535
    %v4537 = vmul.f32 %v4536, 1.442695
    %v4538 = vpow.pop %v4537
    %v4539 = vsel %vm4532, %v4538, 0.0
    %4540 = vadd.xlane.f32.xlu0 %v4539
    %v4541 = vpop.xlane.xlu0 %4540
    %v4542 = vrcp.pop %v4541
    %v4543 = vmul.f32 %v4538, %v4542
    %4544 = vst.msk [vmem:[%s9] sm:$0xff] %vm4532, %v4543
    // Predicated region
    $region50: #{tpu_custom_call.1} parent=1 // pred_check
      _
    $region51: #{tpu_custom_call.1} parent=1 // pred_check_branch
      %4546 = sbr.rel (0) target = $region53
    $region52: #{tpu_custom_call.1} parent=1 // pred_region
      _
    $region53: #{tpu_custom_call.1} parent=1 // pred_fallthru
      _
    // Predicated region
    $region54: #{tpu_custom_call.1} parent=1 // pred_check
      _
    $region55: #{tpu_custom_call.1} parent=1 // pred_check_branch
      %4548 = sbr.rel (0) target = $region57
    $region56: #{tpu_custom_call.1} parent=1 // pred_region
      _
    $region57: #{tpu_custom_call.1} parent=1 // pred_fallthru
      _
    %4549 = vsyncpa [#allocation3], 1
    %4550 = vsyncpa [#allocation5], 1

</llo_original>
